<compile_context>
chip_gen: v5e
topology: v5e:2x2
jax: 0.10.0
libtpu: 0.0.40
codegen_flags: <defaults>
</compile_context>

<pallas_src>
import functools

import jax
import jax.numpy as jnp
from jax.experimental import pallas as pl
from jax.experimental.pallas import tpu as pltpu


def _round_up(n, m):
    return ((n + m - 1) // m) * m


def autotsk_kernel(x_ref, qw_ref, lw_ref, ab_ref, wf_ref, bf_ref, o_ref, *,
                   n_rule, out_dim):
    """One batch tile: antecedent firing strengths + fused per-rule linear/softmax mixture."""
    x = x_ref[...]                                                   # [TN, D] f32

    # ---- antecedent: Gaussian log-firing via quadratic expansion (two tiny MXU dots)
    #   z_r = -0.5*sum(x^2/s^2) + sum(x*c/s^2) - 0.5*sum(c^2/s^2)
    z = jnp.dot(x * x, qw_ref[...], preferred_element_type=jnp.float32)
    z = z + jnp.dot(x, lw_ref[...], preferred_element_type=jnp.float32)
    z = z + ab_ref[...]                                              # [TN, R]
    z = z - jnp.max(z, axis=-1, keepdims=True)
    ez = jnp.exp(z)
    frs = ez * pl.reciprocal(jnp.sum(ez, axis=-1, keepdims=True), approx=True)  # [TN, R]

    # ---- consequent: ONE fused matmul for all rules (bf16 inputs, f32 accumulation)
    logits_all = jnp.dot(x.astype(wf_ref.dtype), wf_ref[...],
                         preferred_element_type=jnp.float32) + bf_ref[...]       # [TN, R*O]

    # per-rule softmax over static O-wide lane slices, weighted by frs, summed over rules
    acc = jnp.zeros(o_ref.shape, jnp.float32)
    for r in range(n_rule):                                          # n_rule static & small
        lg = logits_all[:, r * out_dim:(r + 1) * out_dim]
        lg = lg - jnp.max(lg, axis=-1, keepdims=True)
        el = jnp.exp(lg)
        p = el * pl.reciprocal(jnp.sum(el, axis=-1, keepdims=True), approx=True)
        acc = acc + p * frs[:, r:r + 1]
    o_ref[...] = acc


def autotsk_forward(x, centers, sigmas, W, b, *, tile_n=256,
                    conseq_dtype=jnp.bfloat16):
    N, D = x.shape
    R, _, O = W.shape

    # ---- host-side precomputation (done once by XLA, outside the kernel)
    inv_s2 = 1.0 / (sigmas * sigmas)                                       # [R, D]
    qw = (-0.5 * inv_s2).T.astype(jnp.float32)                             # [D, R]
    lw = (centers * inv_s2).T.astype(jnp.float32)                          # [D, R]
    ab = (-0.5 * jnp.sum(centers * centers * inv_s2, axis=-1)
          ).reshape(1, R).astype(jnp.float32)                              # [1, R]
    wf = jnp.transpose(W, (1, 0, 2)).reshape(D, R * O).astype(conseq_dtype)  # [D, R*O]
    bf = b.reshape(1, R * O).astype(jnp.float32)                           # [1, R*O]

    # ---- batch tiling: pad ragged N, multi-step grid for pipelining / megacore
    tile_n = max(8, _round_up(min(tile_n, _round_up(N, 8)), 8))
    n_pad = (-N) % tile_n
    if n_pad:
        x = jnp.pad(x, ((0, n_pad), (0, 0)))
    Np = N + n_pad

    kern = functools.partial(autotsk_kernel, n_rule=R, out_dim=O)
    out = pl.pallas_call(
        kern,
        out_shape=jax.ShapeDtypeStruct((Np, O), jnp.float32),
        grid=(Np // tile_n,),
        in_specs=[
            pl.BlockSpec((tile_n, D), lambda i: (i, 0)),   # X tile
            pl.BlockSpec((D, R), lambda i: (0, 0)),        # -0.5 / sigma^2  (transposed)
            pl.BlockSpec((D, R), lambda i: (0, 0)),        # centers / sigma^2 (transposed)
            pl.BlockSpec((1, R), lambda i: (0, 0)),        # antecedent constant term
            pl.BlockSpec((D, R * O), lambda i: (0, 0)),    # fused rule weights (bf16)
            pl.BlockSpec((1, R * O), lambda i: (0, 0)),    # fused rule biases
        ],
        out_specs=pl.BlockSpec((tile_n, O), lambda i: (i, 0)),
        compiler_params=pltpu.CompilerParams(
            dimension_semantics=("parallel",),
            vmem_limit_bytes=32 * 1024 * 1024,
        ),
    )(x, qw, lw, ab, wf, bf)

    return out[:N] if n_pad else out


def autotsk_reference(x, centers, sigmas, W, b):
    """Pure-JAX (f32) reference matching the PyTorch forward (default branch)."""
    diff = (x[:, None, :] - centers[None]) / sigmas[None]      # [N, R, D]
    z = -0.5 * jnp.sum(diff * diff, axis=-1)                   # [N, R]
    frs = jax.nn.softmax(z, axis=-1)                           # [N, R]
    logits = jnp.einsum("nd,rdo->nro", x, W) + b[None]         # [N, R, O]
    p = jax.nn.softmax(logits, axis=-1)                        # softmax over out_dim
    return jnp.sum(p * frs[:, :, None], axis=1).astype(jnp.float32)


if __name__ == "__main__":
    N, in_dim, out_dim, n_rule = 1000, 32, 16, 4   # ragged N exercises the padding path

    key = jax.random.PRNGKey(0)
    kx, kc, kw, kb = jax.random.split(key, 4)

    x = jax.random.normal(kx, (N, in_dim), dtype=jnp.float32)

    # antecedent params (Gaussian rule centers / widths), deterministic
    centers = jax.random.normal(kc, (n_rule, in_dim), dtype=jnp.float32)
    sigmas = jnp.ones((n_rule, in_dim), dtype=jnp.float32)

    # per-rule nn.Linear(in_dim, out_dim): uniform(-1/sqrt(in_dim), 1/sqrt(in_dim))
    bound = 1.0 / (in_dim ** 0.5)
    W = jax.random.uniform(kw, (n_rule, in_dim, out_dim),
                           minval=-bound, maxval=bound, dtype=jnp.float32)
    b = jax.random.uniform(kb, (n_rule, out_dim),
                           minval=-bound, maxval=bound, dtype=jnp.float32)

    out = autotsk_forward(x, centers, sigmas, W, b)
    out = jax.block_until_ready(out)

    ref = autotsk_reference(x, centers, sigmas, W, b)
    assert out.shape == (N, out_dim) and out.dtype == jnp.float32
    # Tolerance accounts for bf16 consequent matmul + EUP approx reciprocals (<~3e-3 worst case).
    assert jnp.allclose(out, ref, atol=1e-2, rtol=1e-2), (
        "mismatch vs reference, max abs err = %e" % float(jnp.max(jnp.abs(out - ref))))

    print("KERNEL_OK")
</pallas_src>

<mosaic_0001>
module attributes {stable_mosaic.version = 11 : i64} {
  func.func @autotsk_kernel(%arg0: i32, %arg1: memref<256x32xf32, #tpu.memory_space<vmem>>, %arg2: memref<32x4xf32, #tpu.memory_space<vmem>>, %arg3: memref<32x4xf32, #tpu.memory_space<vmem>>, %arg4: memref<1x4xf32, #tpu.memory_space<vmem>>, %arg5: memref<32x64xbf16, #tpu.memory_space<vmem>>, %arg6: memref<1x64xf32, #tpu.memory_space<vmem>>, %arg7: memref<256x16xf32, #tpu.memory_space<vmem>>) attributes {dimension_semantics = [#tpu.dimension_semantics<parallel>], iteration_bounds = array<i64: 4>, scalar_prefetch = 0 : i64, scratch_operands = 0 : i64, tpu.core_type = #tpu.core_type<tc>, window_params = [{transform_indices = @transform_0, window_bounds = array<i64: 256, 32>}, {pipeline_mode = #tpu.pipeline_mode<synchronous>, transform_indices = @transform_1, window_bounds = array<i64: 32, 4>}, {pipeline_mode = #tpu.pipeline_mode<synchronous>, transform_indices = @transform_2, window_bounds = array<i64: 32, 4>}, {pipeline_mode = #tpu.pipeline_mode<synchronous>, transform_indices = @transform_3, window_bounds = array<i64: 1, 4>}, {pipeline_mode = #tpu.pipeline_mode<synchronous>, transform_indices = @transform_4, window_bounds = array<i64: 32, 64>}, {pipeline_mode = #tpu.pipeline_mode<synchronous>, transform_indices = @transform_5, window_bounds = array<i64: 1, 64>}, {transform_indices = @transform_6, window_bounds = array<i64: 256, 16>}]} {
    %c0 = arith.constant 0 : index
    %c0_0 = arith.constant 0 : index
    %0 = vector.load %arg1[%c0, %c0_0] : memref<256x32xf32, #tpu.memory_space<vmem>>, vector<256x32xf32>
    %1 = arith.mulf %0, %0 : vector<256x32xf32>
    %c0_1 = arith.constant 0 : index
    %c0_2 = arith.constant 0 : index
    %2 = vector.load %arg2[%c0_1, %c0_2] : memref<32x4xf32, #tpu.memory_space<vmem>>, vector<32x4xf32>
    %cst = arith.constant dense<0.000000e+00> : vector<256x4xf32>
    %3 = tpu.matmul %1, %2, %cst {dimension_numbers = #tpu.dot_dimension_numbers<[1], [0], [0], [1], [0, 0, 1, 1], [], []>} : vector<256x32xf32>, vector<32x4xf32>, vector<256x4xf32> -> vector<256x4xf32>
    %c0_3 = arith.constant 0 : index
    %c0_4 = arith.constant 0 : index
    %4 = vector.load %arg3[%c0_3, %c0_4] : memref<32x4xf32, #tpu.memory_space<vmem>>, vector<32x4xf32>
    %cst_5 = arith.constant dense<0.000000e+00> : vector<256x4xf32>
    %5 = tpu.matmul %0, %4, %cst_5 {dimension_numbers = #tpu.dot_dimension_numbers<[1], [0], [0], [1], [0, 0, 1, 1], [], []>} : vector<256x32xf32>, vector<32x4xf32>, vector<256x4xf32> -> vector<256x4xf32>
    %6 = arith.addf %3, %5 : vector<256x4xf32>
    %c0_6 = arith.constant 0 : index
    %c0_7 = arith.constant 0 : index
    %7 = vector.load %arg4[%c0_6, %c0_7] : memref<1x4xf32, #tpu.memory_space<vmem>>, vector<1x4xf32>
    %8 = vector.broadcast %7 : vector<1x4xf32> to vector<256x4xf32>
    %9 = arith.addf %6, %8 : vector<256x4xf32>
    %cst_8 = arith.constant dense<0xFF800000> : vector<256xf32>
    %10 = vector.multi_reduction <maximumf>, %9, %cst_8 [1] : vector<256x4xf32> to vector<256xf32>
    %11 = vector.shape_cast %10 : vector<256xf32> to vector<256x1xf32>
    %12 = vector.broadcast %11 : vector<256x1xf32> to vector<256x4xf32>
    %13 = arith.subf %9, %12 : vector<256x4xf32>
    %14 = math.exp %13 : vector<256x4xf32>
    %cst_9 = arith.constant dense<0.000000e+00> : vector<256xf32>
    %15 = vector.multi_reduction <add>, %14, %cst_9 [1] : vector<256x4xf32> to vector<256xf32>
    %16 = vector.shape_cast %15 : vector<256xf32> to vector<256x1xf32>
    %17 = tpu.reciprocal %16 {approx = true} : vector<256x1xf32> -> vector<256x1xf32>
    %18 = vector.broadcast %17 : vector<256x1xf32> to vector<256x4xf32>
    %19 = arith.mulf %14, %18 : vector<256x4xf32>
    %20 = arith.truncf %0 : vector<256x32xf32> to vector<256x32xbf16>
    %c0_10 = arith.constant 0 : index
    %c0_11 = arith.constant 0 : index
    %21 = vector.load %arg5[%c0_10, %c0_11] : memref<32x64xbf16, #tpu.memory_space<vmem>>, vector<32x64xbf16>
    %cst_12 = arith.constant dense<0.000000e+00> : vector<256x64xf32>
    %22 = tpu.matmul %20, %21, %cst_12 {dimension_numbers = #tpu.dot_dimension_numbers<[1], [0], [0], [1], [0, 0, 1, 1], [], []>} : vector<256x32xbf16>, vector<32x64xbf16>, vector<256x64xf32> -> vector<256x64xf32>
    %c0_13 = arith.constant 0 : index
    %c0_14 = arith.constant 0 : index
    %23 = vector.load %arg6[%c0_13, %c0_14] : memref<1x64xf32, #tpu.memory_space<vmem>>, vector<1x64xf32>
    %24 = vector.broadcast %23 : vector<1x64xf32> to vector<256x64xf32>
    %25 = arith.addf %22, %24 : vector<256x64xf32>
    %cst_15 = arith.constant 0.000000e+00 : f32
    %26 = vector.broadcast %cst_15 : f32 to vector<256x16xf32>
    %27 = vector.extract_strided_slice %25 {offsets = [0, 0], sizes = [256, 16], strides = [1, 1]} : vector<256x64xf32> to vector<256x16xf32>
    %cst_16 = arith.constant dense<0xFF800000> : vector<256xf32>
    %28 = vector.multi_reduction <maximumf>, %27, %cst_16 [1] : vector<256x16xf32> to vector<256xf32>
    %29 = vector.shape_cast %28 : vector<256xf32> to vector<256x1xf32>
    %30 = vector.broadcast %29 : vector<256x1xf32> to vector<256x16xf32>
    %31 = arith.subf %27, %30 : vector<256x16xf32>
    %32 = math.exp %31 : vector<256x16xf32>
    %cst_17 = arith.constant dense<0.000000e+00> : vector<256xf32>
    %33 = vector.multi_reduction <add>, %32, %cst_17 [1] : vector<256x16xf32> to vector<256xf32>
    %34 = vector.shape_cast %33 : vector<256xf32> to vector<256x1xf32>
    %35 = tpu.reciprocal %34 {approx = true} : vector<256x1xf32> -> vector<256x1xf32>
    %36 = vector.broadcast %35 : vector<256x1xf32> to vector<256x16xf32>
    %37 = arith.mulf %32, %36 : vector<256x16xf32>
    %38 = vector.extract_strided_slice %19 {offsets = [0, 0], sizes = [256, 1], strides = [1, 1]} : vector<256x4xf32> to vector<256x1xf32>
    %39 = vector.broadcast %38 : vector<256x1xf32> to vector<256x16xf32>
    %40 = arith.mulf %37, %39 : vector<256x16xf32>
    %41 = arith.addf %26, %40 : vector<256x16xf32>
    %42 = vector.extract_strided_slice %25 {offsets = [0, 16], sizes = [256, 16], strides = [1, 1]} : vector<256x64xf32> to vector<256x16xf32>
    %cst_18 = arith.constant dense<0xFF800000> : vector<256xf32>
    %43 = vector.multi_reduction <maximumf>, %42, %cst_18 [1] : vector<256x16xf32> to vector<256xf32>
    %44 = vector.shape_cast %43 : vector<256xf32> to vector<256x1xf32>
    %45 = vector.broadcast %44 : vector<256x1xf32> to vector<256x16xf32>
    %46 = arith.subf %42, %45 : vector<256x16xf32>
    %47 = math.exp %46 : vector<256x16xf32>
    %cst_19 = arith.constant dense<0.000000e+00> : vector<256xf32>
    %48 = vector.multi_reduction <add>, %47, %cst_19 [1] : vector<256x16xf32> to vector<256xf32>
    %49 = vector.shape_cast %48 : vector<256xf32> to vector<256x1xf32>
    %50 = tpu.reciprocal %49 {approx = true} : vector<256x1xf32> -> vector<256x1xf32>
    %51 = vector.broadcast %50 : vector<256x1xf32> to vector<256x16xf32>
    %52 = arith.mulf %47, %51 : vector<256x16xf32>
    %53 = vector.extract_strided_slice %19 {offsets = [0, 1], sizes = [256, 1], strides = [1, 1]} : vector<256x4xf32> to vector<256x1xf32>
    %54 = vector.broadcast %53 : vector<256x1xf32> to vector<256x16xf32>
    %55 = arith.mulf %52, %54 : vector<256x16xf32>
    %56 = arith.addf %41, %55 : vector<256x16xf32>
    %57 = vector.extract_strided_slice %25 {offsets = [0, 32], sizes = [256, 16], strides = [1, 1]} : vector<256x64xf32> to vector<256x16xf32>
    %cst_20 = arith.constant dense<0xFF800000> : vector<256xf32>
    %58 = vector.multi_reduction <maximumf>, %57, %cst_20 [1] : vector<256x16xf32> to vector<256xf32>
    %59 = vector.shape_cast %58 : vector<256xf32> to vector<256x1xf32>
    %60 = vector.broadcast %59 : vector<256x1xf32> to vector<256x16xf32>
    %61 = arith.subf %57, %60 : vector<256x16xf32>
    %62 = math.exp %61 : vector<256x16xf32>
    %cst_21 = arith.constant dense<0.000000e+00> : vector<256xf32>
    %63 = vector.multi_reduction <add>, %62, %cst_21 [1] : vector<256x16xf32> to vector<256xf32>
    %64 = vector.shape_cast %63 : vector<256xf32> to vector<256x1xf32>
    %65 = tpu.reciprocal %64 {approx = true} : vector<256x1xf32> -> vector<256x1xf32>
    %66 = vector.broadcast %65 : vector<256x1xf32> to vector<256x16xf32>
    %67 = arith.mulf %62, %66 : vector<256x16xf32>
    %68 = vector.extract_strided_slice %19 {offsets = [0, 2], sizes = [256, 1], strides = [1, 1]} : vector<256x4xf32> to vector<256x1xf32>
    %69 = vector.broadcast %68 : vector<256x1xf32> to vector<256x16xf32>
    %70 = arith.mulf %67, %69 : vector<256x16xf32>
    %71 = arith.addf %56, %70 : vector<256x16xf32>
    %72 = vector.extract_strided_slice %25 {offsets = [0, 48], sizes = [256, 16], strides = [1, 1]} : vector<256x64xf32> to vector<256x16xf32>
    %cst_22 = arith.constant dense<0xFF800000> : vector<256xf32>
    %73 = vector.multi_reduction <maximumf>, %72, %cst_22 [1] : vector<256x16xf32> to vector<256xf32>
    %74 = vector.shape_cast %73 : vector<256xf32> to vector<256x1xf32>
    %75 = vector.broadcast %74 : vector<256x1xf32> to vector<256x16xf32>
    %76 = arith.subf %72, %75 : vector<256x16xf32>
    %77 = math.exp %76 : vector<256x16xf32>
    %cst_23 = arith.constant dense<0.000000e+00> : vector<256xf32>
    %78 = vector.multi_reduction <add>, %77, %cst_23 [1] : vector<256x16xf32> to vector<256xf32>
    %79 = vector.shape_cast %78 : vector<256xf32> to vector<256x1xf32>
    %80 = tpu.reciprocal %79 {approx = true} : vector<256x1xf32> -> vector<256x1xf32>
    %81 = vector.broadcast %80 : vector<256x1xf32> to vector<256x16xf32>
    %82 = arith.mulf %77, %81 : vector<256x16xf32>
    %83 = vector.extract_strided_slice %19 {offsets = [0, 3], sizes = [256, 1], strides = [1, 1]} : vector<256x4xf32> to vector<256x1xf32>
    %84 = vector.broadcast %83 : vector<256x1xf32> to vector<256x16xf32>
    %85 = arith.mulf %82, %84 : vector<256x16xf32>
    %86 = arith.addf %71, %85 : vector<256x16xf32>
    %c0_24 = arith.constant 0 : index
    %c0_25 = arith.constant 0 : index
    %87 = vector.load %arg7[%c0_24, %c0_25] : memref<256x16xf32, #tpu.memory_space<vmem>>, vector<256x16xf32>
    tpu.vector_store %arg7[%c0_24, %c0_25], %86 {strides = array<i32>} : memref<256x16xf32, #tpu.memory_space<vmem>>, vector<256x16xf32>,
    return
  }
  func.func @transform_0(%arg0: i32) -> (i32, i32) {
    %c0_i32 = arith.constant 0 : i32
    %c0_i32_0 = arith.constant 0 : i32
    return %arg0, %c0_i32 : i32, i32
  }
  func.func @transform_1(%arg0: i32) -> (i32, i32) {
    %c0_i32 = arith.constant 0 : i32
    %c0_i32_0 = arith.constant 0 : i32
    %c0_i32_1 = arith.constant 0 : i32
    return %c0_i32, %c0_i32_0 : i32, i32
  }
  func.func @transform_2(%arg0: i32) -> (i32, i32) {
    %c0_i32 = arith.constant 0 : i32
    %c0_i32_0 = arith.constant 0 : i32
    %c0_i32_1 = arith.constant 0 : i32
    return %c0_i32, %c0_i32_0 : i32, i32
  }
  func.func @transform_3(%arg0: i32) -> (i32, i32) {
    %c0_i32 = arith.constant 0 : i32
    %c0_i32_0 = arith.constant 0 : i32
    %c0_i32_1 = arith.constant 0 : i32
    return %c0_i32, %c0_i32_0 : i32, i32
  }
  func.func @transform_4(%arg0: i32) -> (i32, i32) {
    %c0_i32 = arith.constant 0 : i32
    %c0_i32_0 = arith.constant 0 : i32
    %c0_i32_1 = arith.constant 0 : i32
    return %c0_i32, %c0_i32_0 : i32, i32
  }
  func.func @transform_5(%arg0: i32) -> (i32, i32) {
    %c0_i32 = arith.constant 0 : i32
    %c0_i32_0 = arith.constant 0 : i32
    %c0_i32_1 = arith.constant 0 : i32
    return %c0_i32, %c0_i32_0 : i32, i32
  }
  func.func @transform_6(%arg0: i32) -> (i32, i32) {
    %c0_i32 = arith.constant 0 : i32
    %c0_i32_0 = arith.constant 0 : i32
    return %arg0, %c0_i32 : i32, i32
  }
}

</mosaic_0001>

<llo_original>
// kernel: tpu_custom_call.1
$region0: #{tpu_custom_call.1}
  #allocation0 [shape = 'u32[]', space=smem, size = 0x4, offset = 0x4, fixed_abs, tag = 'smem constant byte address 0x4 - core index']
  #allocation1 [shape = 'u32[72,128]{1,0:T(1,128)}', space=vmem, size = 0x9000, scoped, tag = 'internal scratch']
  %s0 = inlined_call_operand.vmem [shape: f32[1024,32], index: 0, kind: input, shape index: {}]
  %s1 = inlined_call_operand.vmem [shape: f32[32,4], index: 1, kind: input, shape index: {}]
  %s2 = inlined_call_operand.vmem [shape: f32[32,4], index: 2, kind: input, shape index: {}]
  %s3 = inlined_call_operand.vmem [shape: f32[1,4], index: 3, kind: input, shape index: {}]
  %s4 = inlined_call_operand.vmem [shape: bf16[32,64], index: 4, kind: input, shape index: {}]
  %s5 = inlined_call_operand.vmem [shape: f32[1,64], index: 5, kind: input, shape index: {}]
  %s6 = inlined_call_operand.vmem [shape: f32[1024,16], index: 6, kind: output, shape index: {}]
  %s7 = sld [smem:[#allocation0]]
  $region57: #{tpu_custom_call.1} parent=0
    _
  %s9 = ssub.s32 1, %s7
  %s10 = scalar_select 0, %s9, %s7
  loop: start=0, step=1, limit=6
  $region2: #{tpu_custom_call.1} parent=0 // loop_pre_header
    _
  $region3: #{tpu_custom_call.1} parent=0 // loop_header
    %s12 = sphi 0, %s16
    %p13 = scmp.ge.s32.totalorder %s12, 6
    %s22 = sphi 0, %s24
    %s25 = sphi 0, %s22
    %s26 = sphi 0, %s25
    %s42 = sphi 0, %s26
    %s46 = sphi 0, %s46
    %s48 = sphi 0, %s46
    %s49 = sphi 0, %s48
    %s63 = sphi 0, %s49
    %s67 = sphi 0, %s67
    %s69 = sphi 0, %s67
    %s70 = sphi 0, %s69
    %s84 = sphi 0, %s70
    %s88 = sphi 0, %s88
    %s90 = sphi 0, %s88
    %s91 = sphi 0, %s90
    %s105 = sphi 0, %s91
    %s109 = sphi 0, %s109
    %s111 = sphi 0, %s109
    %s112 = sphi 0, %s111
    %s126 = sphi 0, %s112
    %s130 = sphi 0, %s130
    %s132 = sphi 0, %s130
    %s133 = sphi 0, %s132
    %s147 = sphi 0, %s133
    %s153 = sphi 0, %s155
    %s156 = sphi 0, %s153
    %s157 = sphi 0, %s156
    %s173 = sphi 0, %s157
  $region4: #{tpu_custom_call.1} parent=0 // loop_header_branch
    %15 = sbr.rel (%p13) target = $region8
  $region5: #{tpu_custom_call.1} parent=0 // loop_body
    %s17 = ssub.s32 %s12, 1
    %s18 = ssub.s32 %s12, 2
    %s19 = sadd.s32 %s12, 1
    %s20 = ssub.s32 %s12, %s19
    %p21 = scmp.eq.s32.totalorder %s20, 0
    %s23 = sadd.s32 %s22, 1
    %s24 = scalar_select %p21, %s22, %s23
    %p27 = pneg %p21
    %p28 = scmp.eq.s32.totalorder %s12, 3
    %p29 = por %p27, %p28
    %p30 = scmp.ne.s32.totalorder %s22, %s25
    %p31 = scmp.eq.s32.totalorder %s12, 0
    %p32 = por %p30, %p31
    %p33 = scmp.ne.s32.totalorder %s22, %s25
    %p34 = scmp.eq.s32.totalorder %s17, 3
    %p35 = por %p33, %p34
    %p36 = scmp.ne.s32.totalorder %s25, %s26
    %p37 = scmp.eq.s32.totalorder %s17, 0
    %p38 = por %p36, %p37
    %p39 = scmp.ne.s32.totalorder %s25, %s26
    %p40 = scmp.eq.s32.totalorder %s18, 3
    %p41 = por %p39, %p40
    %p43 = scmp.ne.s32.totalorder %s26, %s42
    %p44 = scmp.eq.s32.totalorder %s18, 0
    %p45 = por %p43, %p44
    %s47 = sadd.s32 %s46, 1
    %p50 = scmp.eq.s32.totalorder %s12, 3
    %p51 = scmp.ne.s32.totalorder %s46, %s48
    %p52 = scmp.eq.s32.totalorder %s12, 0
    %p53 = por %p51, %p52
    %p54 = scmp.ne.s32.totalorder %s46, %s48
    %p55 = scmp.eq.s32.totalorder %s17, 3
    %p56 = por %p54, %p55
    %p57 = scmp.ne.s32.totalorder %s48, %s49
    %p58 = scmp.eq.s32.totalorder %s17, 0
    %p59 = por %p57, %p58
    %p60 = scmp.ne.s32.totalorder %s48, %s49
    %p61 = scmp.eq.s32.totalorder %s18, 3
    %p62 = por %p60, %p61
    %p64 = scmp.ne.s32.totalorder %s49, %s63
    %p65 = scmp.eq.s32.totalorder %s18, 0
    %p66 = por %p64, %p65
    %s68 = sadd.s32 %s67, 1
    %p71 = scmp.eq.s32.totalorder %s12, 3
    %p72 = scmp.ne.s32.totalorder %s67, %s69
    %p73 = scmp.eq.s32.totalorder %s12, 0
    %p74 = por %p72, %p73
    %p75 = scmp.ne.s32.totalorder %s67, %s69
    %p76 = scmp.eq.s32.totalorder %s17, 3
    %p77 = por %p75, %p76
    %p78 = scmp.ne.s32.totalorder %s69, %s70
    %p79 = scmp.eq.s32.totalorder %s17, 0
    %p80 = por %p78, %p79
    %p81 = scmp.ne.s32.totalorder %s69, %s70
    %p82 = scmp.eq.s32.totalorder %s18, 3
    %p83 = por %p81, %p82
    %p85 = scmp.ne.s32.totalorder %s70, %s84
    %p86 = scmp.eq.s32.totalorder %s18, 0
    %p87 = por %p85, %p86
    %s89 = sadd.s32 %s88, 1
    %p92 = scmp.eq.s32.totalorder %s12, 3
    %p93 = scmp.ne.s32.totalorder %s88, %s90
    %p94 = scmp.eq.s32.totalorder %s12, 0
    %p95 = por %p93, %p94
    %p96 = scmp.ne.s32.totalorder %s88, %s90
    %p97 = scmp.eq.s32.totalorder %s17, 3
    %p98 = por %p96, %p97
    %p99 = scmp.ne.s32.totalorder %s90, %s91
    %p100 = scmp.eq.s32.totalorder %s17, 0
    %p101 = por %p99, %p100
    %p102 = scmp.ne.s32.totalorder %s90, %s91
    %p103 = scmp.eq.s32.totalorder %s18, 3
    %p104 = por %p102, %p103
    %p106 = scmp.ne.s32.totalorder %s91, %s105
    %p107 = scmp.eq.s32.totalorder %s18, 0
    %p108 = por %p106, %p107
    %s110 = sadd.s32 %s109, 1
    %p113 = scmp.eq.s32.totalorder %s12, 3
    %p114 = scmp.ne.s32.totalorder %s109, %s111
    %p115 = scmp.eq.s32.totalorder %s12, 0
    %p116 = por %p114, %p115
    %p117 = scmp.ne.s32.totalorder %s109, %s111
    %p118 = scmp.eq.s32.totalorder %s17, 3
    %p119 = por %p117, %p118
    %p120 = scmp.ne.s32.totalorder %s111, %s112
    %p121 = scmp.eq.s32.totalorder %s17, 0
    %p122 = por %p120, %p121
    %p123 = scmp.ne.s32.totalorder %s111, %s112
    %p124 = scmp.eq.s32.totalorder %s18, 3
    %p125 = por %p123, %p124
    %p127 = scmp.ne.s32.totalorder %s112, %s126
    %p128 = scmp.eq.s32.totalorder %s18, 0
    %p129 = por %p127, %p128
    %s131 = sadd.s32 %s130, 1
    %p134 = scmp.eq.s32.totalorder %s12, 3
    %p135 = scmp.ne.s32.totalorder %s130, %s132
    %p136 = scmp.eq.s32.totalorder %s12, 0
    %p137 = por %p135, %p136
    %p138 = scmp.ne.s32.totalorder %s130, %s132
    %p139 = scmp.eq.s32.totalorder %s17, 3
    %p140 = por %p138, %p139
    %p141 = scmp.ne.s32.totalorder %s132, %s133
    %p142 = scmp.eq.s32.totalorder %s17, 0
    %p143 = por %p141, %p142
    %p144 = scmp.ne.s32.totalorder %s132, %s133
    %p145 = scmp.eq.s32.totalorder %s18, 3
    %p146 = por %p144, %p145
    %p148 = scmp.ne.s32.totalorder %s133, %s147
    %p149 = scmp.eq.s32.totalorder %s18, 0
    %p150 = por %p148, %p149
    %s151 = ssub.s32 %s12, %s19
    %p152 = scmp.eq.s32.totalorder %s151, 0
    %s154 = sadd.s32 %s153, 1
    %s155 = scalar_select %p152, %s153, %s154
    %p158 = pneg %p152
    %p159 = scmp.eq.s32.totalorder %s12, 3
    %p160 = por %p158, %p159
    %p161 = scmp.ne.s32.totalorder %s153, %s156
    %p162 = scmp.eq.s32.totalorder %s12, 0
    %p163 = por %p161, %p162
    %p164 = scmp.ne.s32.totalorder %s153, %s156
    %p165 = scmp.eq.s32.totalorder %s17, 3
    %p166 = por %p164, %p165
    %p167 = scmp.ne.s32.totalorder %s156, %s157
    %p168 = scmp.eq.s32.totalorder %s17, 0
    %p169 = por %p167, %p168
    %p170 = scmp.ne.s32.totalorder %s156, %s157
    %p171 = scmp.eq.s32.totalorder %s18, 3
    %p172 = por %p170, %p171
    %p174 = scmp.ne.s32.totalorder %s157, %s173
    %p175 = scmp.eq.s32.totalorder %s18, 0
    %p176 = por %p174, %p175
    %p177 = scmp.le.s32.totalorder 1, %s12
    %p178 = scmp.lt.s32.totalorder %s12, 5
    %p179 = pnand %p177, %p178
    %p180 = pneg %p179
    // Predicated region
    $region9: #{tpu_custom_call.1} parent=5 // pred_check
      _
    $region10: #{tpu_custom_call.1} parent=5 // pred_check_branch
      %182 = sbr.rel (%p179) target = $region12
    $region11: #{tpu_custom_call.1} parent=5 // pred_region
      %s183 = ssub.s32 %s12, 1
      // Predicated region
      $region13: #{tpu_custom_call.1} parent=11 // pred_check
        %p184 = pneg %p59
      $region14: #{tpu_custom_call.1} parent=11 // pred_check_branch
        %186 = sbr.rel (%p184) target = $region16
      $region15: #{tpu_custom_call.1} parent=11 // pred_region
        _
      $region16: #{tpu_custom_call.1} parent=11 // pred_fallthru
        _
      // Predicated region
      $region17: #{tpu_custom_call.1} parent=11 // pred_check
        %p187 = pneg %p80
      $region18: #{tpu_custom_call.1} parent=11 // pred_check_branch
        %189 = sbr.rel (%p187) target = $region20
      $region19: #{tpu_custom_call.1} parent=11 // pred_region
        _
      $region20: #{tpu_custom_call.1} parent=11 // pred_fallthru
        _
      // Predicated region
      $region21: #{tpu_custom_call.1} parent=11 // pred_check
        %p190 = pneg %p101
      $region22: #{tpu_custom_call.1} parent=11 // pred_check_branch
        %192 = sbr.rel (%p190) target = $region24
      $region23: #{tpu_custom_call.1} parent=11 // pred_region
        _
      $region24: #{tpu_custom_call.1} parent=11 // pred_fallthru
        _
      // Predicated region
      $region25: #{tpu_custom_call.1} parent=11 // pred_check
        %p193 = pneg %p122
      $region26: #{tpu_custom_call.1} parent=11 // pred_check_branch
        %195 = sbr.rel (%p193) target = $region28
      $region27: #{tpu_custom_call.1} parent=11 // pred_region
        _
      $region28: #{tpu_custom_call.1} parent=11 // pred_fallthru
        _
      // Predicated region
      $region29: #{tpu_custom_call.1} parent=11 // pred_check
        %p196 = pneg %p143
      $region30: #{tpu_custom_call.1} parent=11 // pred_check_branch
        %198 = sbr.rel (%p196) target = $region32
      $region31: #{tpu_custom_call.1} parent=11 // pred_region
        _
      $region32: #{tpu_custom_call.1} parent=11 // pred_fallthru
        _
    $region12: #{tpu_custom_call.1} parent=5 // pred_fallthru
      _
    %p199 = scmp.lt.s32.totalorder %s12, 4
    // Predicated region
    $region33: #{tpu_custom_call.1} parent=5 // pred_check
      %p200 = pneg %p199
    $region34: #{tpu_custom_call.1} parent=5 // pred_check_branch
      %202 = sbr.rel (%p200) target = $region36
    $region35: #{tpu_custom_call.1} parent=5 // pred_region
      // Predicated region
      $region37: #{tpu_custom_call.1} parent=35 // pred_check
        %p203 = pneg %p32
      $region38: #{tpu_custom_call.1} parent=35 // pred_check_branch
        %205 = sbr.rel (%p203) target = $region40
      $region39: #{tpu_custom_call.1} parent=35 // pred_region
        %s206 = smul.u32 32, %s12
        %p207 = scmp.lt.s32.totalorder %s206, 127
        %s208 = scalar_select %p207, %s206, 127
        %s209 = smul.addr %s208, 8
        %s210 = scalar_lea.vmem %s0, %s209
        %s211 = smul.u32 32, %s12
      $region40: #{tpu_custom_call.1} parent=35 // pred_fallthru
        _
    $region36: #{tpu_custom_call.1} parent=5 // pred_fallthru
      _
    %p212 = scmp.le.s32.totalorder 1, %s12
    %p213 = scmp.lt.s32.totalorder %s12, 5
    %p214 = pnand %p212, %p213
    %p215 = pneg %p214
    // Predicated region
    $region41: #{tpu_custom_call.1} parent=5 // pred_check
      _
    $region42: #{tpu_custom_call.1} parent=5 // pred_check_branch
      %217 = sbr.rel (%p214) target = $region44
    $region43: #{tpu_custom_call.1} parent=5 // pred_region
      %s218 = ssub.s32 %s12, 1
      %s219 = smul.u32 32, %s17
      %p220 = scmp.lt.s32.totalorder %s219, 127
      %s221 = scalar_select %p220, %s219, 127
      %s222 = smul.addr %s221, 8
      %s223 = scalar_lea.vmem %s0, %s222
      %p224 = pneg %p38
      %p225 = pneg %p35
      %p226 = pneg %p59
      %p227 = pneg %p56
      %p228 = pneg %p80
      %p229 = pneg %p77
      %p230 = pneg %p101
      %p231 = pneg %p98
      %p232 = pneg %p122
      %p233 = pneg %p119
      %p234 = pneg %p143
      %p235 = pneg %p140
      %p236 = pneg %p169
      %p237 = pneg %p166
      %s238 = smul.u32 32, %s17
      %p239 = scmp.lt.s32.totalorder %s238, 127
      %s240 = scalar_select %p239, %s238, 127
      %s241 = smul.addr %s240, 8
      %s242 = scalar_lea.vmem %s6, %s241
      %s243 = smul.u32 32, %s17
      %p244 = scmp.lt.s32.totalorder %s243, 127
      %s245 = scalar_select %p244, %s243, 127
      %s246 = smul.addr %s245, 8
      %s247 = scalar_lea.vmem %s0, %s246
      %s248 = smul.u32 32, %s17
      %s249 = smul.u32 32, %s17
      %p250 = scmp.lt.s32.totalorder %s249, 127
      %s251 = scalar_select %p250, %s249, 127
      %s252 = smul.addr %s251, 8
      %s253 = scalar_lea.vmem %s6, %s252
      %s254 = smul.u32 32, %s17
      %v256 = vld [vmem:[%s247] sm:$0xff]
      %v257 = vld [vmem:[%s247 + $0x8] sm:$0xff]
      %v258 = vld [vmem:[%s247 + $0x10] sm:$0xff]
      %v259 = vld [vmem:[%s247 + $0x18] sm:$0xff]
      %v260 = vld [vmem:[%s247 + $0x20] sm:$0xff]
      %v261 = vld [vmem:[%s247 + $0x28] sm:$0xff]
      %v262 = vld [vmem:[%s247 + $0x30] sm:$0xff]
      %v263 = vld [vmem:[%s247 + $0x38] sm:$0xff]
      %v264 = vld [vmem:[%s247 + $0x40] sm:$0xff]
      %v265 = vld [vmem:[%s247 + $0x48] sm:$0xff]
      %v266 = vld [vmem:[%s247 + $0x50] sm:$0xff]
      %v267 = vld [vmem:[%s247 + $0x58] sm:$0xff]
      %v268 = vld [vmem:[%s247 + $0x60] sm:$0xff]
      %v269 = vld [vmem:[%s247 + $0x68] sm:$0xff]
      %v270 = vld [vmem:[%s247 + $0x70] sm:$0xff]
      %v271 = vld [vmem:[%s247 + $0x78] sm:$0xff]
      %v272 = vld [vmem:[%s247 + $0x80] sm:$0xff]
      %v273 = vld [vmem:[%s247 + $0x88] sm:$0xff]
      %v274 = vld [vmem:[%s247 + $0x90] sm:$0xff]
      %v275 = vld [vmem:[%s247 + $0x98] sm:$0xff]
      %v276 = vld [vmem:[%s247 + $0xa0] sm:$0xff]
      %v277 = vld [vmem:[%s247 + $0xa8] sm:$0xff]
      %v278 = vld [vmem:[%s247 + $0xb0] sm:$0xff]
      %v279 = vld [vmem:[%s247 + $0xb8] sm:$0xff]
      %v280 = vld [vmem:[%s247 + $0xc0] sm:$0xff]
      %v281 = vld [vmem:[%s247 + $0xc8] sm:$0xff]
      %v282 = vld [vmem:[%s247 + $0xd0] sm:$0xff]
      %v283 = vld [vmem:[%s247 + $0xd8] sm:$0xff]
      %v284 = vld [vmem:[%s247 + $0xe0] sm:$0xff]
      %v285 = vld [vmem:[%s247 + $0xe8] sm:$0xff]
      %v286 = vld [vmem:[%s247 + $0xf0] sm:$0xff]
      %v287 = vld [vmem:[%s247 + $0xf8] sm:$0xff]
      %v288 = vmul.f32 %v256, %v256
      %v289 = vmul.f32 %v257, %v257
      %v290 = vmul.f32 %v258, %v258
      %v291 = vmul.f32 %v259, %v259
      %v292 = vmul.f32 %v260, %v260
      %v293 = vmul.f32 %v261, %v261
      %v294 = vmul.f32 %v262, %v262
      %v295 = vmul.f32 %v263, %v263
      %v296 = vmul.f32 %v264, %v264
      %v297 = vmul.f32 %v265, %v265
      %v298 = vmul.f32 %v266, %v266
      %v299 = vmul.f32 %v267, %v267
      %v300 = vmul.f32 %v268, %v268
      %v301 = vmul.f32 %v269, %v269
      %v302 = vmul.f32 %v270, %v270
      %v303 = vmul.f32 %v271, %v271
      %v304 = vmul.f32 %v272, %v272
      %v305 = vmul.f32 %v273, %v273
      %v306 = vmul.f32 %v274, %v274
      %v307 = vmul.f32 %v275, %v275
      %v308 = vmul.f32 %v276, %v276
      %v309 = vmul.f32 %v277, %v277
      %v310 = vmul.f32 %v278, %v278
      %v311 = vmul.f32 %v279, %v279
      %v312 = vmul.f32 %v280, %v280
      %v313 = vmul.f32 %v281, %v281
      %v314 = vmul.f32 %v282, %v282
      %v315 = vmul.f32 %v283, %v283
      %v316 = vmul.f32 %v284, %v284
      %v317 = vmul.f32 %v285, %v285
      %v318 = vmul.f32 %v286, %v286
      %v319 = vmul.f32 %v287, %v287
      %v320 = vld [vmem:[%s1] sm:$0xff]
      %v321 = vld [vmem:[%s1 + $0x8] sm:$0xff]
      %v322 = vld [vmem:[%s1 + $0x10] sm:$0xff]
      %v323 = vld [vmem:[%s1 + $0x18] sm:$0xff]
      %v324 = vld [vmem:[%s2] sm:$0xff]
      %v325 = vld [vmem:[%s2 + $0x8] sm:$0xff]
      %v326 = vld [vmem:[%s2 + $0x10] sm:$0xff]
      %v327 = vld [vmem:[%s2 + $0x18] sm:$0xff]
      %vm328 = vcmask 261120
      %v330 = vsel %vm328, %v256, 0
      %v333 = vsel %vm328, %v257, 0
      %v336 = vsel %vm328, %v258, 0
      %v339 = vsel %vm328, %v259, 0
      %v342 = vsel %vm328, %v260, 0
      %v345 = vsel %vm328, %v261, 0
      %v348 = vsel %vm328, %v262, 0
      %v351 = vsel %vm328, %v263, 0
      %v354 = vsel %vm328, %v264, 0
      %v357 = vsel %vm328, %v265, 0
      %v360 = vsel %vm328, %v266, 0
      %v363 = vsel %vm328, %v267, 0
      %v366 = vsel %vm328, %v268, 0
      %v369 = vsel %vm328, %v269, 0
      %v372 = vsel %vm328, %v270, 0
      %v375 = vsel %vm328, %v271, 0
      %v378 = vsel %vm328, %v272, 0
      %v381 = vsel %vm328, %v273, 0
      %v384 = vsel %vm328, %v274, 0
      %v387 = vsel %vm328, %v275, 0
      %v390 = vsel %vm328, %v276, 0
      %v393 = vsel %vm328, %v277, 0
      %v396 = vsel %vm328, %v278, 0
      %v399 = vsel %vm328, %v279, 0
      %v402 = vsel %vm328, %v280, 0
      %v405 = vsel %vm328, %v281, 0
      %v408 = vsel %vm328, %v282, 0
      %v411 = vsel %vm328, %v283, 0
      %v414 = vsel %vm328, %v284, 0
      %v417 = vsel %vm328, %v285, 0
      %v420 = vsel %vm328, %v286, 0
      %v423 = vsel %vm328, %v287, 0
      %425 = vmatpush.msra.mxu0 0.0
      %426 = vmatpush.msra.mxu0 0.0
      %427 = vmatpush.msra.mxu0 0.0
      %428 = vmatpush.msra.mxu0 0.0
      %429 = vmatpush.msra.mxu0 0.0
      %430 = vmatpush.msra.mxu0 0.0
      %431 = vmatpush.msra.mxu0 0.0
      %432 = vmatpush.msra.mxu0 0.0
      %433 = vmatpush.msra.mxu0 0.0
      %434 = vmatpush.msra.mxu0 0.0
      %435 = vmatpush.msra.mxu0 0.0
      %436 = vmatpush.msra.mxu0 0.0
      %437 = vmatpush.msra.mxu0 %v327
      %438 = vmatpush.msra.mxu0 %v326
      %439 = vmatpush.msra.mxu0 %v325
      %440 = vmatpush.msra.mxu0 %v324
      %441 = vmatmul.f32.gmra.mxu0 %v330
      %v442 = vpop.f32.mrf.mxu0
      %v443 = vadd.f32 0.0, %v442
      %444 = vmatmul.f32.gmra.mxu0 %v333
      %v445 = vpop.f32.mrf.mxu0
      %v446 = vadd.f32 0.0, %v445
      %447 = vmatmul.f32.gmra.mxu0 %v336
      %v448 = vpop.f32.mrf.mxu0
      %v449 = vadd.f32 0.0, %v448
      %450 = vmatmul.f32.gmra.mxu0 %v339
      %v451 = vpop.f32.mrf.mxu0
      %v452 = vadd.f32 0.0, %v451
      %453 = vmatmul.f32.gmra.mxu0 %v342
      %v454 = vpop.f32.mrf.mxu0
      %v455 = vadd.f32 0.0, %v454
      %456 = vmatmul.f32.gmra.mxu0 %v345
      %v457 = vpop.f32.mrf.mxu0
      %v458 = vadd.f32 0.0, %v457
      %459 = vmatmul.f32.gmra.mxu0 %v348
      %v460 = vpop.f32.mrf.mxu0
      %v461 = vadd.f32 0.0, %v460
      %462 = vmatmul.f32.gmra.mxu0 %v351
      %v463 = vpop.f32.mrf.mxu0
      %v464 = vadd.f32 0.0, %v463
      %465 = vmatmul.f32.gmra.mxu0 %v354
      %v466 = vpop.f32.mrf.mxu0
      %v467 = vadd.f32 0.0, %v466
      %468 = vmatmul.f32.gmra.mxu0 %v357
      %v469 = vpop.f32.mrf.mxu0
      %v470 = vadd.f32 0.0, %v469
      %471 = vmatmul.f32.gmra.mxu0 %v360
      %v472 = vpop.f32.mrf.mxu0
      %v473 = vadd.f32 0.0, %v472
      %474 = vmatmul.f32.gmra.mxu0 %v363
      %v475 = vpop.f32.mrf.mxu0
      %v476 = vadd.f32 0.0, %v475
      %477 = vmatmul.f32.gmra.mxu0 %v366
      %v478 = vpop.f32.mrf.mxu0
      %v479 = vadd.f32 0.0, %v478
      %480 = vmatmul.f32.gmra.mxu0 %v369
      %v481 = vpop.f32.mrf.mxu0
      %v482 = vadd.f32 0.0, %v481
      %483 = vmatmul.f32.gmra.mxu0 %v372
      %v484 = vpop.f32.mrf.mxu0
      %v485 = vadd.f32 0.0, %v484
      %486 = vmatmul.f32.gmra.mxu0 %v375
      %v487 = vpop.f32.mrf.mxu0
      %v488 = vadd.f32 0.0, %v487
      %489 = vmatmul.f32.gmra.mxu0 %v378
      %v490 = vpop.f32.mrf.mxu0
      %v491 = vadd.f32 0.0, %v490
      %492 = vmatmul.f32.gmra.mxu0 %v381
      %v493 = vpop.f32.mrf.mxu0
      %v494 = vadd.f32 0.0, %v493
      %495 = vmatmul.f32.gmra.mxu0 %v384
      %v496 = vpop.f32.mrf.mxu0
      %v497 = vadd.f32 0.0, %v496
      %498 = vmatmul.f32.gmra.mxu0 %v387
      %v499 = vpop.f32.mrf.mxu0
      %v500 = vadd.f32 0.0, %v499
      %501 = vmatmul.f32.gmra.mxu0 %v390
      %v502 = vpop.f32.mrf.mxu0
      %v503 = vadd.f32 0.0, %v502
      %504 = vmatmul.f32.gmra.mxu0 %v393
      %v505 = vpop.f32.mrf.mxu0
      %v506 = vadd.f32 0.0, %v505
      %507 = vmatmul.f32.gmra.mxu0 %v396
      %v508 = vpop.f32.mrf.mxu0
      %v509 = vadd.f32 0.0, %v508
      %510 = vmatmul.f32.gmra.mxu0 %v399
      %v511 = vpop.f32.mrf.mxu0
      %v512 = vadd.f32 0.0, %v511
      %513 = vmatmul.f32.gmra.mxu0 %v402
      %v514 = vpop.f32.mrf.mxu0
      %v515 = vadd.f32 0.0, %v514
      %516 = vmatmul.f32.gmra.mxu0 %v405
      %v517 = vpop.f32.mrf.mxu0
      %v518 = vadd.f32 0.0, %v517
      %519 = vmatmul.f32.gmra.mxu0 %v408
      %v520 = vpop.f32.mrf.mxu0
      %v521 = vadd.f32 0.0, %v520
      %522 = vmatmul.f32.gmra.mxu0 %v411
      %v523 = vpop.f32.mrf.mxu0
      %v524 = vadd.f32 0.0, %v523
      %525 = vmatmul.f32.gmra.mxu0 %v414
      %v526 = vpop.f32.mrf.mxu0
      %v527 = vadd.f32 0.0, %v526
      %528 = vmatmul.f32.gmra.mxu0 %v417
      %v529 = vpop.f32.mrf.mxu0
      %v530 = vadd.f32 0.0, %v529
      %531 = vmatmul.f32.gmra.mxu0 %v420
      %v532 = vpop.f32.mrf.mxu0
      %v533 = vadd.f32 0.0, %v532
      %534 = vmatmul.f32.gmra.mxu0 %v423
      %v535 = vpop.f32.mrf.mxu0
      %v536 = vadd.f32 0.0, %v535
      %537 = vdwg.mxu0
      %v539 = vsel %vm328, %v288, 0
      %v542 = vsel %vm328, %v289, 0
      %v545 = vsel %vm328, %v290, 0
      %v548 = vsel %vm328, %v291, 0
      %v551 = vsel %vm328, %v292, 0
      %v554 = vsel %vm328, %v293, 0
      %v557 = vsel %vm328, %v294, 0
      %v560 = vsel %vm328, %v295, 0
      %v563 = vsel %vm328, %v296, 0
      %v566 = vsel %vm328, %v297, 0
      %v569 = vsel %vm328, %v298, 0
      %v572 = vsel %vm328, %v299, 0
      %v575 = vsel %vm328, %v300, 0
      %v578 = vsel %vm328, %v301, 0
      %v581 = vsel %vm328, %v302, 0
      %v584 = vsel %vm328, %v303, 0
      %v587 = vsel %vm328, %v304, 0
      %v590 = vsel %vm328, %v305, 0
      %v593 = vsel %vm328, %v306, 0
      %v596 = vsel %vm328, %v307, 0
      %v599 = vsel %vm328, %v308, 0
      %v602 = vsel %vm328, %v309, 0
      %v605 = vsel %vm328, %v310, 0
      %v608 = vsel %vm328, %v311, 0
      %v611 = vsel %vm328, %v312, 0
      %v614 = vsel %vm328, %v313, 0
      %v617 = vsel %vm328, %v314, 0
      %v620 = vsel %vm328, %v315, 0
      %v623 = vsel %vm328, %v316, 0
      %v626 = vsel %vm328, %v317, 0
      %v629 = vsel %vm328, %v318, 0
      %v632 = vsel %vm328, %v319, 0
      %634 = vmatpush.msra.mxu0 0.0
      %635 = vmatpush.msra.mxu0 0.0
      %636 = vmatpush.msra.mxu0 0.0
      %637 = vmatpush.msra.mxu0 0.0
      %638 = vmatpush.msra.mxu0 0.0
      %639 = vmatpush.msra.mxu0 0.0
      %640 = vmatpush.msra.mxu0 0.0
      %641 = vmatpush.msra.mxu0 0.0
      %642 = vmatpush.msra.mxu0 0.0
      %643 = vmatpush.msra.mxu0 0.0
      %644 = vmatpush.msra.mxu0 0.0
      %645 = vmatpush.msra.mxu0 0.0
      %646 = vmatpush.msra.mxu0 %v323
      %647 = vmatpush.msra.mxu0 %v322
      %648 = vmatpush.msra.mxu0 %v321
      %649 = vmatpush.msra.mxu0 %v320
      %650 = vmatmul.f32.gmra.mxu0 %v539
      %v651 = vpop.f32.mrf.mxu0
      %v652 = vadd.f32 %v443, %v651
      %653 = vmatmul.f32.gmra.mxu0 %v542
      %v654 = vpop.f32.mrf.mxu0
      %v655 = vadd.f32 %v446, %v654
      %656 = vmatmul.f32.gmra.mxu0 %v545
      %v657 = vpop.f32.mrf.mxu0
      %v658 = vadd.f32 %v449, %v657
      %659 = vmatmul.f32.gmra.mxu0 %v548
      %v660 = vpop.f32.mrf.mxu0
      %v661 = vadd.f32 %v452, %v660
      %662 = vmatmul.f32.gmra.mxu0 %v551
      %v663 = vpop.f32.mrf.mxu0
      %v664 = vadd.f32 %v455, %v663
      %665 = vmatmul.f32.gmra.mxu0 %v554
      %v666 = vpop.f32.mrf.mxu0
      %v667 = vadd.f32 %v458, %v666
      %668 = vmatmul.f32.gmra.mxu0 %v557
      %v669 = vpop.f32.mrf.mxu0
      %v670 = vadd.f32 %v461, %v669
      %671 = vmatmul.f32.gmra.mxu0 %v560
      %v672 = vpop.f32.mrf.mxu0
      %v673 = vadd.f32 %v464, %v672
      %674 = vmatmul.f32.gmra.mxu0 %v563
      %v675 = vpop.f32.mrf.mxu0
      %v676 = vadd.f32 %v467, %v675
      %677 = vmatmul.f32.gmra.mxu0 %v566
      %v678 = vpop.f32.mrf.mxu0
      %v679 = vadd.f32 %v470, %v678
      %680 = vmatmul.f32.gmra.mxu0 %v569
      %v681 = vpop.f32.mrf.mxu0
      %v682 = vadd.f32 %v473, %v681
      %683 = vmatmul.f32.gmra.mxu0 %v572
      %v684 = vpop.f32.mrf.mxu0
      %v685 = vadd.f32 %v476, %v684
      %686 = vmatmul.f32.gmra.mxu0 %v575
      %v687 = vpop.f32.mrf.mxu0
      %v688 = vadd.f32 %v479, %v687
      %689 = vmatmul.f32.gmra.mxu0 %v578
      %v690 = vpop.f32.mrf.mxu0
      %v691 = vadd.f32 %v482, %v690
      %692 = vmatmul.f32.gmra.mxu0 %v581
      %v693 = vpop.f32.mrf.mxu0
      %v694 = vadd.f32 %v485, %v693
      %695 = vmatmul.f32.gmra.mxu0 %v584
      %v696 = vpop.f32.mrf.mxu0
      %v697 = vadd.f32 %v488, %v696
      %698 = vmatmul.f32.gmra.mxu0 %v587
      %v699 = vpop.f32.mrf.mxu0
      %v700 = vadd.f32 %v491, %v699
      %701 = vmatmul.f32.gmra.mxu0 %v590
      %v702 = vpop.f32.mrf.mxu0
      %v703 = vadd.f32 %v494, %v702
      %704 = vmatmul.f32.gmra.mxu0 %v593
      %v705 = vpop.f32.mrf.mxu0
      %v706 = vadd.f32 %v497, %v705
      %707 = vmatmul.f32.gmra.mxu0 %v596
      %v708 = vpop.f32.mrf.mxu0
      %v709 = vadd.f32 %v500, %v708
      %710 = vmatmul.f32.gmra.mxu0 %v599
      %v711 = vpop.f32.mrf.mxu0
      %v712 = vadd.f32 %v503, %v711
      %713 = vmatmul.f32.gmra.mxu0 %v602
      %v714 = vpop.f32.mrf.mxu0
      %v715 = vadd.f32 %v506, %v714
      %716 = vmatmul.f32.gmra.mxu0 %v605
      %v717 = vpop.f32.mrf.mxu0
      %v718 = vadd.f32 %v509, %v717
      %719 = vmatmul.f32.gmra.mxu0 %v608
      %v720 = vpop.f32.mrf.mxu0
      %v721 = vadd.f32 %v512, %v720
      %722 = vmatmul.f32.gmra.mxu0 %v611
      %v723 = vpop.f32.mrf.mxu0
      %v724 = vadd.f32 %v515, %v723
      %725 = vmatmul.f32.gmra.mxu0 %v614
      %v726 = vpop.f32.mrf.mxu0
      %v727 = vadd.f32 %v518, %v726
      %728 = vmatmul.f32.gmra.mxu0 %v617
      %v729 = vpop.f32.mrf.mxu0
      %v730 = vadd.f32 %v521, %v729
      %731 = vmatmul.f32.gmra.mxu0 %v620
      %v732 = vpop.f32.mrf.mxu0
      %v733 = vadd.f32 %v524, %v732
      %734 = vmatmul.f32.gmra.mxu0 %v623
      %v735 = vpop.f32.mrf.mxu0
      %v736 = vadd.f32 %v527, %v735
      %737 = vmatmul.f32.gmra.mxu0 %v626
      %v738 = vpop.f32.mrf.mxu0
      %v739 = vadd.f32 %v530, %v738
      %740 = vmatmul.f32.gmra.mxu0 %v629
      %v741 = vpop.f32.mrf.mxu0
      %v742 = vadd.f32 %v533, %v741
      %743 = vmatmul.f32.gmra.mxu0 %v632
      %v744 = vpop.f32.mrf.mxu0
      %v745 = vadd.f32 %v536, %v744
      %746 = vdwg.mxu0
      %v747 = vld [vmem:[%s3] sm:$0x1]
      %v749 = vperm.slane %v747, 0
      %v751 = vadd.f32 %v652, %v749
      %v752 = vadd.f32 %v655, %v749
      %v753 = vadd.f32 %v658, %v749
      %v754 = vadd.f32 %v661, %v749
      %v755 = vadd.f32 %v664, %v749
      %v756 = vadd.f32 %v667, %v749
      %v757 = vadd.f32 %v670, %v749
      %v758 = vadd.f32 %v673, %v749
      %v759 = vadd.f32 %v676, %v749
      %v760 = vadd.f32 %v679, %v749
      %v761 = vadd.f32 %v682, %v749
      %v762 = vadd.f32 %v685, %v749
      %v763 = vadd.f32 %v688, %v749
      %v764 = vadd.f32 %v691, %v749
      %v765 = vadd.f32 %v694, %v749
      %v766 = vadd.f32 %v697, %v749
      %v767 = vadd.f32 %v700, %v749
      %v768 = vadd.f32 %v703, %v749
      %v769 = vadd.f32 %v706, %v749
      %v770 = vadd.f32 %v709, %v749
      %v771 = vadd.f32 %v712, %v749
      %v772 = vadd.f32 %v715, %v749
      %v773 = vadd.f32 %v718, %v749
      %v774 = vadd.f32 %v721, %v749
      %v775 = vadd.f32 %v724, %v749
      %v776 = vadd.f32 %v727, %v749
      %v777 = vadd.f32 %v730, %v749
      %v778 = vadd.f32 %v733, %v749
      %v779 = vadd.f32 %v736, %v749
      %v780 = vadd.f32 %v739, %v749
      %v781 = vadd.f32 %v742, %v749
      %v782 = vadd.f32 %v745, %v749
      %vm783 = vcmask 31744
      %v784 = vsel %vm783, %v751, -inf
      %785 = vmax.xlane.f32.xlu0 %v784
      %v786 = vpop.xlane.xlu0 %785
      %v787 = vsel %vm783, %v752, -inf
      %788 = vmax.xlane.f32.xlu0 %v787
      %v789 = vpop.xlane.xlu0 %788
      %v790 = vsel %vm783, %v753, -inf
      %791 = vmax.xlane.f32.xlu0 %v790
      %v792 = vpop.xlane.xlu0 %791
      %v793 = vsel %vm783, %v754, -inf
      %794 = vmax.xlane.f32.xlu0 %v793
      %v795 = vpop.xlane.xlu0 %794
      %v796 = vsel %vm783, %v755, -inf
      %797 = vmax.xlane.f32.xlu0 %v796
      %v798 = vpop.xlane.xlu0 %797
      %v799 = vsel %vm783, %v756, -inf
      %800 = vmax.xlane.f32.xlu0 %v799
      %v801 = vpop.xlane.xlu0 %800
      %v802 = vsel %vm783, %v757, -inf
      %803 = vmax.xlane.f32.xlu0 %v802
      %v804 = vpop.xlane.xlu0 %803
      %v805 = vsel %vm783, %v758, -inf
      %806 = vmax.xlane.f32.xlu0 %v805
      %v807 = vpop.xlane.xlu0 %806
      %v808 = vsel %vm783, %v759, -inf
      %809 = vmax.xlane.f32.xlu0 %v808
      %v810 = vpop.xlane.xlu0 %809
      %v811 = vsel %vm783, %v760, -inf
      %812 = vmax.xlane.f32.xlu0 %v811
      %v813 = vpop.xlane.xlu0 %812
      %v814 = vsel %vm783, %v761, -inf
      %815 = vmax.xlane.f32.xlu0 %v814
      %v816 = vpop.xlane.xlu0 %815
      %v817 = vsel %vm783, %v762, -inf
      %818 = vmax.xlane.f32.xlu0 %v817
      %v819 = vpop.xlane.xlu0 %818
      %v820 = vsel %vm783, %v763, -inf
      %821 = vmax.xlane.f32.xlu0 %v820
      %v822 = vpop.xlane.xlu0 %821
      %v823 = vsel %vm783, %v764, -inf
      %824 = vmax.xlane.f32.xlu0 %v823
      %v825 = vpop.xlane.xlu0 %824
      %v826 = vsel %vm783, %v765, -inf
      %827 = vmax.xlane.f32.xlu0 %v826
      %v828 = vpop.xlane.xlu0 %827
      %v829 = vsel %vm783, %v766, -inf
      %830 = vmax.xlane.f32.xlu0 %v829
      %v831 = vpop.xlane.xlu0 %830
      %v832 = vsel %vm783, %v767, -inf
      %833 = vmax.xlane.f32.xlu0 %v832
      %v834 = vpop.xlane.xlu0 %833
      %v835 = vsel %vm783, %v768, -inf
      %836 = vmax.xlane.f32.xlu0 %v835
      %v837 = vpop.xlane.xlu0 %836
      %v838 = vsel %vm783, %v769, -inf
      %839 = vmax.xlane.f32.xlu0 %v838
      %v840 = vpop.xlane.xlu0 %839
      %v841 = vsel %vm783, %v770, -inf
      %842 = vmax.xlane.f32.xlu0 %v841
      %v843 = vpop.xlane.xlu0 %842
      %v844 = vsel %vm783, %v771, -inf
      %845 = vmax.xlane.f32.xlu0 %v844
      %v846 = vpop.xlane.xlu0 %845
      %v847 = vsel %vm783, %v772, -inf
      %848 = vmax.xlane.f32.xlu0 %v847
      %v849 = vpop.xlane.xlu0 %848
      %v850 = vsel %vm783, %v773, -inf
      %851 = vmax.xlane.f32.xlu0 %v850
      %v852 = vpop.xlane.xlu0 %851
      %v853 = vsel %vm783, %v774, -inf
      %854 = vmax.xlane.f32.xlu0 %v853
      %v855 = vpop.xlane.xlu0 %854
      %v856 = vsel %vm783, %v775, -inf
      %857 = vmax.xlane.f32.xlu0 %v856
      %v858 = vpop.xlane.xlu0 %857
      %v859 = vsel %vm783, %v776, -inf
      %860 = vmax.xlane.f32.xlu0 %v859
      %v861 = vpop.xlane.xlu0 %860
      %v862 = vsel %vm783, %v777, -inf
      %863 = vmax.xlane.f32.xlu0 %v862
      %v864 = vpop.xlane.xlu0 %863
      %v865 = vsel %vm783, %v778, -inf
      %866 = vmax.xlane.f32.xlu0 %v865
      %v867 = vpop.xlane.xlu0 %866
      %v868 = vsel %vm783, %v779, -inf
      %869 = vmax.xlane.f32.xlu0 %v868
      %v870 = vpop.xlane.xlu0 %869
      %v871 = vsel %vm783, %v780, -inf
      %872 = vmax.xlane.f32.xlu0 %v871
      %v873 = vpop.xlane.xlu0 %872
      %v874 = vsel %vm783, %v781, -inf
      %875 = vmax.xlane.f32.xlu0 %v874
      %v876 = vpop.xlane.xlu0 %875
      %v877 = vsel %vm783, %v782, -inf
      %878 = vmax.xlane.f32.xlu0 %v877
      %v879 = vpop.xlane.xlu0 %878
      %v880 = vsub.f32 %v751, %v786
      %v881 = vsub.f32 %v752, %v789
      %v882 = vsub.f32 %v753, %v792
      %v883 = vsub.f32 %v754, %v795
      %v884 = vsub.f32 %v755, %v798
      %v885 = vsub.f32 %v756, %v801
      %v886 = vsub.f32 %v757, %v804
      %v887 = vsub.f32 %v758, %v807
      %v888 = vsub.f32 %v759, %v810
      %v889 = vsub.f32 %v760, %v813
      %v890 = vsub.f32 %v761, %v816
      %v891 = vsub.f32 %v762, %v819
      %v892 = vsub.f32 %v763, %v822
      %v893 = vsub.f32 %v764, %v825
      %v894 = vsub.f32 %v765, %v828
      %v895 = vsub.f32 %v766, %v831
      %v896 = vsub.f32 %v767, %v834
      %v897 = vsub.f32 %v768, %v837
      %v898 = vsub.f32 %v769, %v840
      %v899 = vsub.f32 %v770, %v843
      %v900 = vsub.f32 %v771, %v846
      %v901 = vsub.f32 %v772, %v849
      %v902 = vsub.f32 %v773, %v852
      %v903 = vsub.f32 %v774, %v855
      %v904 = vsub.f32 %v775, %v858
      %v905 = vsub.f32 %v776, %v861
      %v906 = vsub.f32 %v777, %v864
      %v907 = vsub.f32 %v778, %v867
      %v908 = vsub.f32 %v779, %v870
      %v909 = vsub.f32 %v780, %v873
      %v910 = vsub.f32 %v781, %v876
      %v911 = vsub.f32 %v782, %v879
      %v912 = vmul.f32 %v880, 1.442695
      %v913 = vpow.pop %v912
      %v914 = vmul.f32 %v881, 1.442695
      %v915 = vpow.pop %v914
      %v916 = vmul.f32 %v882, 1.442695
      %v917 = vpow.pop %v916
      %v918 = vmul.f32 %v883, 1.442695
      %v919 = vpow.pop %v918
      %v920 = vmul.f32 %v884, 1.442695
      %v921 = vpow.pop %v920
      %v922 = vmul.f32 %v885, 1.442695
      %v923 = vpow.pop %v922
      %v924 = vmul.f32 %v886, 1.442695
      %v925 = vpow.pop %v924
      %v926 = vmul.f32 %v887, 1.442695
      %v927 = vpow.pop %v926
      %v928 = vmul.f32 %v888, 1.442695
      %v929 = vpow.pop %v928
      %v930 = vmul.f32 %v889, 1.442695
      %v931 = vpow.pop %v930
      %v932 = vmul.f32 %v890, 1.442695
      %v933 = vpow.pop %v932
      %v934 = vmul.f32 %v891, 1.442695
      %v935 = vpow.pop %v934
      %v936 = vmul.f32 %v892, 1.442695
      %v937 = vpow.pop %v936
      %v938 = vmul.f32 %v893, 1.442695
      %v939 = vpow.pop %v938
      %v940 = vmul.f32 %v894, 1.442695
      %v941 = vpow.pop %v940
      %v942 = vmul.f32 %v895, 1.442695
      %v943 = vpow.pop %v942
      %v944 = vmul.f32 %v896, 1.442695
      %v945 = vpow.pop %v944
      %v946 = vmul.f32 %v897, 1.442695
      %v947 = vpow.pop %v946
      %v948 = vmul.f32 %v898, 1.442695
      %v949 = vpow.pop %v948
      %v950 = vmul.f32 %v899, 1.442695
      %v951 = vpow.pop %v950
      %v952 = vmul.f32 %v900, 1.442695
      %v953 = vpow.pop %v952
      %v954 = vmul.f32 %v901, 1.442695
      %v955 = vpow.pop %v954
      %v956 = vmul.f32 %v902, 1.442695
      %v957 = vpow.pop %v956
      %v958 = vmul.f32 %v903, 1.442695
      %v959 = vpow.pop %v958
      %v960 = vmul.f32 %v904, 1.442695
      %v961 = vpow.pop %v960
      %v962 = vmul.f32 %v905, 1.442695
      %v963 = vpow.pop %v962
      %v964 = vmul.f32 %v906, 1.442695
      %v965 = vpow.pop %v964
      %v966 = vmul.f32 %v907, 1.442695
      %v967 = vpow.pop %v966
      %v968 = vmul.f32 %v908, 1.442695
      %v969 = vpow.pop %v968
      %v970 = vmul.f32 %v909, 1.442695
      %v971 = vpow.pop %v970
      %v972 = vmul.f32 %v910, 1.442695
      %v973 = vpow.pop %v972
      %v974 = vmul.f32 %v911, 1.442695
      %v975 = vpow.pop %v974
      %v976 = vsel %vm783, %v913, 0.0
      %977 = vadd.xlane.f32.xlu0 %v976
      %v978 = vpop.xlane.xlu0 %977
      %v979 = vsel %vm783, %v915, 0.0
      %980 = vadd.xlane.f32.xlu0 %v979
      %v981 = vpop.xlane.xlu0 %980
      %v982 = vsel %vm783, %v917, 0.0
      %983 = vadd.xlane.f32.xlu0 %v982
      %v984 = vpop.xlane.xlu0 %983
      %v985 = vsel %vm783, %v919, 0.0
      %986 = vadd.xlane.f32.xlu0 %v985
      %v987 = vpop.xlane.xlu0 %986
      %v988 = vsel %vm783, %v921, 0.0
      %989 = vadd.xlane.f32.xlu0 %v988
      %v990 = vpop.xlane.xlu0 %989
      %v991 = vsel %vm783, %v923, 0.0
      %992 = vadd.xlane.f32.xlu0 %v991
      %v993 = vpop.xlane.xlu0 %992
      %v994 = vsel %vm783, %v925, 0.0
      %995 = vadd.xlane.f32.xlu0 %v994
      %v996 = vpop.xlane.xlu0 %995
      %v997 = vsel %vm783, %v927, 0.0
      %998 = vadd.xlane.f32.xlu0 %v997
      %v999 = vpop.xlane.xlu0 %998
      %v1000 = vsel %vm783, %v929, 0.0
      %1001 = vadd.xlane.f32.xlu0 %v1000
      %v1002 = vpop.xlane.xlu0 %1001
      %v1003 = vsel %vm783, %v931, 0.0
      %1004 = vadd.xlane.f32.xlu0 %v1003
      %v1005 = vpop.xlane.xlu0 %1004
      %v1006 = vsel %vm783, %v933, 0.0
      %1007 = vadd.xlane.f32.xlu0 %v1006
      %v1008 = vpop.xlane.xlu0 %1007
      %v1009 = vsel %vm783, %v935, 0.0
      %1010 = vadd.xlane.f32.xlu0 %v1009
      %v1011 = vpop.xlane.xlu0 %1010
      %v1012 = vsel %vm783, %v937, 0.0
      %1013 = vadd.xlane.f32.xlu0 %v1012
      %v1014 = vpop.xlane.xlu0 %1013
      %v1015 = vsel %vm783, %v939, 0.0
      %1016 = vadd.xlane.f32.xlu0 %v1015
      %v1017 = vpop.xlane.xlu0 %1016
      %v1018 = vsel %vm783, %v941, 0.0
      %1019 = vadd.xlane.f32.xlu0 %v1018
      %v1020 = vpop.xlane.xlu0 %1019
      %v1021 = vsel %vm783, %v943, 0.0
      %1022 = vadd.xlane.f32.xlu0 %v1021
      %v1023 = vpop.xlane.xlu0 %1022
      %v1024 = vsel %vm783, %v945, 0.0
      %1025 = vadd.xlane.f32.xlu0 %v1024
      %v1026 = vpop.xlane.xlu0 %1025
      %v1027 = vsel %vm783, %v947, 0.0
      %1028 = vadd.xlane.f32.xlu0 %v1027
      %v1029 = vpop.xlane.xlu0 %1028
      %v1030 = vsel %vm783, %v949, 0.0
      %1031 = vadd.xlane.f32.xlu0 %v1030
      %v1032 = vpop.xlane.xlu0 %1031
      %v1033 = vsel %vm783, %v951, 0.0
      %1034 = vadd.xlane.f32.xlu0 %v1033
      %v1035 = vpop.xlane.xlu0 %1034
      %v1036 = vsel %vm783, %v953, 0.0
      %1037 = vadd.xlane.f32.xlu0 %v1036
      %v1038 = vpop.xlane.xlu0 %1037
      %v1039 = vsel %vm783, %v955, 0.0
      %1040 = vadd.xlane.f32.xlu0 %v1039
      %v1041 = vpop.xlane.xlu0 %1040
      %v1042 = vsel %vm783, %v957, 0.0
      %1043 = vadd.xlane.f32.xlu0 %v1042
      %v1044 = vpop.xlane.xlu0 %1043
      %v1045 = vsel %vm783, %v959, 0.0
      %1046 = vadd.xlane.f32.xlu0 %v1045
      %v1047 = vpop.xlane.xlu0 %1046
      %v1048 = vsel %vm783, %v961, 0.0
      %1049 = vadd.xlane.f32.xlu0 %v1048
      %v1050 = vpop.xlane.xlu0 %1049
      %v1051 = vsel %vm783, %v963, 0.0
      %1052 = vadd.xlane.f32.xlu0 %v1051
      %v1053 = vpop.xlane.xlu0 %1052
      %v1054 = vsel %vm783, %v965, 0.0
      %1055 = vadd.xlane.f32.xlu0 %v1054
      %v1056 = vpop.xlane.xlu0 %1055
      %v1057 = vsel %vm783, %v967, 0.0
      %1058 = vadd.xlane.f32.xlu0 %v1057
      %v1059 = vpop.xlane.xlu0 %1058
      %v1060 = vsel %vm783, %v969, 0.0
      %1061 = vadd.xlane.f32.xlu0 %v1060
      %v1062 = vpop.xlane.xlu0 %1061
      %v1063 = vsel %vm783, %v971, 0.0
      %1064 = vadd.xlane.f32.xlu0 %v1063
      %v1065 = vpop.xlane.xlu0 %1064
      %v1066 = vsel %vm783, %v973, 0.0
      %1067 = vadd.xlane.f32.xlu0 %v1066
      %v1068 = vpop.xlane.xlu0 %1067
      %v1069 = vsel %vm783, %v975, 0.0
      %1070 = vadd.xlane.f32.xlu0 %v1069
      %v1071 = vpop.xlane.xlu0 %1070
      %v1072 = vrcp.pop %v978
      %v1073 = vrcp.pop %v981
      %v1074 = vrcp.pop %v984
      %v1075 = vrcp.pop %v987
      %v1076 = vrcp.pop %v990
      %v1077 = vrcp.pop %v993
      %v1078 = vrcp.pop %v996
      %v1079 = vrcp.pop %v999
      %v1080 = vrcp.pop %v1002
      %v1081 = vrcp.pop %v1005
      %v1082 = vrcp.pop %v1008
      %v1083 = vrcp.pop %v1011
      %v1084 = vrcp.pop %v1014
      %v1085 = vrcp.pop %v1017
      %v1086 = vrcp.pop %v1020
      %v1087 = vrcp.pop %v1023
      %v1088 = vrcp.pop %v1026
      %v1089 = vrcp.pop %v1029
      %v1090 = vrcp.pop %v1032
      %v1091 = vrcp.pop %v1035
      %v1092 = vrcp.pop %v1038
      %v1093 = vrcp.pop %v1041
      %v1094 = vrcp.pop %v1044
      %v1095 = vrcp.pop %v1047
      %v1096 = vrcp.pop %v1050
      %v1097 = vrcp.pop %v1053
      %v1098 = vrcp.pop %v1056
      %v1099 = vrcp.pop %v1059
      %v1100 = vrcp.pop %v1062
      %v1101 = vrcp.pop %v1065
      %v1102 = vrcp.pop %v1068
      %v1103 = vrcp.pop %v1071
      %v1104 = vmul.f32 %v913, %v1072
      %v1105 = vmul.f32 %v915, %v1073
      %v1106 = vmul.f32 %v917, %v1074
      %v1107 = vmul.f32 %v919, %v1075
      %v1108 = vmul.f32 %v921, %v1076
      %v1109 = vmul.f32 %v923, %v1077
      %v1110 = vmul.f32 %v925, %v1078
      %v1111 = vmul.f32 %v927, %v1079
      %v1112 = vmul.f32 %v929, %v1080
      %v1113 = vmul.f32 %v931, %v1081
      %v1114 = vmul.f32 %v933, %v1082
      %v1115 = vmul.f32 %v935, %v1083
      %v1116 = vmul.f32 %v937, %v1084
      %v1117 = vmul.f32 %v939, %v1085
      %v1118 = vmul.f32 %v941, %v1086
      %v1119 = vmul.f32 %v943, %v1087
      %v1120 = vmul.f32 %v945, %v1088
      %v1121 = vmul.f32 %v947, %v1089
      %v1122 = vmul.f32 %v949, %v1090
      %v1123 = vmul.f32 %v951, %v1091
      %v1124 = vmul.f32 %v953, %v1092
      %v1125 = vmul.f32 %v955, %v1093
      %v1126 = vmul.f32 %v957, %v1094
      %v1127 = vmul.f32 %v959, %v1095
      %v1128 = vmul.f32 %v961, %v1096
      %v1129 = vmul.f32 %v963, %v1097
      %v1130 = vmul.f32 %v965, %v1098
      %v1131 = vmul.f32 %v967, %v1099
      %v1132 = vmul.f32 %v969, %v1100
      %v1133 = vmul.f32 %v971, %v1101
      %v1134 = vmul.f32 %v973, %v1102
      %v1135 = vmul.f32 %v975, %v1103
      %v1136 = vpack.c.bf16 %v257, %v256
      %v1137 = vpack.c.bf16 %v259, %v258
      %v1138 = vpack.c.bf16 %v261, %v260
      %v1139 = vpack.c.bf16 %v263, %v262
      %v1140 = vpack.c.bf16 %v265, %v264
      %v1141 = vpack.c.bf16 %v267, %v266
      %v1142 = vpack.c.bf16 %v269, %v268
      %v1143 = vpack.c.bf16 %v271, %v270
      %v1144 = vpack.c.bf16 %v273, %v272
      %v1145 = vpack.c.bf16 %v275, %v274
      %v1146 = vpack.c.bf16 %v277, %v276
      %v1147 = vpack.c.bf16 %v279, %v278
      %v1148 = vpack.c.bf16 %v281, %v280
      %v1149 = vpack.c.bf16 %v283, %v282
      %v1150 = vpack.c.bf16 %v285, %v284
      %v1151 = vpack.c.bf16 %v287, %v286
      %v1152 = vld [vmem:[%s4] sm:$0xf]
      %v1153 = vld [vmem:[%s4 + $0x4] sm:$0xf]
      %v1154 = vld [vmem:[%s4 + $0x8] sm:$0xf]
      %v1155 = vld [vmem:[%s4 + $0xc] sm:$0xf]
      %v1156 = vld [vmem:[%s5] sm:$0x1]
      %v1158 = vperm.slane %v1156, 0
      %v1164 = vunpack.c.l.b16 %v1152
      %v1165 = vunpack.c.l.b16 %v1153
      %v1166 = vunpack.c.l.b16 %v1154
      %v1167 = vunpack.c.l.b16 %v1155
      %v1168 = vpack.c.b16 %v1165, %v1164
      %v1169 = vpack.c.b16 %v1167, %v1166
      %v1173 = vsel %vm328, %v1136, 0
      %v1176 = vsel %vm328, %v1137, 0
      %v1179 = vsel %vm328, %v1138, 0
      %v1182 = vsel %vm328, %v1139, 0
      %v1185 = vsel %vm328, %v1140, 0
      %v1188 = vsel %vm328, %v1141, 0
      %v1191 = vsel %vm328, %v1142, 0
      %v1194 = vsel %vm328, %v1143, 0
      %v1197 = vsel %vm328, %v1144, 0
      %v1200 = vsel %vm328, %v1145, 0
      %v1203 = vsel %vm328, %v1146, 0
      %v1206 = vsel %vm328, %v1147, 0
      %v1209 = vsel %vm328, %v1148, 0
      %v1212 = vsel %vm328, %v1149, 0
      %v1215 = vsel %vm328, %v1150, 0
      %v1218 = vsel %vm328, %v1151, 0
      %1220 = vmatpush.bf16.msra.mxu0 0
      %1221 = vmatpush.bf16.msra.mxu0 0
      %1222 = vmatpush.bf16.msra.mxu0 0
      %1223 = vmatpush.bf16.msra.mxu0 0
      %1224 = vmatpush.bf16.msra.mxu0 0
      %1225 = vmatpush.bf16.msra.mxu0 0
      %1226 = vmatpush.bf16.msra.mxu0 %v1169
      %1227 = vmatpush.bf16.msra.mxu0 %v1168
      %1228 = vmatmul.bf16.gmra.mxu0 %v1173
      %v1229 = vpop.f32.mrf.mxu0
      %v1230 = vadd.f32 %v1158, %v1229
      %v1231 = vpop.f32.mrf.mxu0
      %v1232 = vadd.f32 %v1158, %v1231
      %1233 = vmatmul.bf16.gmra.mxu0 %v1176
      %v1234 = vpop.f32.mrf.mxu0
      %v1235 = vadd.f32 %v1158, %v1234
      %v1236 = vpop.f32.mrf.mxu0
      %v1237 = vadd.f32 %v1158, %v1236
      %1238 = vmatmul.bf16.gmra.mxu0 %v1179
      %v1239 = vpop.f32.mrf.mxu0
      %v1240 = vadd.f32 %v1158, %v1239
      %v1241 = vpop.f32.mrf.mxu0
      %v1242 = vadd.f32 %v1158, %v1241
      %1243 = vmatmul.bf16.gmra.mxu0 %v1182
      %v1244 = vpop.f32.mrf.mxu0
      %v1245 = vadd.f32 %v1158, %v1244
      %v1246 = vpop.f32.mrf.mxu0
      %v1247 = vadd.f32 %v1158, %v1246
      %1248 = vmatmul.bf16.gmra.mxu0 %v1185
      %v1249 = vpop.f32.mrf.mxu0
      %v1250 = vadd.f32 %v1158, %v1249
      %v1251 = vpop.f32.mrf.mxu0
      %v1252 = vadd.f32 %v1158, %v1251
      %1253 = vmatmul.bf16.gmra.mxu0 %v1188
      %v1254 = vpop.f32.mrf.mxu0
      %v1255 = vadd.f32 %v1158, %v1254
      %v1256 = vpop.f32.mrf.mxu0
      %v1257 = vadd.f32 %v1158, %v1256
      %1258 = vmatmul.bf16.gmra.mxu0 %v1191
      %v1259 = vpop.f32.mrf.mxu0
      %v1260 = vadd.f32 %v1158, %v1259
      %v1261 = vpop.f32.mrf.mxu0
      %v1262 = vadd.f32 %v1158, %v1261
      %1263 = vmatmul.bf16.gmra.mxu0 %v1194
      %v1264 = vpop.f32.mrf.mxu0
      %v1265 = vadd.f32 %v1158, %v1264
      %v1266 = vpop.f32.mrf.mxu0
      %v1267 = vadd.f32 %v1158, %v1266
      %1268 = vmatmul.bf16.gmra.mxu0 %v1197
      %v1269 = vpop.f32.mrf.mxu0
      %v1270 = vadd.f32 %v1158, %v1269
      %v1271 = vpop.f32.mrf.mxu0
      %v1272 = vadd.f32 %v1158, %v1271
      %1273 = vmatmul.bf16.gmra.mxu0 %v1200
      %v1274 = vpop.f32.mrf.mxu0
      %v1275 = vadd.f32 %v1158, %v1274
      %v1276 = vpop.f32.mrf.mxu0
      %v1277 = vadd.f32 %v1158, %v1276
      %1278 = vmatmul.bf16.gmra.mxu0 %v1203
      %v1279 = vpop.f32.mrf.mxu0
      %v1280 = vadd.f32 %v1158, %v1279
      %v1281 = vpop.f32.mrf.mxu0
      %v1282 = vadd.f32 %v1158, %v1281
      %1283 = vmatmul.bf16.gmra.mxu0 %v1206
      %v1284 = vpop.f32.mrf.mxu0
      %v1285 = vadd.f32 %v1158, %v1284
      %v1286 = vpop.f32.mrf.mxu0
      %v1287 = vadd.f32 %v1158, %v1286
      %1288 = vmatmul.bf16.gmra.mxu0 %v1209
      %v1289 = vpop.f32.mrf.mxu0
      %v1290 = vadd.f32 %v1158, %v1289
      %v1291 = vpop.f32.mrf.mxu0
      %v1292 = vadd.f32 %v1158, %v1291
      %1293 = vmatmul.bf16.gmra.mxu0 %v1212
      %v1294 = vpop.f32.mrf.mxu0
      %v1295 = vadd.f32 %v1158, %v1294
      %v1296 = vpop.f32.mrf.mxu0
      %v1297 = vadd.f32 %v1158, %v1296
      %1298 = vmatmul.bf16.gmra.mxu0 %v1215
      %v1299 = vpop.f32.mrf.mxu0
      %v1300 = vadd.f32 %v1158, %v1299
      %v1301 = vpop.f32.mrf.mxu0
      %v1302 = vadd.f32 %v1158, %v1301
      %1303 = vmatmul.bf16.gmra.mxu0 %v1218
      %v1304 = vpop.f32.mrf.mxu0
      %v1305 = vadd.f32 %v1158, %v1304
      %v1306 = vpop.f32.mrf.mxu0
      %v1307 = vadd.f32 %v1158, %v1306
      %1308 = vdwg.mxu0
      %vm1309 = vcmask 130048
      %v1310 = vsel %vm1309, %v1230, -inf
      %1311 = vmax.xlane.f32.xlu0 %v1310
      %v1312 = vpop.xlane.xlu0 %1311
      %v1313 = vsel %vm1309, %v1232, -inf
      %1314 = vmax.xlane.f32.xlu0 %v1313
      %v1315 = vpop.xlane.xlu0 %1314
      %v1316 = vsel %vm1309, %v1235, -inf
      %1317 = vmax.xlane.f32.xlu0 %v1316
      %v1318 = vpop.xlane.xlu0 %1317
      %v1319 = vsel %vm1309, %v1237, -inf
      %1320 = vmax.xlane.f32.xlu0 %v1319
      %v1321 = vpop.xlane.xlu0 %1320
      %v1322 = vsel %vm1309, %v1240, -inf
      %1323 = vmax.xlane.f32.xlu0 %v1322
      %v1324 = vpop.xlane.xlu0 %1323
      %v1325 = vsel %vm1309, %v1242, -inf
      %1326 = vmax.xlane.f32.xlu0 %v1325
      %v1327 = vpop.xlane.xlu0 %1326
      %v1328 = vsel %vm1309, %v1245, -inf
      %1329 = vmax.xlane.f32.xlu0 %v1328
      %v1330 = vpop.xlane.xlu0 %1329
      %v1331 = vsel %vm1309, %v1247, -inf
      %1332 = vmax.xlane.f32.xlu0 %v1331
      %v1333 = vpop.xlane.xlu0 %1332
      %v1334 = vsel %vm1309, %v1250, -inf
      %1335 = vmax.xlane.f32.xlu0 %v1334
      %v1336 = vpop.xlane.xlu0 %1335
      %v1337 = vsel %vm1309, %v1252, -inf
      %1338 = vmax.xlane.f32.xlu0 %v1337
      %v1339 = vpop.xlane.xlu0 %1338
      %v1340 = vsel %vm1309, %v1255, -inf
      %1341 = vmax.xlane.f32.xlu0 %v1340
      %v1342 = vpop.xlane.xlu0 %1341
      %v1343 = vsel %vm1309, %v1257, -inf
      %1344 = vmax.xlane.f32.xlu0 %v1343
      %v1345 = vpop.xlane.xlu0 %1344
      %v1346 = vsel %vm1309, %v1260, -inf
      %1347 = vmax.xlane.f32.xlu0 %v1346
      %v1348 = vpop.xlane.xlu0 %1347
      %v1349 = vsel %vm1309, %v1262, -inf
      %1350 = vmax.xlane.f32.xlu0 %v1349
      %v1351 = vpop.xlane.xlu0 %1350
      %v1352 = vsel %vm1309, %v1265, -inf
      %1353 = vmax.xlane.f32.xlu0 %v1352
      %v1354 = vpop.xlane.xlu0 %1353
      %v1355 = vsel %vm1309, %v1267, -inf
      %1356 = vmax.xlane.f32.xlu0 %v1355
      %v1357 = vpop.xlane.xlu0 %1356
      %v1358 = vsel %vm1309, %v1270, -inf
      %1359 = vmax.xlane.f32.xlu0 %v1358
      %v1360 = vpop.xlane.xlu0 %1359
      %v1361 = vsel %vm1309, %v1272, -inf
      %1362 = vmax.xlane.f32.xlu0 %v1361
      %v1363 = vpop.xlane.xlu0 %1362
      %v1364 = vsel %vm1309, %v1275, -inf
      %1365 = vmax.xlane.f32.xlu0 %v1364
      %v1366 = vpop.xlane.xlu0 %1365
      %v1367 = vsel %vm1309, %v1277, -inf
      %1368 = vmax.xlane.f32.xlu0 %v1367
      %v1369 = vpop.xlane.xlu0 %1368
      %v1370 = vsel %vm1309, %v1280, -inf
      %1371 = vmax.xlane.f32.xlu0 %v1370
      %v1372 = vpop.xlane.xlu0 %1371
      %v1373 = vsel %vm1309, %v1282, -inf
      %1374 = vmax.xlane.f32.xlu0 %v1373
      %v1375 = vpop.xlane.xlu0 %1374
      %v1376 = vsel %vm1309, %v1285, -inf
      %1377 = vmax.xlane.f32.xlu0 %v1376
      %v1378 = vpop.xlane.xlu0 %1377
      %v1379 = vsel %vm1309, %v1287, -inf
      %1380 = vmax.xlane.f32.xlu0 %v1379
      %v1381 = vpop.xlane.xlu0 %1380
      %v1382 = vsel %vm1309, %v1290, -inf
      %1383 = vmax.xlane.f32.xlu0 %v1382
      %v1384 = vpop.xlane.xlu0 %1383
      %v1385 = vsel %vm1309, %v1292, -inf
      %1386 = vmax.xlane.f32.xlu0 %v1385
      %v1387 = vpop.xlane.xlu0 %1386
      %v1388 = vsel %vm1309, %v1295, -inf
      %1389 = vmax.xlane.f32.xlu0 %v1388
      %v1390 = vpop.xlane.xlu0 %1389
      %v1391 = vsel %vm1309, %v1297, -inf
      %1392 = vmax.xlane.f32.xlu0 %v1391
      %v1393 = vpop.xlane.xlu0 %1392
      %v1394 = vsel %vm1309, %v1300, -inf
      %1395 = vmax.xlane.f32.xlu0 %v1394
      %v1396 = vpop.xlane.xlu0 %1395
      %v1397 = vsel %vm1309, %v1302, -inf
      %1398 = vmax.xlane.f32.xlu0 %v1397
      %v1399 = vpop.xlane.xlu0 %1398
      %v1400 = vsel %vm1309, %v1305, -inf
      %1401 = vmax.xlane.f32.xlu0 %v1400
      %v1402 = vpop.xlane.xlu0 %1401
      %v1403 = vsel %vm1309, %v1307, -inf
      %1404 = vmax.xlane.f32.xlu0 %v1403
      %v1405 = vpop.xlane.xlu0 %1404
      %v1406 = vsub.f32 %v1230, %v1312
      %v1407 = vsub.f32 %v1232, %v1315
      %v1408 = vsub.f32 %v1235, %v1318
      %v1409 = vsub.f32 %v1237, %v1321
      %v1410 = vsub.f32 %v1240, %v1324
      %v1411 = vsub.f32 %v1242, %v1327
      %v1412 = vsub.f32 %v1245, %v1330
      %v1413 = vsub.f32 %v1247, %v1333
      %v1414 = vsub.f32 %v1250, %v1336
      %v1415 = vsub.f32 %v1252, %v1339
      %v1416 = vsub.f32 %v1255, %v1342
      %v1417 = vsub.f32 %v1257, %v1345
      %v1418 = vsub.f32 %v1260, %v1348
      %v1419 = vsub.f32 %v1262, %v1351
      %v1420 = vsub.f32 %v1265, %v1354
      %v1421 = vsub.f32 %v1267, %v1357
      %v1422 = vsub.f32 %v1270, %v1360
      %v1423 = vsub.f32 %v1272, %v1363
      %v1424 = vsub.f32 %v1275, %v1366
      %v1425 = vsub.f32 %v1277, %v1369
      %v1426 = vsub.f32 %v1280, %v1372
      %v1427 = vsub.f32 %v1282, %v1375
      %v1428 = vsub.f32 %v1285, %v1378
      %v1429 = vsub.f32 %v1287, %v1381
      %v1430 = vsub.f32 %v1290, %v1384
      %v1431 = vsub.f32 %v1292, %v1387
      %v1432 = vsub.f32 %v1295, %v1390
      %v1433 = vsub.f32 %v1297, %v1393
      %v1434 = vsub.f32 %v1300, %v1396
      %v1435 = vsub.f32 %v1302, %v1399
      %v1436 = vsub.f32 %v1305, %v1402
      %v1437 = vsub.f32 %v1307, %v1405
      %v1438 = vmul.f32 %v1406, 1.442695
      %v1439 = vpow.pop %v1438
      %v1440 = vmul.f32 %v1407, 1.442695
      %v1441 = vpow.pop %v1440
      %v1442 = vmul.f32 %v1408, 1.442695
      %v1443 = vpow.pop %v1442
      %v1444 = vmul.f32 %v1409, 1.442695
      %v1445 = vpow.pop %v1444
      %v1446 = vmul.f32 %v1410, 1.442695
      %v1447 = vpow.pop %v1446
      %v1448 = vmul.f32 %v1411, 1.442695
      %v1449 = vpow.pop %v1448
      %v1450 = vmul.f32 %v1412, 1.442695
      %v1451 = vpow.pop %v1450
      %v1452 = vmul.f32 %v1413, 1.442695
      %v1453 = vpow.pop %v1452
      %v1454 = vmul.f32 %v1414, 1.442695
      %v1455 = vpow.pop %v1454
      %v1456 = vmul.f32 %v1415, 1.442695
      %v1457 = vpow.pop %v1456
      %v1458 = vmul.f32 %v1416, 1.442695
      %v1459 = vpow.pop %v1458
      %v1460 = vmul.f32 %v1417, 1.442695
      %v1461 = vpow.pop %v1460
      %v1462 = vmul.f32 %v1418, 1.442695
      %v1463 = vpow.pop %v1462
      %v1464 = vmul.f32 %v1419, 1.442695
      %v1465 = vpow.pop %v1464
      %v1466 = vmul.f32 %v1420, 1.442695
      %v1467 = vpow.pop %v1466
      %v1468 = vmul.f32 %v1421, 1.442695
      %v1469 = vpow.pop %v1468
      %v1470 = vmul.f32 %v1422, 1.442695
      %v1471 = vpow.pop %v1470
      %v1472 = vmul.f32 %v1423, 1.442695
      %v1473 = vpow.pop %v1472
      %v1474 = vmul.f32 %v1424, 1.442695
      %v1475 = vpow.pop %v1474
      %v1476 = vmul.f32 %v1425, 1.442695
      %v1477 = vpow.pop %v1476
      %v1478 = vmul.f32 %v1426, 1.442695
      %v1479 = vpow.pop %v1478
      %v1480 = vmul.f32 %v1427, 1.442695
      %v1481 = vpow.pop %v1480
      %v1482 = vmul.f32 %v1428, 1.442695
      %v1483 = vpow.pop %v1482
      %v1484 = vmul.f32 %v1429, 1.442695
      %v1485 = vpow.pop %v1484
      %v1486 = vmul.f32 %v1430, 1.442695
      %v1487 = vpow.pop %v1486
      %v1488 = vmul.f32 %v1431, 1.442695
      %v1489 = vpow.pop %v1488
      %v1490 = vmul.f32 %v1432, 1.442695
      %v1491 = vpow.pop %v1490
      %v1492 = vmul.f32 %v1433, 1.442695
      %v1493 = vpow.pop %v1492
      %v1494 = vmul.f32 %v1434, 1.442695
      %v1495 = vpow.pop %v1494
      %v1496 = vmul.f32 %v1435, 1.442695
      %v1497 = vpow.pop %v1496
      %v1498 = vmul.f32 %v1436, 1.442695
      %v1499 = vpow.pop %v1498
      %v1500 = vmul.f32 %v1437, 1.442695
      %v1501 = vpow.pop %v1500
      %v1502 = vsel %vm1309, %v1439, 0.0
      %1503 = vadd.xlane.f32.xlu0 %v1502
      %v1504 = vpop.xlane.xlu0 %1503
      %v1505 = vsel %vm1309, %v1441, 0.0
      %1506 = vadd.xlane.f32.xlu0 %v1505
      %v1507 = vpop.xlane.xlu0 %1506
      %v1508 = vsel %vm1309, %v1443, 0.0
      %1509 = vadd.xlane.f32.xlu0 %v1508
      %v1510 = vpop.xlane.xlu0 %1509
      %v1511 = vsel %vm1309, %v1445, 0.0
      %1512 = vadd.xlane.f32.xlu0 %v1511
      %v1513 = vpop.xlane.xlu0 %1512
      %v1514 = vsel %vm1309, %v1447, 0.0
      %1515 = vadd.xlane.f32.xlu0 %v1514
      %v1516 = vpop.xlane.xlu0 %1515
      %v1517 = vsel %vm1309, %v1449, 0.0
      %1518 = vadd.xlane.f32.xlu0 %v1517
      %v1519 = vpop.xlane.xlu0 %1518
      %v1520 = vsel %vm1309, %v1451, 0.0
      %1521 = vadd.xlane.f32.xlu0 %v1520
      %v1522 = vpop.xlane.xlu0 %1521
      %v1523 = vsel %vm1309, %v1453, 0.0
      %1524 = vadd.xlane.f32.xlu0 %v1523
      %v1525 = vpop.xlane.xlu0 %1524
      %v1526 = vsel %vm1309, %v1455, 0.0
      %1527 = vadd.xlane.f32.xlu0 %v1526
      %v1528 = vpop.xlane.xlu0 %1527
      %v1529 = vsel %vm1309, %v1457, 0.0
      %1530 = vadd.xlane.f32.xlu0 %v1529
      %v1531 = vpop.xlane.xlu0 %1530
      %v1532 = vsel %vm1309, %v1459, 0.0
      %1533 = vadd.xlane.f32.xlu0 %v1532
      %v1534 = vpop.xlane.xlu0 %1533
      %v1535 = vsel %vm1309, %v1461, 0.0
      %1536 = vadd.xlane.f32.xlu0 %v1535
      %v1537 = vpop.xlane.xlu0 %1536
      %v1538 = vsel %vm1309, %v1463, 0.0
      %1539 = vadd.xlane.f32.xlu0 %v1538
      %v1540 = vpop.xlane.xlu0 %1539
      %v1541 = vsel %vm1309, %v1465, 0.0
      %1542 = vadd.xlane.f32.xlu0 %v1541
      %v1543 = vpop.xlane.xlu0 %1542
      %v1544 = vsel %vm1309, %v1467, 0.0
      %1545 = vadd.xlane.f32.xlu0 %v1544
      %v1546 = vpop.xlane.xlu0 %1545
      %v1547 = vsel %vm1309, %v1469, 0.0
      %1548 = vadd.xlane.f32.xlu0 %v1547
      %v1549 = vpop.xlane.xlu0 %1548
      %v1550 = vsel %vm1309, %v1471, 0.0
      %1551 = vadd.xlane.f32.xlu0 %v1550
      %v1552 = vpop.xlane.xlu0 %1551
      %v1553 = vsel %vm1309, %v1473, 0.0
      %1554 = vadd.xlane.f32.xlu0 %v1553
      %v1555 = vpop.xlane.xlu0 %1554
      %v1556 = vsel %vm1309, %v1475, 0.0
      %1557 = vadd.xlane.f32.xlu0 %v1556
      %v1558 = vpop.xlane.xlu0 %1557
      %v1559 = vsel %vm1309, %v1477, 0.0
      %1560 = vadd.xlane.f32.xlu0 %v1559
      %v1561 = vpop.xlane.xlu0 %1560
      %v1562 = vsel %vm1309, %v1479, 0.0
      %1563 = vadd.xlane.f32.xlu0 %v1562
      %v1564 = vpop.xlane.xlu0 %1563
      %v1565 = vsel %vm1309, %v1481, 0.0
      %1566 = vadd.xlane.f32.xlu0 %v1565
      %v1567 = vpop.xlane.xlu0 %1566
      %v1568 = vsel %vm1309, %v1483, 0.0
      %1569 = vadd.xlane.f32.xlu0 %v1568
      %v1570 = vpop.xlane.xlu0 %1569
      %v1571 = vsel %vm1309, %v1485, 0.0
      %1572 = vadd.xlane.f32.xlu0 %v1571
      %v1573 = vpop.xlane.xlu0 %1572
      %v1574 = vsel %vm1309, %v1487, 0.0
      %1575 = vadd.xlane.f32.xlu0 %v1574
      %v1576 = vpop.xlane.xlu0 %1575
      %v1577 = vsel %vm1309, %v1489, 0.0
      %1578 = vadd.xlane.f32.xlu0 %v1577
      %v1579 = vpop.xlane.xlu0 %1578
      %v1580 = vsel %vm1309, %v1491, 0.0
      %1581 = vadd.xlane.f32.xlu0 %v1580
      %v1582 = vpop.xlane.xlu0 %1581
      %v1583 = vsel %vm1309, %v1493, 0.0
      %1584 = vadd.xlane.f32.xlu0 %v1583
      %v1585 = vpop.xlane.xlu0 %1584
      %v1586 = vsel %vm1309, %v1495, 0.0
      %1587 = vadd.xlane.f32.xlu0 %v1586
      %v1588 = vpop.xlane.xlu0 %1587
      %v1589 = vsel %vm1309, %v1497, 0.0
      %1590 = vadd.xlane.f32.xlu0 %v1589
      %v1591 = vpop.xlane.xlu0 %1590
      %v1592 = vsel %vm1309, %v1499, 0.0
      %1593 = vadd.xlane.f32.xlu0 %v1592
      %v1594 = vpop.xlane.xlu0 %1593
      %v1595 = vsel %vm1309, %v1501, 0.0
      %1596 = vadd.xlane.f32.xlu0 %v1595
      %v1597 = vpop.xlane.xlu0 %1596
      %v1598 = vrcp.pop %v1504
      %v1599 = vrcp.pop %v1507
      %v1600 = vrcp.pop %v1510
      %v1601 = vrcp.pop %v1513
      %v1602 = vrcp.pop %v1516
      %v1603 = vrcp.pop %v1519
      %v1604 = vrcp.pop %v1522
      %v1605 = vrcp.pop %v1525
      %v1606 = vrcp.pop %v1528
      %v1607 = vrcp.pop %v1531
      %v1608 = vrcp.pop %v1534
      %v1609 = vrcp.pop %v1537
      %v1610 = vrcp.pop %v1540
      %v1611 = vrcp.pop %v1543
      %v1612 = vrcp.pop %v1546
      %v1613 = vrcp.pop %v1549
      %v1614 = vrcp.pop %v1552
      %v1615 = vrcp.pop %v1555
      %v1616 = vrcp.pop %v1558
      %v1617 = vrcp.pop %v1561
      %v1618 = vrcp.pop %v1564
      %v1619 = vrcp.pop %v1567
      %v1620 = vrcp.pop %v1570
      %v1621 = vrcp.pop %v1573
      %v1622 = vrcp.pop %v1576
      %v1623 = vrcp.pop %v1579
      %v1624 = vrcp.pop %v1582
      %v1625 = vrcp.pop %v1585
      %v1626 = vrcp.pop %v1588
      %v1627 = vrcp.pop %v1591
      %v1628 = vrcp.pop %v1594
      %v1629 = vrcp.pop %v1597
      %v1630 = vmul.f32 %v1439, %v1598
      %v1631 = vmul.f32 %v1441, %v1599
      %v1632 = vmul.f32 %v1443, %v1600
      %v1633 = vmul.f32 %v1445, %v1601
      %v1634 = vmul.f32 %v1447, %v1602
      %v1635 = vmul.f32 %v1449, %v1603
      %v1636 = vmul.f32 %v1451, %v1604
      %v1637 = vmul.f32 %v1453, %v1605
      %v1638 = vmul.f32 %v1455, %v1606
      %v1639 = vmul.f32 %v1457, %v1607
      %v1640 = vmul.f32 %v1459, %v1608
      %v1641 = vmul.f32 %v1461, %v1609
      %v1642 = vmul.f32 %v1463, %v1610
      %v1643 = vmul.f32 %v1465, %v1611
      %v1644 = vmul.f32 %v1467, %v1612
      %v1645 = vmul.f32 %v1469, %v1613
      %v1646 = vmul.f32 %v1471, %v1614
      %v1647 = vmul.f32 %v1473, %v1615
      %v1648 = vmul.f32 %v1475, %v1616
      %v1649 = vmul.f32 %v1477, %v1617
      %v1650 = vmul.f32 %v1479, %v1618
      %v1651 = vmul.f32 %v1481, %v1619
      %v1652 = vmul.f32 %v1483, %v1620
      %v1653 = vmul.f32 %v1485, %v1621
      %v1654 = vmul.f32 %v1487, %v1622
      %v1655 = vmul.f32 %v1489, %v1623
      %v1656 = vmul.f32 %v1491, %v1624
      %v1657 = vmul.f32 %v1493, %v1625
      %v1658 = vmul.f32 %v1495, %v1626
      %v1659 = vmul.f32 %v1497, %v1627
      %v1660 = vmul.f32 %v1499, %v1628
      %v1661 = vmul.f32 %v1501, %v1629
      %1663 = vset.pattern.permute.xlu0 0
      %1664 = vperm.xlu0 %1663, %v1104
      %v1665 = vpop.permute.xlu0 %1664
      %1668 = vset.pattern.permute.xlu0 0
      %1669 = vperm.xlu0 %1668, %v1105
      %v1670 = vpop.permute.xlu0 %1669
      %1673 = vset.pattern.permute.xlu0 0
      %1674 = vperm.xlu0 %1673, %v1106
      %v1675 = vpop.permute.xlu0 %1674
      %1678 = vset.pattern.permute.xlu0 0
      %1679 = vperm.xlu0 %1678, %v1107
      %v1680 = vpop.permute.xlu0 %1679
      %1683 = vset.pattern.permute.xlu0 0
      %1684 = vperm.xlu0 %1683, %v1108
      %v1685 = vpop.permute.xlu0 %1684
      %1688 = vset.pattern.permute.xlu0 0
      %1689 = vperm.xlu0 %1688, %v1109
      %v1690 = vpop.permute.xlu0 %1689
      %1693 = vset.pattern.permute.xlu0 0
      %1694 = vperm.xlu0 %1693, %v1110
      %v1695 = vpop.permute.xlu0 %1694
      %1698 = vset.pattern.permute.xlu0 0
      %1699 = vperm.xlu0 %1698, %v1111
      %v1700 = vpop.permute.xlu0 %1699
      %1703 = vset.pattern.permute.xlu0 0
      %1704 = vperm.xlu0 %1703, %v1112
      %v1705 = vpop.permute.xlu0 %1704
      %1708 = vset.pattern.permute.xlu0 0
      %1709 = vperm.xlu0 %1708, %v1113
      %v1710 = vpop.permute.xlu0 %1709
      %1713 = vset.pattern.permute.xlu0 0
      %1714 = vperm.xlu0 %1713, %v1114
      %v1715 = vpop.permute.xlu0 %1714
      %1718 = vset.pattern.permute.xlu0 0
      %1719 = vperm.xlu0 %1718, %v1115
      %v1720 = vpop.permute.xlu0 %1719
      %1723 = vset.pattern.permute.xlu0 0
      %1724 = vperm.xlu0 %1723, %v1116
      %v1725 = vpop.permute.xlu0 %1724
      %1728 = vset.pattern.permute.xlu0 0
      %1729 = vperm.xlu0 %1728, %v1117
      %v1730 = vpop.permute.xlu0 %1729
      %1733 = vset.pattern.permute.xlu0 0
      %1734 = vperm.xlu0 %1733, %v1118
      %v1735 = vpop.permute.xlu0 %1734
      %1738 = vset.pattern.permute.xlu0 0
      %1739 = vperm.xlu0 %1738, %v1119
      %v1740 = vpop.permute.xlu0 %1739
      %1743 = vset.pattern.permute.xlu0 0
      %1744 = vperm.xlu0 %1743, %v1120
      %v1745 = vpop.permute.xlu0 %1744
      %1748 = vset.pattern.permute.xlu0 0
      %1749 = vperm.xlu0 %1748, %v1121
      %v1750 = vpop.permute.xlu0 %1749
      %1753 = vset.pattern.permute.xlu0 0
      %1754 = vperm.xlu0 %1753, %v1122
      %v1755 = vpop.permute.xlu0 %1754
      %1758 = vset.pattern.permute.xlu0 0
      %1759 = vperm.xlu0 %1758, %v1123
      %v1760 = vpop.permute.xlu0 %1759
      %1763 = vset.pattern.permute.xlu0 0
      %1764 = vperm.xlu0 %1763, %v1124
      %v1765 = vpop.permute.xlu0 %1764
      %1768 = vset.pattern.permute.xlu0 0
      %1769 = vperm.xlu0 %1768, %v1125
      %v1770 = vpop.permute.xlu0 %1769
      %1773 = vset.pattern.permute.xlu0 0
      %1774 = vperm.xlu0 %1773, %v1126
      %v1775 = vpop.permute.xlu0 %1774
      %1778 = vset.pattern.permute.xlu0 0
      %1779 = vperm.xlu0 %1778, %v1127
      %v1780 = vpop.permute.xlu0 %1779
      %1783 = vset.pattern.permute.xlu0 0
      %1784 = vperm.xlu0 %1783, %v1128
      %v1785 = vpop.permute.xlu0 %1784
      %1788 = vset.pattern.permute.xlu0 0
      %1789 = vperm.xlu0 %1788, %v1129
      %v1790 = vpop.permute.xlu0 %1789
      %1793 = vset.pattern.permute.xlu0 0
      %1794 = vperm.xlu0 %1793, %v1130
      %v1795 = vpop.permute.xlu0 %1794
      %1798 = vset.pattern.permute.xlu0 0
      %1799 = vperm.xlu0 %1798, %v1131
      %v1800 = vpop.permute.xlu0 %1799
      %1803 = vset.pattern.permute.xlu0 0
      %1804 = vperm.xlu0 %1803, %v1132
      %v1805 = vpop.permute.xlu0 %1804
      %1808 = vset.pattern.permute.xlu0 0
      %1809 = vperm.xlu0 %1808, %v1133
      %v1810 = vpop.permute.xlu0 %1809
      %1813 = vset.pattern.permute.xlu0 0
      %1814 = vperm.xlu0 %1813, %v1134
      %v1815 = vpop.permute.xlu0 %1814
      %1818 = vset.pattern.permute.xlu0 0
      %1819 = vperm.xlu0 %1818, %v1135
      %v1820 = vpop.permute.xlu0 %1819
      %v1822 = vmul.f32 %v1630, %v1665
      %v1823 = vmul.f32 %v1631, %v1670
      %v1824 = vmul.f32 %v1632, %v1675
      %v1825 = vmul.f32 %v1633, %v1680
      %v1826 = vmul.f32 %v1634, %v1685
      %v1827 = vmul.f32 %v1635, %v1690
      %v1828 = vmul.f32 %v1636, %v1695
      %v1829 = vmul.f32 %v1637, %v1700
      %v1830 = vmul.f32 %v1638, %v1705
      %v1831 = vmul.f32 %v1639, %v1710
      %v1832 = vmul.f32 %v1640, %v1715
      %v1833 = vmul.f32 %v1641, %v1720
      %v1834 = vmul.f32 %v1642, %v1725
      %v1835 = vmul.f32 %v1643, %v1730
      %v1836 = vmul.f32 %v1644, %v1735
      %v1837 = vmul.f32 %v1645, %v1740
      %v1838 = vmul.f32 %v1646, %v1745
      %v1839 = vmul.f32 %v1647, %v1750
      %v1840 = vmul.f32 %v1648, %v1755
      %v1841 = vmul.f32 %v1649, %v1760
      %v1842 = vmul.f32 %v1650, %v1765
      %v1843 = vmul.f32 %v1651, %v1770
      %v1844 = vmul.f32 %v1652, %v1775
      %v1845 = vmul.f32 %v1653, %v1780
      %v1846 = vmul.f32 %v1654, %v1785
      %v1847 = vmul.f32 %v1655, %v1790
      %v1848 = vmul.f32 %v1656, %v1795
      %v1849 = vmul.f32 %v1657, %v1800
      %v1850 = vmul.f32 %v1658, %v1805
      %v1851 = vmul.f32 %v1659, %v1810
      %v1852 = vmul.f32 %v1660, %v1815
      %v1853 = vmul.f32 %v1661, %v1820
      %v1854 = vadd.f32 %v1822, 0.0
      %v1855 = vadd.f32 %v1823, 0.0
      %v1856 = vadd.f32 %v1824, 0.0
      %v1857 = vadd.f32 %v1825, 0.0
      %v1858 = vadd.f32 %v1826, 0.0
      %v1859 = vadd.f32 %v1827, 0.0
      %v1860 = vadd.f32 %v1828, 0.0
      %v1861 = vadd.f32 %v1829, 0.0
      %v1862 = vadd.f32 %v1830, 0.0
      %v1863 = vadd.f32 %v1831, 0.0
      %v1864 = vadd.f32 %v1832, 0.0
      %v1865 = vadd.f32 %v1833, 0.0
      %v1866 = vadd.f32 %v1834, 0.0
      %v1867 = vadd.f32 %v1835, 0.0
      %v1868 = vadd.f32 %v1836, 0.0
      %v1869 = vadd.f32 %v1837, 0.0
      %v1870 = vadd.f32 %v1838, 0.0
      %v1871 = vadd.f32 %v1839, 0.0
      %v1872 = vadd.f32 %v1840, 0.0
      %v1873 = vadd.f32 %v1841, 0.0
      %v1874 = vadd.f32 %v1842, 0.0
      %v1875 = vadd.f32 %v1843, 0.0
      %v1876 = vadd.f32 %v1844, 0.0
      %v1877 = vadd.f32 %v1845, 0.0
      %v1878 = vadd.f32 %v1846, 0.0
      %v1879 = vadd.f32 %v1847, 0.0
      %v1880 = vadd.f32 %v1848, 0.0
      %v1881 = vadd.f32 %v1849, 0.0
      %v1882 = vadd.f32 %v1850, 0.0
      %v1883 = vadd.f32 %v1851, 0.0
      %v1884 = vadd.f32 %v1852, 0.0
      %v1885 = vadd.f32 %v1853, 0.0
      %vm1886 = vcmask 261248
      %v1887 = vsel %vm1886, %v1230, -inf
      %1888 = vmax.xlane.f32.xlu0 %v1887
      %v1889 = vpop.xlane.xlu0 %1888
      %v1890 = vsel %vm1886, %v1232, -inf
      %1891 = vmax.xlane.f32.xlu0 %v1890
      %v1892 = vpop.xlane.xlu0 %1891
      %v1893 = vsel %vm1886, %v1235, -inf
      %1894 = vmax.xlane.f32.xlu0 %v1893
      %v1895 = vpop.xlane.xlu0 %1894
      %v1896 = vsel %vm1886, %v1237, -inf
      %1897 = vmax.xlane.f32.xlu0 %v1896
      %v1898 = vpop.xlane.xlu0 %1897
      %v1899 = vsel %vm1886, %v1240, -inf
      %1900 = vmax.xlane.f32.xlu0 %v1899
      %v1901 = vpop.xlane.xlu0 %1900
      %v1902 = vsel %vm1886, %v1242, -inf
      %1903 = vmax.xlane.f32.xlu0 %v1902
      %v1904 = vpop.xlane.xlu0 %1903
      %v1905 = vsel %vm1886, %v1245, -inf
      %1906 = vmax.xlane.f32.xlu0 %v1905
      %v1907 = vpop.xlane.xlu0 %1906
      %v1908 = vsel %vm1886, %v1247, -inf
      %1909 = vmax.xlane.f32.xlu0 %v1908
      %v1910 = vpop.xlane.xlu0 %1909
      %v1911 = vsel %vm1886, %v1250, -inf
      %1912 = vmax.xlane.f32.xlu0 %v1911
      %v1913 = vpop.xlane.xlu0 %1912
      %v1914 = vsel %vm1886, %v1252, -inf
      %1915 = vmax.xlane.f32.xlu0 %v1914
      %v1916 = vpop.xlane.xlu0 %1915
      %v1917 = vsel %vm1886, %v1255, -inf
      %1918 = vmax.xlane.f32.xlu0 %v1917
      %v1919 = vpop.xlane.xlu0 %1918
      %v1920 = vsel %vm1886, %v1257, -inf
      %1921 = vmax.xlane.f32.xlu0 %v1920
      %v1922 = vpop.xlane.xlu0 %1921
      %v1923 = vsel %vm1886, %v1260, -inf
      %1924 = vmax.xlane.f32.xlu0 %v1923
      %v1925 = vpop.xlane.xlu0 %1924
      %v1926 = vsel %vm1886, %v1262, -inf
      %1927 = vmax.xlane.f32.xlu0 %v1926
      %v1928 = vpop.xlane.xlu0 %1927
      %v1929 = vsel %vm1886, %v1265, -inf
      %1930 = vmax.xlane.f32.xlu0 %v1929
      %v1931 = vpop.xlane.xlu0 %1930
      %v1932 = vsel %vm1886, %v1267, -inf
      %1933 = vmax.xlane.f32.xlu0 %v1932
      %v1934 = vpop.xlane.xlu0 %1933
      %v1935 = vsel %vm1886, %v1270, -inf
      %1936 = vmax.xlane.f32.xlu0 %v1935
      %v1937 = vpop.xlane.xlu0 %1936
      %v1938 = vsel %vm1886, %v1272, -inf
      %1939 = vmax.xlane.f32.xlu0 %v1938
      %v1940 = vpop.xlane.xlu0 %1939
      %v1941 = vsel %vm1886, %v1275, -inf
      %1942 = vmax.xlane.f32.xlu0 %v1941
      %v1943 = vpop.xlane.xlu0 %1942
      %v1944 = vsel %vm1886, %v1277, -inf
      %1945 = vmax.xlane.f32.xlu0 %v1944
      %v1946 = vpop.xlane.xlu0 %1945
      %v1947 = vsel %vm1886, %v1280, -inf
      %1948 = vmax.xlane.f32.xlu0 %v1947
      %v1949 = vpop.xlane.xlu0 %1948
      %v1950 = vsel %vm1886, %v1282, -inf
      %1951 = vmax.xlane.f32.xlu0 %v1950
      %v1952 = vpop.xlane.xlu0 %1951
      %v1953 = vsel %vm1886, %v1285, -inf
      %1954 = vmax.xlane.f32.xlu0 %v1953
      %v1955 = vpop.xlane.xlu0 %1954
      %v1956 = vsel %vm1886, %v1287, -inf
      %1957 = vmax.xlane.f32.xlu0 %v1956
      %v1958 = vpop.xlane.xlu0 %1957
      %v1959 = vsel %vm1886, %v1290, -inf
      %1960 = vmax.xlane.f32.xlu0 %v1959
      %v1961 = vpop.xlane.xlu0 %1960
      %v1962 = vsel %vm1886, %v1292, -inf
      %1963 = vmax.xlane.f32.xlu0 %v1962
      %v1964 = vpop.xlane.xlu0 %1963
      %v1965 = vsel %vm1886, %v1295, -inf
      %1966 = vmax.xlane.f32.xlu0 %v1965
      %v1967 = vpop.xlane.xlu0 %1966
      %v1968 = vsel %vm1886, %v1297, -inf
      %1969 = vmax.xlane.f32.xlu0 %v1968
      %v1970 = vpop.xlane.xlu0 %1969
      %v1971 = vsel %vm1886, %v1300, -inf
      %1972 = vmax.xlane.f32.xlu0 %v1971
      %v1973 = vpop.xlane.xlu0 %1972
      %v1974 = vsel %vm1886, %v1302, -inf
      %1975 = vmax.xlane.f32.xlu0 %v1974
      %v1976 = vpop.xlane.xlu0 %1975
      %v1977 = vsel %vm1886, %v1305, -inf
      %1978 = vmax.xlane.f32.xlu0 %v1977
      %v1979 = vpop.xlane.xlu0 %1978
      %v1980 = vsel %vm1886, %v1307, -inf
      %1981 = vmax.xlane.f32.xlu0 %v1980
      %v1982 = vpop.xlane.xlu0 %1981
      %v1983 = vsub.f32 %v1230, %v1889
      %v1984 = vsub.f32 %v1232, %v1892
      %v1985 = vsub.f32 %v1235, %v1895
      %v1986 = vsub.f32 %v1237, %v1898
      %v1987 = vsub.f32 %v1240, %v1901
      %v1988 = vsub.f32 %v1242, %v1904
      %v1989 = vsub.f32 %v1245, %v1907
      %v1990 = vsub.f32 %v1247, %v1910
      %v1991 = vsub.f32 %v1250, %v1913
      %v1992 = vsub.f32 %v1252, %v1916
      %v1993 = vsub.f32 %v1255, %v1919
      %v1994 = vsub.f32 %v1257, %v1922
      %v1995 = vsub.f32 %v1260, %v1925
      %v1996 = vsub.f32 %v1262, %v1928
      %v1997 = vsub.f32 %v1265, %v1931
      %v1998 = vsub.f32 %v1267, %v1934
      %v1999 = vsub.f32 %v1270, %v1937
      %v2000 = vsub.f32 %v1272, %v1940
      %v2001 = vsub.f32 %v1275, %v1943
      %v2002 = vsub.f32 %v1277, %v1946
      %v2003 = vsub.f32 %v1280, %v1949
      %v2004 = vsub.f32 %v1282, %v1952
      %v2005 = vsub.f32 %v1285, %v1955
      %v2006 = vsub.f32 %v1287, %v1958
      %v2007 = vsub.f32 %v1290, %v1961
      %v2008 = vsub.f32 %v1292, %v1964
      %v2009 = vsub.f32 %v1295, %v1967
      %v2010 = vsub.f32 %v1297, %v1970
      %v2011 = vsub.f32 %v1300, %v1973
      %v2012 = vsub.f32 %v1302, %v1976
      %v2013 = vsub.f32 %v1305, %v1979
      %v2014 = vsub.f32 %v1307, %v1982
      %v2015 = vmul.f32 %v1983, 1.442695
      %v2016 = vpow.pop %v2015
      %v2017 = vmul.f32 %v1984, 1.442695
      %v2018 = vpow.pop %v2017
      %v2019 = vmul.f32 %v1985, 1.442695
      %v2020 = vpow.pop %v2019
      %v2021 = vmul.f32 %v1986, 1.442695
      %v2022 = vpow.pop %v2021
      %v2023 = vmul.f32 %v1987, 1.442695
      %v2024 = vpow.pop %v2023
      %v2025 = vmul.f32 %v1988, 1.442695
      %v2026 = vpow.pop %v2025
      %v2027 = vmul.f32 %v1989, 1.442695
      %v2028 = vpow.pop %v2027
      %v2029 = vmul.f32 %v1990, 1.442695
      %v2030 = vpow.pop %v2029
      %v2031 = vmul.f32 %v1991, 1.442695
      %v2032 = vpow.pop %v2031
      %v2033 = vmul.f32 %v1992, 1.442695
      %v2034 = vpow.pop %v2033
      %v2035 = vmul.f32 %v1993, 1.442695
      %v2036 = vpow.pop %v2035
      %v2037 = vmul.f32 %v1994, 1.442695
      %v2038 = vpow.pop %v2037
      %v2039 = vmul.f32 %v1995, 1.442695
      %v2040 = vpow.pop %v2039
      %v2041 = vmul.f32 %v1996, 1.442695
      %v2042 = vpow.pop %v2041
      %v2043 = vmul.f32 %v1997, 1.442695
      %v2044 = vpow.pop %v2043
      %v2045 = vmul.f32 %v1998, 1.442695
      %v2046 = vpow.pop %v2045
      %v2047 = vmul.f32 %v1999, 1.442695
      %v2048 = vpow.pop %v2047
      %v2049 = vmul.f32 %v2000, 1.442695
      %v2050 = vpow.pop %v2049
      %v2051 = vmul.f32 %v2001, 1.442695
      %v2052 = vpow.pop %v2051
      %v2053 = vmul.f32 %v2002, 1.442695
      %v2054 = vpow.pop %v2053
      %v2055 = vmul.f32 %v2003, 1.442695
      %v2056 = vpow.pop %v2055
      %v2057 = vmul.f32 %v2004, 1.442695
      %v2058 = vpow.pop %v2057
      %v2059 = vmul.f32 %v2005, 1.442695
      %v2060 = vpow.pop %v2059
      %v2061 = vmul.f32 %v2006, 1.442695
      %v2062 = vpow.pop %v2061
      %v2063 = vmul.f32 %v2007, 1.442695
      %v2064 = vpow.pop %v2063
      %v2065 = vmul.f32 %v2008, 1.442695
      %v2066 = vpow.pop %v2065
      %v2067 = vmul.f32 %v2009, 1.442695
      %v2068 = vpow.pop %v2067
      %v2069 = vmul.f32 %v2010, 1.442695
      %v2070 = vpow.pop %v2069
      %v2071 = vmul.f32 %v2011, 1.442695
      %v2072 = vpow.pop %v2071
      %v2073 = vmul.f32 %v2012, 1.442695
      %v2074 = vpow.pop %v2073
      %v2075 = vmul.f32 %v2013, 1.442695
      %v2076 = vpow.pop %v2075
      %v2077 = vmul.f32 %v2014, 1.442695
      %v2078 = vpow.pop %v2077
      %2111 = vrot.lane.b32.xlu0 %v2016, 112
      %v2112 = vpop.permute.xlu0 %2111
      %2113 = vrot.lane.b32.xlu0 %v2018, 112
      %v2114 = vpop.permute.xlu0 %2113
      %2115 = vrot.lane.b32.xlu0 %v2020, 112
      %v2116 = vpop.permute.xlu0 %2115
      %2117 = vrot.lane.b32.xlu0 %v2022, 112
      %v2118 = vpop.permute.xlu0 %2117
      %2119 = vrot.lane.b32.xlu0 %v2024, 112
      %v2120 = vpop.permute.xlu0 %2119
      %2121 = vrot.lane.b32.xlu0 %v2026, 112
      %v2122 = vpop.permute.xlu0 %2121
      %2123 = vrot.lane.b32.xlu0 %v2028, 112
      %v2124 = vpop.permute.xlu0 %2123
      %2125 = vrot.lane.b32.xlu0 %v2030, 112
      %v2126 = vpop.permute.xlu0 %2125
      %2127 = vrot.lane.b32.xlu0 %v2032, 112
      %v2128 = vpop.permute.xlu0 %2127
      %2129 = vrot.lane.b32.xlu0 %v2034, 112
      %v2130 = vpop.permute.xlu0 %2129
      %2131 = vrot.lane.b32.xlu0 %v2036, 112
      %v2132 = vpop.permute.xlu0 %2131
      %2133 = vrot.lane.b32.xlu0 %v2038, 112
      %v2134 = vpop.permute.xlu0 %2133
      %2135 = vrot.lane.b32.xlu0 %v2040, 112
      %v2136 = vpop.permute.xlu0 %2135
      %2137 = vrot.lane.b32.xlu0 %v2042, 112
      %v2138 = vpop.permute.xlu0 %2137
      %2139 = vrot.lane.b32.xlu0 %v2044, 112
      %v2140 = vpop.permute.xlu0 %2139
      %2141 = vrot.lane.b32.xlu0 %v2046, 112
      %v2142 = vpop.permute.xlu0 %2141
      %2143 = vrot.lane.b32.xlu0 %v2048, 112
      %v2144 = vpop.permute.xlu0 %2143
      %2145 = vrot.lane.b32.xlu0 %v2050, 112
      %v2146 = vpop.permute.xlu0 %2145
      %2147 = vrot.lane.b32.xlu0 %v2052, 112
      %v2148 = vpop.permute.xlu0 %2147
      %2149 = vrot.lane.b32.xlu0 %v2054, 112
      %v2150 = vpop.permute.xlu0 %2149
      %2151 = vrot.lane.b32.xlu0 %v2056, 112
      %v2152 = vpop.permute.xlu0 %2151
      %2153 = vrot.lane.b32.xlu0 %v2058, 112
      %v2154 = vpop.permute.xlu0 %2153
      %2155 = vrot.lane.b32.xlu0 %v2060, 112
      %v2156 = vpop.permute.xlu0 %2155
      %2157 = vrot.lane.b32.xlu0 %v2062, 112
      %v2158 = vpop.permute.xlu0 %2157
      %2159 = vrot.lane.b32.xlu0 %v2064, 112
      %v2160 = vpop.permute.xlu0 %2159
      %2161 = vrot.lane.b32.xlu0 %v2066, 112
      %v2162 = vpop.permute.xlu0 %2161
      %2163 = vrot.lane.b32.xlu0 %v2068, 112
      %v2164 = vpop.permute.xlu0 %2163
      %2165 = vrot.lane.b32.xlu0 %v2070, 112
      %v2166 = vpop.permute.xlu0 %2165
      %2167 = vrot.lane.b32.xlu0 %v2072, 112
      %v2168 = vpop.permute.xlu0 %2167
      %2169 = vrot.lane.b32.xlu0 %v2074, 112
      %v2170 = vpop.permute.xlu0 %2169
      %2171 = vrot.lane.b32.xlu0 %v2076, 112
      %v2172 = vpop.permute.xlu0 %2171
      %2173 = vrot.lane.b32.xlu0 %v2078, 112
      %v2174 = vpop.permute.xlu0 %2173
      %v2207 = vsel %vm1309, %v2112, 0.0
      %2208 = vadd.xlane.f32.xlu0 %v2207
      %v2209 = vpop.xlane.xlu0 %2208
      %v2210 = vsel %vm1309, %v2114, 0.0
      %2211 = vadd.xlane.f32.xlu0 %v2210
      %v2212 = vpop.xlane.xlu0 %2211
      %v2213 = vsel %vm1309, %v2116, 0.0
      %2214 = vadd.xlane.f32.xlu0 %v2213
      %v2215 = vpop.xlane.xlu0 %2214
      %v2216 = vsel %vm1309, %v2118, 0.0
      %2217 = vadd.xlane.f32.xlu0 %v2216
      %v2218 = vpop.xlane.xlu0 %2217
      %v2219 = vsel %vm1309, %v2120, 0.0
      %2220 = vadd.xlane.f32.xlu0 %v2219
      %v2221 = vpop.xlane.xlu0 %2220
      %v2222 = vsel %vm1309, %v2122, 0.0
      %2223 = vadd.xlane.f32.xlu0 %v2222
      %v2224 = vpop.xlane.xlu0 %2223
      %v2225 = vsel %vm1309, %v2124, 0.0
      %2226 = vadd.xlane.f32.xlu0 %v2225
      %v2227 = vpop.xlane.xlu0 %2226
      %v2228 = vsel %vm1309, %v2126, 0.0
      %2229 = vadd.xlane.f32.xlu0 %v2228
      %v2230 = vpop.xlane.xlu0 %2229
      %v2231 = vsel %vm1309, %v2128, 0.0
      %2232 = vadd.xlane.f32.xlu0 %v2231
      %v2233 = vpop.xlane.xlu0 %2232
      %v2234 = vsel %vm1309, %v2130, 0.0
      %2235 = vadd.xlane.f32.xlu0 %v2234
      %v2236 = vpop.xlane.xlu0 %2235
      %v2237 = vsel %vm1309, %v2132, 0.0
      %2238 = vadd.xlane.f32.xlu0 %v2237
      %v2239 = vpop.xlane.xlu0 %2238
      %v2240 = vsel %vm1309, %v2134, 0.0
      %2241 = vadd.xlane.f32.xlu0 %v2240
      %v2242 = vpop.xlane.xlu0 %2241
      %v2243 = vsel %vm1309, %v2136, 0.0
      %2244 = vadd.xlane.f32.xlu0 %v2243
      %v2245 = vpop.xlane.xlu0 %2244
      %v2246 = vsel %vm1309, %v2138, 0.0
      %2247 = vadd.xlane.f32.xlu0 %v2246
      %v2248 = vpop.xlane.xlu0 %2247
      %v2249 = vsel %vm1309, %v2140, 0.0
      %2250 = vadd.xlane.f32.xlu0 %v2249
      %v2251 = vpop.xlane.xlu0 %2250
      %v2252 = vsel %vm1309, %v2142, 0.0
      %2253 = vadd.xlane.f32.xlu0 %v2252
      %v2254 = vpop.xlane.xlu0 %2253
      %v2255 = vsel %vm1309, %v2144, 0.0
      %2256 = vadd.xlane.f32.xlu0 %v2255
      %v2257 = vpop.xlane.xlu0 %2256
      %v2258 = vsel %vm1309, %v2146, 0.0
      %2259 = vadd.xlane.f32.xlu0 %v2258
      %v2260 = vpop.xlane.xlu0 %2259
      %v2261 = vsel %vm1309, %v2148, 0.0
      %2262 = vadd.xlane.f32.xlu0 %v2261
      %v2263 = vpop.xlane.xlu0 %2262
      %v2264 = vsel %vm1309, %v2150, 0.0
      %2265 = vadd.xlane.f32.xlu0 %v2264
      %v2266 = vpop.xlane.xlu0 %2265
      %v2267 = vsel %vm1309, %v2152, 0.0
      %2268 = vadd.xlane.f32.xlu0 %v2267
      %v2269 = vpop.xlane.xlu0 %2268
      %v2270 = vsel %vm1309, %v2154, 0.0
      %2271 = vadd.xlane.f32.xlu0 %v2270
      %v2272 = vpop.xlane.xlu0 %2271
      %v2273 = vsel %vm1309, %v2156, 0.0
      %2274 = vadd.xlane.f32.xlu0 %v2273
      %v2275 = vpop.xlane.xlu0 %2274
      %v2276 = vsel %vm1309, %v2158, 0.0
      %2277 = vadd.xlane.f32.xlu0 %v2276
      %v2278 = vpop.xlane.xlu0 %2277
      %v2279 = vsel %vm1309, %v2160, 0.0
      %2280 = vadd.xlane.f32.xlu0 %v2279
      %v2281 = vpop.xlane.xlu0 %2280
      %v2282 = vsel %vm1309, %v2162, 0.0
      %2283 = vadd.xlane.f32.xlu0 %v2282
      %v2284 = vpop.xlane.xlu0 %2283
      %v2285 = vsel %vm1309, %v2164, 0.0
      %2286 = vadd.xlane.f32.xlu0 %v2285
      %v2287 = vpop.xlane.xlu0 %2286
      %v2288 = vsel %vm1309, %v2166, 0.0
      %2289 = vadd.xlane.f32.xlu0 %v2288
      %v2290 = vpop.xlane.xlu0 %2289
      %v2291 = vsel %vm1309, %v2168, 0.0
      %2292 = vadd.xlane.f32.xlu0 %v2291
      %v2293 = vpop.xlane.xlu0 %2292
      %v2294 = vsel %vm1309, %v2170, 0.0
      %2295 = vadd.xlane.f32.xlu0 %v2294
      %v2296 = vpop.xlane.xlu0 %2295
      %v2297 = vsel %vm1309, %v2172, 0.0
      %2298 = vadd.xlane.f32.xlu0 %v2297
      %v2299 = vpop.xlane.xlu0 %2298
      %v2300 = vsel %vm1309, %v2174, 0.0
      %2301 = vadd.xlane.f32.xlu0 %v2300
      %v2302 = vpop.xlane.xlu0 %2301
      %v2303 = vrcp.pop %v2209
      %v2304 = vrcp.pop %v2212
      %v2305 = vrcp.pop %v2215
      %v2306 = vrcp.pop %v2218
      %v2307 = vrcp.pop %v2221
      %v2308 = vrcp.pop %v2224
      %v2309 = vrcp.pop %v2227
      %v2310 = vrcp.pop %v2230
      %v2311 = vrcp.pop %v2233
      %v2312 = vrcp.pop %v2236
      %v2313 = vrcp.pop %v2239
      %v2314 = vrcp.pop %v2242
      %v2315 = vrcp.pop %v2245
      %v2316 = vrcp.pop %v2248
      %v2317 = vrcp.pop %v2251
      %v2318 = vrcp.pop %v2254
      %v2319 = vrcp.pop %v2257
      %v2320 = vrcp.pop %v2260
      %v2321 = vrcp.pop %v2263
      %v2322 = vrcp.pop %v2266
      %v2323 = vrcp.pop %v2269
      %v2324 = vrcp.pop %v2272
      %v2325 = vrcp.pop %v2275
      %v2326 = vrcp.pop %v2278
      %v2327 = vrcp.pop %v2281
      %v2328 = vrcp.pop %v2284
      %v2329 = vrcp.pop %v2287
      %v2330 = vrcp.pop %v2290
      %v2331 = vrcp.pop %v2293
      %v2332 = vrcp.pop %v2296
      %v2333 = vrcp.pop %v2299
      %v2334 = vrcp.pop %v2302
      %v2335 = vmul.f32 %v2016, %v2303
      %v2336 = vmul.f32 %v2018, %v2304
      %v2337 = vmul.f32 %v2020, %v2305
      %v2338 = vmul.f32 %v2022, %v2306
      %v2339 = vmul.f32 %v2024, %v2307
      %v2340 = vmul.f32 %v2026, %v2308
      %v2341 = vmul.f32 %v2028, %v2309
      %v2342 = vmul.f32 %v2030, %v2310
      %v2343 = vmul.f32 %v2032, %v2311
      %v2344 = vmul.f32 %v2034, %v2312
      %v2345 = vmul.f32 %v2036, %v2313
      %v2346 = vmul.f32 %v2038, %v2314
      %v2347 = vmul.f32 %v2040, %v2315
      %v2348 = vmul.f32 %v2042, %v2316
      %v2349 = vmul.f32 %v2044, %v2317
      %v2350 = vmul.f32 %v2046, %v2318
      %v2351 = vmul.f32 %v2048, %v2319
      %v2352 = vmul.f32 %v2050, %v2320
      %v2353 = vmul.f32 %v2052, %v2321
      %v2354 = vmul.f32 %v2054, %v2322
      %v2355 = vmul.f32 %v2056, %v2323
      %v2356 = vmul.f32 %v2058, %v2324
      %v2357 = vmul.f32 %v2060, %v2325
      %v2358 = vmul.f32 %v2062, %v2326
      %v2359 = vmul.f32 %v2064, %v2327
      %v2360 = vmul.f32 %v2066, %v2328
      %v2361 = vmul.f32 %v2068, %v2329
      %v2362 = vmul.f32 %v2070, %v2330
      %v2363 = vmul.f32 %v2072, %v2331
      %v2364 = vmul.f32 %v2074, %v2332
      %v2365 = vmul.f32 %v2076, %v2333
      %v2366 = vmul.f32 %v2078, %v2334
      %2367 = vset.pattern.permute.xlu0 1
      %2368 = vperm.xlu0 %2367, %v1104
      %v2369 = vpop.permute.xlu0 %2368
      %2371 = vset.pattern.permute.xlu0 1
      %2372 = vperm.xlu0 %2371, %v1105
      %v2373 = vpop.permute.xlu0 %2372
      %2375 = vset.pattern.permute.xlu0 1
      %2376 = vperm.xlu0 %2375, %v1106
      %v2377 = vpop.permute.xlu0 %2376
      %2379 = vset.pattern.permute.xlu0 1
      %2380 = vperm.xlu0 %2379, %v1107
      %v2381 = vpop.permute.xlu0 %2380
      %2383 = vset.pattern.permute.xlu0 1
      %2384 = vperm.xlu0 %2383, %v1108
      %v2385 = vpop.permute.xlu0 %2384
      %2387 = vset.pattern.permute.xlu0 1
      %2388 = vperm.xlu0 %2387, %v1109
      %v2389 = vpop.permute.xlu0 %2388
      %2391 = vset.pattern.permute.xlu0 1
      %2392 = vperm.xlu0 %2391, %v1110
      %v2393 = vpop.permute.xlu0 %2392
      %2395 = vset.pattern.permute.xlu0 1
      %2396 = vperm.xlu0 %2395, %v1111
      %v2397 = vpop.permute.xlu0 %2396
      %2399 = vset.pattern.permute.xlu0 1
      %2400 = vperm.xlu0 %2399, %v1112
      %v2401 = vpop.permute.xlu0 %2400
      %2403 = vset.pattern.permute.xlu0 1
      %2404 = vperm.xlu0 %2403, %v1113
      %v2405 = vpop.permute.xlu0 %2404
      %2407 = vset.pattern.permute.xlu0 1
      %2408 = vperm.xlu0 %2407, %v1114
      %v2409 = vpop.permute.xlu0 %2408
      %2411 = vset.pattern.permute.xlu0 1
      %2412 = vperm.xlu0 %2411, %v1115
      %v2413 = vpop.permute.xlu0 %2412
      %2415 = vset.pattern.permute.xlu0 1
      %2416 = vperm.xlu0 %2415, %v1116
      %v2417 = vpop.permute.xlu0 %2416
      %2419 = vset.pattern.permute.xlu0 1
      %2420 = vperm.xlu0 %2419, %v1117
      %v2421 = vpop.permute.xlu0 %2420
      %2423 = vset.pattern.permute.xlu0 1
      %2424 = vperm.xlu0 %2423, %v1118
      %v2425 = vpop.permute.xlu0 %2424
      %2427 = vset.pattern.permute.xlu0 1
      %2428 = vperm.xlu0 %2427, %v1119
      %v2429 = vpop.permute.xlu0 %2428
      %2431 = vset.pattern.permute.xlu0 1
      %2432 = vperm.xlu0 %2431, %v1120
      %v2433 = vpop.permute.xlu0 %2432
      %2435 = vset.pattern.permute.xlu0 1
      %2436 = vperm.xlu0 %2435, %v1121
      %v2437 = vpop.permute.xlu0 %2436
      %2439 = vset.pattern.permute.xlu0 1
      %2440 = vperm.xlu0 %2439, %v1122
      %v2441 = vpop.permute.xlu0 %2440
      %2443 = vset.pattern.permute.xlu0 1
      %2444 = vperm.xlu0 %2443, %v1123
      %v2445 = vpop.permute.xlu0 %2444
      %2447 = vset.pattern.permute.xlu0 1
      %2448 = vperm.xlu0 %2447, %v1124
      %v2449 = vpop.permute.xlu0 %2448
      %2451 = vset.pattern.permute.xlu0 1
      %2452 = vperm.xlu0 %2451, %v1125
      %v2453 = vpop.permute.xlu0 %2452
      %2455 = vset.pattern.permute.xlu0 1
      %2456 = vperm.xlu0 %2455, %v1126
      %v2457 = vpop.permute.xlu0 %2456
      %2459 = vset.pattern.permute.xlu0 1
      %2460 = vperm.xlu0 %2459, %v1127
      %v2461 = vpop.permute.xlu0 %2460
      %2463 = vset.pattern.permute.xlu0 1
      %2464 = vperm.xlu0 %2463, %v1128
      %v2465 = vpop.permute.xlu0 %2464
      %2467 = vset.pattern.permute.xlu0 1
      %2468 = vperm.xlu0 %2467, %v1129
      %v2469 = vpop.permute.xlu0 %2468
      %2471 = vset.pattern.permute.xlu0 1
      %2472 = vperm.xlu0 %2471, %v1130
      %v2473 = vpop.permute.xlu0 %2472
      %2475 = vset.pattern.permute.xlu0 1
      %2476 = vperm.xlu0 %2475, %v1131
      %v2477 = vpop.permute.xlu0 %2476
      %2479 = vset.pattern.permute.xlu0 1
      %2480 = vperm.xlu0 %2479, %v1132
      %v2481 = vpop.permute.xlu0 %2480
      %2483 = vset.pattern.permute.xlu0 1
      %2484 = vperm.xlu0 %2483, %v1133
      %v2485 = vpop.permute.xlu0 %2484
      %2487 = vset.pattern.permute.xlu0 1
      %2488 = vperm.xlu0 %2487, %v1134
      %v2489 = vpop.permute.xlu0 %2488
      %2491 = vset.pattern.permute.xlu0 1
      %2492 = vperm.xlu0 %2491, %v1135
      %v2493 = vpop.permute.xlu0 %2492
      %v2495 = vmul.f32 %v2335, %v2369
      %v2496 = vmul.f32 %v2336, %v2373
      %v2497 = vmul.f32 %v2337, %v2377
      %v2498 = vmul.f32 %v2338, %v2381
      %v2499 = vmul.f32 %v2339, %v2385
      %v2500 = vmul.f32 %v2340, %v2389
      %v2501 = vmul.f32 %v2341, %v2393
      %v2502 = vmul.f32 %v2342, %v2397
      %v2503 = vmul.f32 %v2343, %v2401
      %v2504 = vmul.f32 %v2344, %v2405
      %v2505 = vmul.f32 %v2345, %v2409
      %v2506 = vmul.f32 %v2346, %v2413
      %v2507 = vmul.f32 %v2347, %v2417
      %v2508 = vmul.f32 %v2348, %v2421
      %v2509 = vmul.f32 %v2349, %v2425
      %v2510 = vmul.f32 %v2350, %v2429
      %v2511 = vmul.f32 %v2351, %v2433
      %v2512 = vmul.f32 %v2352, %v2437
      %v2513 = vmul.f32 %v2353, %v2441
      %v2514 = vmul.f32 %v2354, %v2445
      %v2515 = vmul.f32 %v2355, %v2449
      %v2516 = vmul.f32 %v2356, %v2453
      %v2517 = vmul.f32 %v2357, %v2457
      %v2518 = vmul.f32 %v2358, %v2461
      %v2519 = vmul.f32 %v2359, %v2465
      %v2520 = vmul.f32 %v2360, %v2469
      %v2521 = vmul.f32 %v2361, %v2473
      %v2522 = vmul.f32 %v2362, %v2477
      %v2523 = vmul.f32 %v2363, %v2481
      %v2524 = vmul.f32 %v2364, %v2485
      %v2525 = vmul.f32 %v2365, %v2489
      %v2526 = vmul.f32 %v2366, %v2493
      %2559 = vrot.lane.b32.xlu0 %v2495, 112
      %v2560 = vpop.permute.xlu0 %2559
      %2561 = vrot.lane.b32.xlu0 %v2496, 112
      %v2562 = vpop.permute.xlu0 %2561
      %2563 = vrot.lane.b32.xlu0 %v2497, 112
      %v2564 = vpop.permute.xlu0 %2563
      %2565 = vrot.lane.b32.xlu0 %v2498, 112
      %v2566 = vpop.permute.xlu0 %2565
      %2567 = vrot.lane.b32.xlu0 %v2499, 112
      %v2568 = vpop.permute.xlu0 %2567
      %2569 = vrot.lane.b32.xlu0 %v2500, 112
      %v2570 = vpop.permute.xlu0 %2569
      %2571 = vrot.lane.b32.xlu0 %v2501, 112
      %v2572 = vpop.permute.xlu0 %2571
      %2573 = vrot.lane.b32.xlu0 %v2502, 112
      %v2574 = vpop.permute.xlu0 %2573
      %2575 = vrot.lane.b32.xlu0 %v2503, 112
      %v2576 = vpop.permute.xlu0 %2575
      %2577 = vrot.lane.b32.xlu0 %v2504, 112
      %v2578 = vpop.permute.xlu0 %2577
      %2579 = vrot.lane.b32.xlu0 %v2505, 112
      %v2580 = vpop.permute.xlu0 %2579
      %2581 = vrot.lane.b32.xlu0 %v2506, 112
      %v2582 = vpop.permute.xlu0 %2581
      %2583 = vrot.lane.b32.xlu0 %v2507, 112
      %v2584 = vpop.permute.xlu0 %2583
      %2585 = vrot.lane.b32.xlu0 %v2508, 112
      %v2586 = vpop.permute.xlu0 %2585
      %2587 = vrot.lane.b32.xlu0 %v2509, 112
      %v2588 = vpop.permute.xlu0 %2587
      %2589 = vrot.lane.b32.xlu0 %v2510, 112
      %v2590 = vpop.permute.xlu0 %2589
      %2591 = vrot.lane.b32.xlu0 %v2511, 112
      %v2592 = vpop.permute.xlu0 %2591
      %2593 = vrot.lane.b32.xlu0 %v2512, 112
      %v2594 = vpop.permute.xlu0 %2593
      %2595 = vrot.lane.b32.xlu0 %v2513, 112
      %v2596 = vpop.permute.xlu0 %2595
      %2597 = vrot.lane.b32.xlu0 %v2514, 112
      %v2598 = vpop.permute.xlu0 %2597
      %2599 = vrot.lane.b32.xlu0 %v2515, 112
      %v2600 = vpop.permute.xlu0 %2599
      %2601 = vrot.lane.b32.xlu0 %v2516, 112
      %v2602 = vpop.permute.xlu0 %2601
      %2603 = vrot.lane.b32.xlu0 %v2517, 112
      %v2604 = vpop.permute.xlu0 %2603
      %2605 = vrot.lane.b32.xlu0 %v2518, 112
      %v2606 = vpop.permute.xlu0 %2605
      %2607 = vrot.lane.b32.xlu0 %v2519, 112
      %v2608 = vpop.permute.xlu0 %2607
      %2609 = vrot.lane.b32.xlu0 %v2520, 112
      %v2610 = vpop.permute.xlu0 %2609
      %2611 = vrot.lane.b32.xlu0 %v2521, 112
      %v2612 = vpop.permute.xlu0 %2611
      %2613 = vrot.lane.b32.xlu0 %v2522, 112
      %v2614 = vpop.permute.xlu0 %2613
      %2615 = vrot.lane.b32.xlu0 %v2523, 112
      %v2616 = vpop.permute.xlu0 %2615
      %2617 = vrot.lane.b32.xlu0 %v2524, 112
      %v2618 = vpop.permute.xlu0 %2617
      %2619 = vrot.lane.b32.xlu0 %v2525, 112
      %v2620 = vpop.permute.xlu0 %2619
      %2621 = vrot.lane.b32.xlu0 %v2526, 112
      %v2622 = vpop.permute.xlu0 %2621
      %v2655 = vadd.f32 %v1854, %v2560
      %v2656 = vadd.f32 %v1855, %v2562
      %v2657 = vadd.f32 %v1856, %v2564
      %v2658 = vadd.f32 %v1857, %v2566
      %v2659 = vadd.f32 %v1858, %v2568
      %v2660 = vadd.f32 %v1859, %v2570
      %v2661 = vadd.f32 %v1860, %v2572
      %v2662 = vadd.f32 %v1861, %v2574
      %v2663 = vadd.f32 %v1862, %v2576
      %v2664 = vadd.f32 %v1863, %v2578
      %v2665 = vadd.f32 %v1864, %v2580
      %v2666 = vadd.f32 %v1865, %v2582
      %v2667 = vadd.f32 %v1866, %v2584
      %v2668 = vadd.f32 %v1867, %v2586
      %v2669 = vadd.f32 %v1868, %v2588
      %v2670 = vadd.f32 %v1869, %v2590
      %v2671 = vadd.f32 %v1870, %v2592
      %v2672 = vadd.f32 %v1871, %v2594
      %v2673 = vadd.f32 %v1872, %v2596
      %v2674 = vadd.f32 %v1873, %v2598
      %v2675 = vadd.f32 %v1874, %v2600
      %v2676 = vadd.f32 %v1875, %v2602
      %v2677 = vadd.f32 %v1876, %v2604
      %v2678 = vadd.f32 %v1877, %v2606
      %v2679 = vadd.f32 %v1878, %v2608
      %v2680 = vadd.f32 %v1879, %v2610
      %v2681 = vadd.f32 %v1880, %v2612
      %v2682 = vadd.f32 %v1881, %v2614
      %v2683 = vadd.f32 %v1882, %v2616
      %v2684 = vadd.f32 %v1883, %v2618
      %v2685 = vadd.f32 %v1884, %v2620
      %v2686 = vadd.f32 %v1885, %v2622
      %vm2687 = vcmask 392448
      %v2688 = vsel %vm2687, %v1230, -inf
      %2689 = vmax.xlane.f32.xlu0 %v2688
      %v2690 = vpop.xlane.xlu0 %2689
      %v2691 = vsel %vm2687, %v1232, -inf
      %2692 = vmax.xlane.f32.xlu0 %v2691
      %v2693 = vpop.xlane.xlu0 %2692
      %v2694 = vsel %vm2687, %v1235, -inf
      %2695 = vmax.xlane.f32.xlu0 %v2694
      %v2696 = vpop.xlane.xlu0 %2695
      %v2697 = vsel %vm2687, %v1237, -inf
      %2698 = vmax.xlane.f32.xlu0 %v2697
      %v2699 = vpop.xlane.xlu0 %2698
      %v2700 = vsel %vm2687, %v1240, -inf
      %2701 = vmax.xlane.f32.xlu0 %v2700
      %v2702 = vpop.xlane.xlu0 %2701
      %v2703 = vsel %vm2687, %v1242, -inf
      %2704 = vmax.xlane.f32.xlu0 %v2703
      %v2705 = vpop.xlane.xlu0 %2704
      %v2706 = vsel %vm2687, %v1245, -inf
      %2707 = vmax.xlane.f32.xlu0 %v2706
      %v2708 = vpop.xlane.xlu0 %2707
      %v2709 = vsel %vm2687, %v1247, -inf
      %2710 = vmax.xlane.f32.xlu0 %v2709
      %v2711 = vpop.xlane.xlu0 %2710
      %v2712 = vsel %vm2687, %v1250, -inf
      %2713 = vmax.xlane.f32.xlu0 %v2712
      %v2714 = vpop.xlane.xlu0 %2713
      %v2715 = vsel %vm2687, %v1252, -inf
      %2716 = vmax.xlane.f32.xlu0 %v2715
      %v2717 = vpop.xlane.xlu0 %2716
      %v2718 = vsel %vm2687, %v1255, -inf
      %2719 = vmax.xlane.f32.xlu0 %v2718
      %v2720 = vpop.xlane.xlu0 %2719
      %v2721 = vsel %vm2687, %v1257, -inf
      %2722 = vmax.xlane.f32.xlu0 %v2721
      %v2723 = vpop.xlane.xlu0 %2722
      %v2724 = vsel %vm2687, %v1260, -inf
      %2725 = vmax.xlane.f32.xlu0 %v2724
      %v2726 = vpop.xlane.xlu0 %2725
      %v2727 = vsel %vm2687, %v1262, -inf
      %2728 = vmax.xlane.f32.xlu0 %v2727
      %v2729 = vpop.xlane.xlu0 %2728
      %v2730 = vsel %vm2687, %v1265, -inf
      %2731 = vmax.xlane.f32.xlu0 %v2730
      %v2732 = vpop.xlane.xlu0 %2731
      %v2733 = vsel %vm2687, %v1267, -inf
      %2734 = vmax.xlane.f32.xlu0 %v2733
      %v2735 = vpop.xlane.xlu0 %2734
      %v2736 = vsel %vm2687, %v1270, -inf
      %2737 = vmax.xlane.f32.xlu0 %v2736
      %v2738 = vpop.xlane.xlu0 %2737
      %v2739 = vsel %vm2687, %v1272, -inf
      %2740 = vmax.xlane.f32.xlu0 %v2739
      %v2741 = vpop.xlane.xlu0 %2740
      %v2742 = vsel %vm2687, %v1275, -inf
      %2743 = vmax.xlane.f32.xlu0 %v2742
      %v2744 = vpop.xlane.xlu0 %2743
      %v2745 = vsel %vm2687, %v1277, -inf
      %2746 = vmax.xlane.f32.xlu0 %v2745
      %v2747 = vpop.xlane.xlu0 %2746
      %v2748 = vsel %vm2687, %v1280, -inf
      %2749 = vmax.xlane.f32.xlu0 %v2748
      %v2750 = vpop.xlane.xlu0 %2749
      %v2751 = vsel %vm2687, %v1282, -inf
      %2752 = vmax.xlane.f32.xlu0 %v2751
      %v2753 = vpop.xlane.xlu0 %2752
      %v2754 = vsel %vm2687, %v1285, -inf
      %2755 = vmax.xlane.f32.xlu0 %v2754
      %v2756 = vpop.xlane.xlu0 %2755
      %v2757 = vsel %vm2687, %v1287, -inf
      %2758 = vmax.xlane.f32.xlu0 %v2757
      %v2759 = vpop.xlane.xlu0 %2758
      %v2760 = vsel %vm2687, %v1290, -inf
      %2761 = vmax.xlane.f32.xlu0 %v2760
      %v2762 = vpop.xlane.xlu0 %2761
      %v2763 = vsel %vm2687, %v1292, -inf
      %2764 = vmax.xlane.f32.xlu0 %v2763
      %v2765 = vpop.xlane.xlu0 %2764
      %v2766 = vsel %vm2687, %v1295, -inf
      %2767 = vmax.xlane.f32.xlu0 %v2766
      %v2768 = vpop.xlane.xlu0 %2767
      %v2769 = vsel %vm2687, %v1297, -inf
      %2770 = vmax.xlane.f32.xlu0 %v2769
      %v2771 = vpop.xlane.xlu0 %2770
      %v2772 = vsel %vm2687, %v1300, -inf
      %2773 = vmax.xlane.f32.xlu0 %v2772
      %v2774 = vpop.xlane.xlu0 %2773
      %v2775 = vsel %vm2687, %v1302, -inf
      %2776 = vmax.xlane.f32.xlu0 %v2775
      %v2777 = vpop.xlane.xlu0 %2776
      %v2778 = vsel %vm2687, %v1305, -inf
      %2779 = vmax.xlane.f32.xlu0 %v2778
      %v2780 = vpop.xlane.xlu0 %2779
      %v2781 = vsel %vm2687, %v1307, -inf
      %2782 = vmax.xlane.f32.xlu0 %v2781
      %v2783 = vpop.xlane.xlu0 %2782
      %v2784 = vsub.f32 %v1230, %v2690
      %v2785 = vsub.f32 %v1232, %v2693
      %v2786 = vsub.f32 %v1235, %v2696
      %v2787 = vsub.f32 %v1237, %v2699
      %v2788 = vsub.f32 %v1240, %v2702
      %v2789 = vsub.f32 %v1242, %v2705
      %v2790 = vsub.f32 %v1245, %v2708
      %v2791 = vsub.f32 %v1247, %v2711
      %v2792 = vsub.f32 %v1250, %v2714
      %v2793 = vsub.f32 %v1252, %v2717
      %v2794 = vsub.f32 %v1255, %v2720
      %v2795 = vsub.f32 %v1257, %v2723
      %v2796 = vsub.f32 %v1260, %v2726
      %v2797 = vsub.f32 %v1262, %v2729
      %v2798 = vsub.f32 %v1265, %v2732
      %v2799 = vsub.f32 %v1267, %v2735
      %v2800 = vsub.f32 %v1270, %v2738
      %v2801 = vsub.f32 %v1272, %v2741
      %v2802 = vsub.f32 %v1275, %v2744
      %v2803 = vsub.f32 %v1277, %v2747
      %v2804 = vsub.f32 %v1280, %v2750
      %v2805 = vsub.f32 %v1282, %v2753
      %v2806 = vsub.f32 %v1285, %v2756
      %v2807 = vsub.f32 %v1287, %v2759
      %v2808 = vsub.f32 %v1290, %v2762
      %v2809 = vsub.f32 %v1292, %v2765
      %v2810 = vsub.f32 %v1295, %v2768
      %v2811 = vsub.f32 %v1297, %v2771
      %v2812 = vsub.f32 %v1300, %v2774
      %v2813 = vsub.f32 %v1302, %v2777
      %v2814 = vsub.f32 %v1305, %v2780
      %v2815 = vsub.f32 %v1307, %v2783
      %v2816 = vmul.f32 %v2784, 1.442695
      %v2817 = vpow.pop %v2816
      %v2818 = vmul.f32 %v2785, 1.442695
      %v2819 = vpow.pop %v2818
      %v2820 = vmul.f32 %v2786, 1.442695
      %v2821 = vpow.pop %v2820
      %v2822 = vmul.f32 %v2787, 1.442695
      %v2823 = vpow.pop %v2822
      %v2824 = vmul.f32 %v2788, 1.442695
      %v2825 = vpow.pop %v2824
      %v2826 = vmul.f32 %v2789, 1.442695
      %v2827 = vpow.pop %v2826
      %v2828 = vmul.f32 %v2790, 1.442695
      %v2829 = vpow.pop %v2828
      %v2830 = vmul.f32 %v2791, 1.442695
      %v2831 = vpow.pop %v2830
      %v2832 = vmul.f32 %v2792, 1.442695
      %v2833 = vpow.pop %v2832
      %v2834 = vmul.f32 %v2793, 1.442695
      %v2835 = vpow.pop %v2834
      %v2836 = vmul.f32 %v2794, 1.442695
      %v2837 = vpow.pop %v2836
      %v2838 = vmul.f32 %v2795, 1.442695
      %v2839 = vpow.pop %v2838
      %v2840 = vmul.f32 %v2796, 1.442695
      %v2841 = vpow.pop %v2840
      %v2842 = vmul.f32 %v2797, 1.442695
      %v2843 = vpow.pop %v2842
      %v2844 = vmul.f32 %v2798, 1.442695
      %v2845 = vpow.pop %v2844
      %v2846 = vmul.f32 %v2799, 1.442695
      %v2847 = vpow.pop %v2846
      %v2848 = vmul.f32 %v2800, 1.442695
      %v2849 = vpow.pop %v2848
      %v2850 = vmul.f32 %v2801, 1.442695
      %v2851 = vpow.pop %v2850
      %v2852 = vmul.f32 %v2802, 1.442695
      %v2853 = vpow.pop %v2852
      %v2854 = vmul.f32 %v2803, 1.442695
      %v2855 = vpow.pop %v2854
      %v2856 = vmul.f32 %v2804, 1.442695
      %v2857 = vpow.pop %v2856
      %v2858 = vmul.f32 %v2805, 1.442695
      %v2859 = vpow.pop %v2858
      %v2860 = vmul.f32 %v2806, 1.442695
      %v2861 = vpow.pop %v2860
      %v2862 = vmul.f32 %v2807, 1.442695
      %v2863 = vpow.pop %v2862
      %v2864 = vmul.f32 %v2808, 1.442695
      %v2865 = vpow.pop %v2864
      %v2866 = vmul.f32 %v2809, 1.442695
      %v2867 = vpow.pop %v2866
      %v2868 = vmul.f32 %v2810, 1.442695
      %v2869 = vpow.pop %v2868
      %v2870 = vmul.f32 %v2811, 1.442695
      %v2871 = vpow.pop %v2870
      %v2872 = vmul.f32 %v2812, 1.442695
      %v2873 = vpow.pop %v2872
      %v2874 = vmul.f32 %v2813, 1.442695
      %v2875 = vpow.pop %v2874
      %v2876 = vmul.f32 %v2814, 1.442695
      %v2877 = vpow.pop %v2876
      %v2878 = vmul.f32 %v2815, 1.442695
      %v2879 = vpow.pop %v2878
      %2912 = vrot.lane.b32.xlu0 %v2817, 96
      %v2913 = vpop.permute.xlu0 %2912
      %2914 = vrot.lane.b32.xlu0 %v2819, 96
      %v2915 = vpop.permute.xlu0 %2914
      %2916 = vrot.lane.b32.xlu0 %v2821, 96
      %v2917 = vpop.permute.xlu0 %2916
      %2918 = vrot.lane.b32.xlu0 %v2823, 96
      %v2919 = vpop.permute.xlu0 %2918
      %2920 = vrot.lane.b32.xlu0 %v2825, 96
      %v2921 = vpop.permute.xlu0 %2920
      %2922 = vrot.lane.b32.xlu0 %v2827, 96
      %v2923 = vpop.permute.xlu0 %2922
      %2924 = vrot.lane.b32.xlu0 %v2829, 96
      %v2925 = vpop.permute.xlu0 %2924
      %2926 = vrot.lane.b32.xlu0 %v2831, 96
      %v2927 = vpop.permute.xlu0 %2926
      %2928 = vrot.lane.b32.xlu0 %v2833, 96
      %v2929 = vpop.permute.xlu0 %2928
      %2930 = vrot.lane.b32.xlu0 %v2835, 96
      %v2931 = vpop.permute.xlu0 %2930
      %2932 = vrot.lane.b32.xlu0 %v2837, 96
      %v2933 = vpop.permute.xlu0 %2932
      %2934 = vrot.lane.b32.xlu0 %v2839, 96
      %v2935 = vpop.permute.xlu0 %2934
      %2936 = vrot.lane.b32.xlu0 %v2841, 96
      %v2937 = vpop.permute.xlu0 %2936
      %2938 = vrot.lane.b32.xlu0 %v2843, 96
      %v2939 = vpop.permute.xlu0 %2938
      %2940 = vrot.lane.b32.xlu0 %v2845, 96
      %v2941 = vpop.permute.xlu0 %2940
      %2942 = vrot.lane.b32.xlu0 %v2847, 96
      %v2943 = vpop.permute.xlu0 %2942
      %2944 = vrot.lane.b32.xlu0 %v2849, 96
      %v2945 = vpop.permute.xlu0 %2944
      %2946 = vrot.lane.b32.xlu0 %v2851, 96
      %v2947 = vpop.permute.xlu0 %2946
      %2948 = vrot.lane.b32.xlu0 %v2853, 96
      %v2949 = vpop.permute.xlu0 %2948
      %2950 = vrot.lane.b32.xlu0 %v2855, 96
      %v2951 = vpop.permute.xlu0 %2950
      %2952 = vrot.lane.b32.xlu0 %v2857, 96
      %v2953 = vpop.permute.xlu0 %2952
      %2954 = vrot.lane.b32.xlu0 %v2859, 96
      %v2955 = vpop.permute.xlu0 %2954
      %2956 = vrot.lane.b32.xlu0 %v2861, 96
      %v2957 = vpop.permute.xlu0 %2956
      %2958 = vrot.lane.b32.xlu0 %v2863, 96
      %v2959 = vpop.permute.xlu0 %2958
      %2960 = vrot.lane.b32.xlu0 %v2865, 96
      %v2961 = vpop.permute.xlu0 %2960
      %2962 = vrot.lane.b32.xlu0 %v2867, 96
      %v2963 = vpop.permute.xlu0 %2962
      %2964 = vrot.lane.b32.xlu0 %v2869, 96
      %v2965 = vpop.permute.xlu0 %2964
      %2966 = vrot.lane.b32.xlu0 %v2871, 96
      %v2967 = vpop.permute.xlu0 %2966
      %2968 = vrot.lane.b32.xlu0 %v2873, 96
      %v2969 = vpop.permute.xlu0 %2968
      %2970 = vrot.lane.b32.xlu0 %v2875, 96
      %v2971 = vpop.permute.xlu0 %2970
      %2972 = vrot.lane.b32.xlu0 %v2877, 96
      %v2973 = vpop.permute.xlu0 %2972
      %2974 = vrot.lane.b32.xlu0 %v2879, 96
      %v2975 = vpop.permute.xlu0 %2974
      %v3008 = vsel %vm1309, %v2913, 0.0
      %3009 = vadd.xlane.f32.xlu0 %v3008
      %v3010 = vpop.xlane.xlu0 %3009
      %v3011 = vsel %vm1309, %v2915, 0.0
      %3012 = vadd.xlane.f32.xlu0 %v3011
      %v3013 = vpop.xlane.xlu0 %3012
      %v3014 = vsel %vm1309, %v2917, 0.0
      %3015 = vadd.xlane.f32.xlu0 %v3014
      %v3016 = vpop.xlane.xlu0 %3015
      %v3017 = vsel %vm1309, %v2919, 0.0
      %3018 = vadd.xlane.f32.xlu0 %v3017
      %v3019 = vpop.xlane.xlu0 %3018
      %v3020 = vsel %vm1309, %v2921, 0.0
      %3021 = vadd.xlane.f32.xlu0 %v3020
      %v3022 = vpop.xlane.xlu0 %3021
      %v3023 = vsel %vm1309, %v2923, 0.0
      %3024 = vadd.xlane.f32.xlu0 %v3023
      %v3025 = vpop.xlane.xlu0 %3024
      %v3026 = vsel %vm1309, %v2925, 0.0
      %3027 = vadd.xlane.f32.xlu0 %v3026
      %v3028 = vpop.xlane.xlu0 %3027
      %v3029 = vsel %vm1309, %v2927, 0.0
      %3030 = vadd.xlane.f32.xlu0 %v3029
      %v3031 = vpop.xlane.xlu0 %3030
      %v3032 = vsel %vm1309, %v2929, 0.0
      %3033 = vadd.xlane.f32.xlu0 %v3032
      %v3034 = vpop.xlane.xlu0 %3033
      %v3035 = vsel %vm1309, %v2931, 0.0
      %3036 = vadd.xlane.f32.xlu0 %v3035
      %v3037 = vpop.xlane.xlu0 %3036
      %v3038 = vsel %vm1309, %v2933, 0.0
      %3039 = vadd.xlane.f32.xlu0 %v3038
      %v3040 = vpop.xlane.xlu0 %3039
      %v3041 = vsel %vm1309, %v2935, 0.0
      %3042 = vadd.xlane.f32.xlu0 %v3041
      %v3043 = vpop.xlane.xlu0 %3042
      %v3044 = vsel %vm1309, %v2937, 0.0
      %3045 = vadd.xlane.f32.xlu0 %v3044
      %v3046 = vpop.xlane.xlu0 %3045
      %v3047 = vsel %vm1309, %v2939, 0.0
      %3048 = vadd.xlane.f32.xlu0 %v3047
      %v3049 = vpop.xlane.xlu0 %3048
      %v3050 = vsel %vm1309, %v2941, 0.0
      %3051 = vadd.xlane.f32.xlu0 %v3050
      %v3052 = vpop.xlane.xlu0 %3051
      %v3053 = vsel %vm1309, %v2943, 0.0
      %3054 = vadd.xlane.f32.xlu0 %v3053
      %v3055 = vpop.xlane.xlu0 %3054
      %v3056 = vsel %vm1309, %v2945, 0.0
      %3057 = vadd.xlane.f32.xlu0 %v3056
      %v3058 = vpop.xlane.xlu0 %3057
      %v3059 = vsel %vm1309, %v2947, 0.0
      %3060 = vadd.xlane.f32.xlu0 %v3059
      %v3061 = vpop.xlane.xlu0 %3060
      %v3062 = vsel %vm1309, %v2949, 0.0
      %3063 = vadd.xlane.f32.xlu0 %v3062
      %v3064 = vpop.xlane.xlu0 %3063
      %v3065 = vsel %vm1309, %v2951, 0.0
      %3066 = vadd.xlane.f32.xlu0 %v3065
      %v3067 = vpop.xlane.xlu0 %3066
      %v3068 = vsel %vm1309, %v2953, 0.0
      %3069 = vadd.xlane.f32.xlu0 %v3068
      %v3070 = vpop.xlane.xlu0 %3069
      %v3071 = vsel %vm1309, %v2955, 0.0
      %3072 = vadd.xlane.f32.xlu0 %v3071
      %v3073 = vpop.xlane.xlu0 %3072
      %v3074 = vsel %vm1309, %v2957, 0.0
      %3075 = vadd.xlane.f32.xlu0 %v3074
      %v3076 = vpop.xlane.xlu0 %3075
      %v3077 = vsel %vm1309, %v2959, 0.0
      %3078 = vadd.xlane.f32.xlu0 %v3077
      %v3079 = vpop.xlane.xlu0 %3078
      %v3080 = vsel %vm1309, %v2961, 0.0
      %3081 = vadd.xlane.f32.xlu0 %v3080
      %v3082 = vpop.xlane.xlu0 %3081
      %v3083 = vsel %vm1309, %v2963, 0.0
      %3084 = vadd.xlane.f32.xlu0 %v3083
      %v3085 = vpop.xlane.xlu0 %3084
      %v3086 = vsel %vm1309, %v2965, 0.0
      %3087 = vadd.xlane.f32.xlu0 %v3086
      %v3088 = vpop.xlane.xlu0 %3087
      %v3089 = vsel %vm1309, %v2967, 0.0
      %3090 = vadd.xlane.f32.xlu0 %v3089
      %v3091 = vpop.xlane.xlu0 %3090
      %v3092 = vsel %vm1309, %v2969, 0.0
      %3093 = vadd.xlane.f32.xlu0 %v3092
      %v3094 = vpop.xlane.xlu0 %3093
      %v3095 = vsel %vm1309, %v2971, 0.0
      %3096 = vadd.xlane.f32.xlu0 %v3095
      %v3097 = vpop.xlane.xlu0 %3096
      %v3098 = vsel %vm1309, %v2973, 0.0
      %3099 = vadd.xlane.f32.xlu0 %v3098
      %v3100 = vpop.xlane.xlu0 %3099
      %v3101 = vsel %vm1309, %v2975, 0.0
      %3102 = vadd.xlane.f32.xlu0 %v3101
      %v3103 = vpop.xlane.xlu0 %3102
      %v3104 = vrcp.pop %v3010
      %v3105 = vrcp.pop %v3013
      %v3106 = vrcp.pop %v3016
      %v3107 = vrcp.pop %v3019
      %v3108 = vrcp.pop %v3022
      %v3109 = vrcp.pop %v3025
      %v3110 = vrcp.pop %v3028
      %v3111 = vrcp.pop %v3031
      %v3112 = vrcp.pop %v3034
      %v3113 = vrcp.pop %v3037
      %v3114 = vrcp.pop %v3040
      %v3115 = vrcp.pop %v3043
      %v3116 = vrcp.pop %v3046
      %v3117 = vrcp.pop %v3049
      %v3118 = vrcp.pop %v3052
      %v3119 = vrcp.pop %v3055
      %v3120 = vrcp.pop %v3058
      %v3121 = vrcp.pop %v3061
      %v3122 = vrcp.pop %v3064
      %v3123 = vrcp.pop %v3067
      %v3124 = vrcp.pop %v3070
      %v3125 = vrcp.pop %v3073
      %v3126 = vrcp.pop %v3076
      %v3127 = vrcp.pop %v3079
      %v3128 = vrcp.pop %v3082
      %v3129 = vrcp.pop %v3085
      %v3130 = vrcp.pop %v3088
      %v3131 = vrcp.pop %v3091
      %v3132 = vrcp.pop %v3094
      %v3133 = vrcp.pop %v3097
      %v3134 = vrcp.pop %v3100
      %v3135 = vrcp.pop %v3103
      %v3136 = vmul.f32 %v2817, %v3104
      %v3137 = vmul.f32 %v2819, %v3105
      %v3138 = vmul.f32 %v2821, %v3106
      %v3139 = vmul.f32 %v2823, %v3107
      %v3140 = vmul.f32 %v2825, %v3108
      %v3141 = vmul.f32 %v2827, %v3109
      %v3142 = vmul.f32 %v2829, %v3110
      %v3143 = vmul.f32 %v2831, %v3111
      %v3144 = vmul.f32 %v2833, %v3112
      %v3145 = vmul.f32 %v2835, %v3113
      %v3146 = vmul.f32 %v2837, %v3114
      %v3147 = vmul.f32 %v2839, %v3115
      %v3148 = vmul.f32 %v2841, %v3116
      %v3149 = vmul.f32 %v2843, %v3117
      %v3150 = vmul.f32 %v2845, %v3118
      %v3151 = vmul.f32 %v2847, %v3119
      %v3152 = vmul.f32 %v2849, %v3120
      %v3153 = vmul.f32 %v2851, %v3121
      %v3154 = vmul.f32 %v2853, %v3122
      %v3155 = vmul.f32 %v2855, %v3123
      %v3156 = vmul.f32 %v2857, %v3124
      %v3157 = vmul.f32 %v2859, %v3125
      %v3158 = vmul.f32 %v2861, %v3126
      %v3159 = vmul.f32 %v2863, %v3127
      %v3160 = vmul.f32 %v2865, %v3128
      %v3161 = vmul.f32 %v2867, %v3129
      %v3162 = vmul.f32 %v2869, %v3130
      %v3163 = vmul.f32 %v2871, %v3131
      %v3164 = vmul.f32 %v2873, %v3132
      %v3165 = vmul.f32 %v2875, %v3133
      %v3166 = vmul.f32 %v2877, %v3134
      %v3167 = vmul.f32 %v2879, %v3135
      %3168 = vset.pattern.permute.xlu0 2
      %3169 = vperm.xlu0 %3168, %v1104
      %v3170 = vpop.permute.xlu0 %3169
      %3172 = vset.pattern.permute.xlu0 2
      %3173 = vperm.xlu0 %3172, %v1105
      %v3174 = vpop.permute.xlu0 %3173
      %3176 = vset.pattern.permute.xlu0 2
      %3177 = vperm.xlu0 %3176, %v1106
      %v3178 = vpop.permute.xlu0 %3177
      %3180 = vset.pattern.permute.xlu0 2
      %3181 = vperm.xlu0 %3180, %v1107
      %v3182 = vpop.permute.xlu0 %3181
      %3184 = vset.pattern.permute.xlu0 2
      %3185 = vperm.xlu0 %3184, %v1108
      %v3186 = vpop.permute.xlu0 %3185
      %3188 = vset.pattern.permute.xlu0 2
      %3189 = vperm.xlu0 %3188, %v1109
      %v3190 = vpop.permute.xlu0 %3189
      %3192 = vset.pattern.permute.xlu0 2
      %3193 = vperm.xlu0 %3192, %v1110
      %v3194 = vpop.permute.xlu0 %3193
      %3196 = vset.pattern.permute.xlu0 2
      %3197 = vperm.xlu0 %3196, %v1111
      %v3198 = vpop.permute.xlu0 %3197
      %3200 = vset.pattern.permute.xlu0 2
      %3201 = vperm.xlu0 %3200, %v1112
      %v3202 = vpop.permute.xlu0 %3201
      %3204 = vset.pattern.permute.xlu0 2
      %3205 = vperm.xlu0 %3204, %v1113
      %v3206 = vpop.permute.xlu0 %3205
      %3208 = vset.pattern.permute.xlu0 2
      %3209 = vperm.xlu0 %3208, %v1114
      %v3210 = vpop.permute.xlu0 %3209
      %3212 = vset.pattern.permute.xlu0 2
      %3213 = vperm.xlu0 %3212, %v1115
      %v3214 = vpop.permute.xlu0 %3213
      %3216 = vset.pattern.permute.xlu0 2
      %3217 = vperm.xlu0 %3216, %v1116
      %v3218 = vpop.permute.xlu0 %3217
      %3220 = vset.pattern.permute.xlu0 2
      %3221 = vperm.xlu0 %3220, %v1117
      %v3222 = vpop.permute.xlu0 %3221
      %3224 = vset.pattern.permute.xlu0 2
      %3225 = vperm.xlu0 %3224, %v1118
      %v3226 = vpop.permute.xlu0 %3225
      %3228 = vset.pattern.permute.xlu0 2
      %3229 = vperm.xlu0 %3228, %v1119
      %v3230 = vpop.permute.xlu0 %3229
      %3232 = vset.pattern.permute.xlu0 2
      %3233 = vperm.xlu0 %3232, %v1120
      %v3234 = vpop.permute.xlu0 %3233
      %3236 = vset.pattern.permute.xlu0 2
      %3237 = vperm.xlu0 %3236, %v1121
      %v3238 = vpop.permute.xlu0 %3237
      %3240 = vset.pattern.permute.xlu0 2
      %3241 = vperm.xlu0 %3240, %v1122
      %v3242 = vpop.permute.xlu0 %3241
      %3244 = vset.pattern.permute.xlu0 2
      %3245 = vperm.xlu0 %3244, %v1123
      %v3246 = vpop.permute.xlu0 %3245
      %3248 = vset.pattern.permute.xlu0 2
      %3249 = vperm.xlu0 %3248, %v1124
      %v3250 = vpop.permute.xlu0 %3249
      %3252 = vset.pattern.permute.xlu0 2
      %3253 = vperm.xlu0 %3252, %v1125
      %v3254 = vpop.permute.xlu0 %3253
      %3256 = vset.pattern.permute.xlu0 2
      %3257 = vperm.xlu0 %3256, %v1126
      %v3258 = vpop.permute.xlu0 %3257
      %3260 = vset.pattern.permute.xlu0 2
      %3261 = vperm.xlu0 %3260, %v1127
      %v3262 = vpop.permute.xlu0 %3261
      %3264 = vset.pattern.permute.xlu0 2
      %3265 = vperm.xlu0 %3264, %v1128
      %v3266 = vpop.permute.xlu0 %3265
      %3268 = vset.pattern.permute.xlu0 2
      %3269 = vperm.xlu0 %3268, %v1129
      %v3270 = vpop.permute.xlu0 %3269
      %3272 = vset.pattern.permute.xlu0 2
      %3273 = vperm.xlu0 %3272, %v1130
      %v3274 = vpop.permute.xlu0 %3273
      %3276 = vset.pattern.permute.xlu0 2
      %3277 = vperm.xlu0 %3276, %v1131
      %v3278 = vpop.permute.xlu0 %3277
      %3280 = vset.pattern.permute.xlu0 2
      %3281 = vperm.xlu0 %3280, %v1132
      %v3282 = vpop.permute.xlu0 %3281
      %3284 = vset.pattern.permute.xlu0 2
      %3285 = vperm.xlu0 %3284, %v1133
      %v3286 = vpop.permute.xlu0 %3285
      %3288 = vset.pattern.permute.xlu0 2
      %3289 = vperm.xlu0 %3288, %v1134
      %v3290 = vpop.permute.xlu0 %3289
      %3292 = vset.pattern.permute.xlu0 2
      %3293 = vperm.xlu0 %3292, %v1135
      %v3294 = vpop.permute.xlu0 %3293
      %v3296 = vmul.f32 %v3136, %v3170
      %v3297 = vmul.f32 %v3137, %v3174
      %v3298 = vmul.f32 %v3138, %v3178
      %v3299 = vmul.f32 %v3139, %v3182
      %v3300 = vmul.f32 %v3140, %v3186
      %v3301 = vmul.f32 %v3141, %v3190
      %v3302 = vmul.f32 %v3142, %v3194
      %v3303 = vmul.f32 %v3143, %v3198
      %v3304 = vmul.f32 %v3144, %v3202
      %v3305 = vmul.f32 %v3145, %v3206
      %v3306 = vmul.f32 %v3146, %v3210
      %v3307 = vmul.f32 %v3147, %v3214
      %v3308 = vmul.f32 %v3148, %v3218
      %v3309 = vmul.f32 %v3149, %v3222
      %v3310 = vmul.f32 %v3150, %v3226
      %v3311 = vmul.f32 %v3151, %v3230
      %v3312 = vmul.f32 %v3152, %v3234
      %v3313 = vmul.f32 %v3153, %v3238
      %v3314 = vmul.f32 %v3154, %v3242
      %v3315 = vmul.f32 %v3155, %v3246
      %v3316 = vmul.f32 %v3156, %v3250
      %v3317 = vmul.f32 %v3157, %v3254
      %v3318 = vmul.f32 %v3158, %v3258
      %v3319 = vmul.f32 %v3159, %v3262
      %v3320 = vmul.f32 %v3160, %v3266
      %v3321 = vmul.f32 %v3161, %v3270
      %v3322 = vmul.f32 %v3162, %v3274
      %v3323 = vmul.f32 %v3163, %v3278
      %v3324 = vmul.f32 %v3164, %v3282
      %v3325 = vmul.f32 %v3165, %v3286
      %v3326 = vmul.f32 %v3166, %v3290
      %v3327 = vmul.f32 %v3167, %v3294
      %3360 = vrot.lane.b32.xlu0 %v3296, 96
      %v3361 = vpop.permute.xlu0 %3360
      %3362 = vrot.lane.b32.xlu0 %v3297, 96
      %v3363 = vpop.permute.xlu0 %3362
      %3364 = vrot.lane.b32.xlu0 %v3298, 96
      %v3365 = vpop.permute.xlu0 %3364
      %3366 = vrot.lane.b32.xlu0 %v3299, 96
      %v3367 = vpop.permute.xlu0 %3366
      %3368 = vrot.lane.b32.xlu0 %v3300, 96
      %v3369 = vpop.permute.xlu0 %3368
      %3370 = vrot.lane.b32.xlu0 %v3301, 96
      %v3371 = vpop.permute.xlu0 %3370
      %3372 = vrot.lane.b32.xlu0 %v3302, 96
      %v3373 = vpop.permute.xlu0 %3372
      %3374 = vrot.lane.b32.xlu0 %v3303, 96
      %v3375 = vpop.permute.xlu0 %3374
      %3376 = vrot.lane.b32.xlu0 %v3304, 96
      %v3377 = vpop.permute.xlu0 %3376
      %3378 = vrot.lane.b32.xlu0 %v3305, 96
      %v3379 = vpop.permute.xlu0 %3378
      %3380 = vrot.lane.b32.xlu0 %v3306, 96
      %v3381 = vpop.permute.xlu0 %3380
      %3382 = vrot.lane.b32.xlu0 %v3307, 96
      %v3383 = vpop.permute.xlu0 %3382
      %3384 = vrot.lane.b32.xlu0 %v3308, 96
      %v3385 = vpop.permute.xlu0 %3384
      %3386 = vrot.lane.b32.xlu0 %v3309, 96
      %v3387 = vpop.permute.xlu0 %3386
      %3388 = vrot.lane.b32.xlu0 %v3310, 96
      %v3389 = vpop.permute.xlu0 %3388
      %3390 = vrot.lane.b32.xlu0 %v3311, 96
      %v3391 = vpop.permute.xlu0 %3390
      %3392 = vrot.lane.b32.xlu0 %v3312, 96
      %v3393 = vpop.permute.xlu0 %3392
      %3394 = vrot.lane.b32.xlu0 %v3313, 96
      %v3395 = vpop.permute.xlu0 %3394
      %3396 = vrot.lane.b32.xlu0 %v3314, 96
      %v3397 = vpop.permute.xlu0 %3396
      %3398 = vrot.lane.b32.xlu0 %v3315, 96
      %v3399 = vpop.permute.xlu0 %3398
      %3400 = vrot.lane.b32.xlu0 %v3316, 96
      %v3401 = vpop.permute.xlu0 %3400
      %3402 = vrot.lane.b32.xlu0 %v3317, 96
      %v3403 = vpop.permute.xlu0 %3402
      %3404 = vrot.lane.b32.xlu0 %v3318, 96
      %v3405 = vpop.permute.xlu0 %3404
      %3406 = vrot.lane.b32.xlu0 %v3319, 96
      %v3407 = vpop.permute.xlu0 %3406
      %3408 = vrot.lane.b32.xlu0 %v3320, 96
      %v3409 = vpop.permute.xlu0 %3408
      %3410 = vrot.lane.b32.xlu0 %v3321, 96
      %v3411 = vpop.permute.xlu0 %3410
      %3412 = vrot.lane.b32.xlu0 %v3322, 96
      %v3413 = vpop.permute.xlu0 %3412
      %3414 = vrot.lane.b32.xlu0 %v3323, 96
      %v3415 = vpop.permute.xlu0 %3414
      %3416 = vrot.lane.b32.xlu0 %v3324, 96
      %v3417 = vpop.permute.xlu0 %3416
      %3418 = vrot.lane.b32.xlu0 %v3325, 96
      %v3419 = vpop.permute.xlu0 %3418
      %3420 = vrot.lane.b32.xlu0 %v3326, 96
      %v3421 = vpop.permute.xlu0 %3420
      %3422 = vrot.lane.b32.xlu0 %v3327, 96
      %v3423 = vpop.permute.xlu0 %3422
      %v3456 = vadd.f32 %v2655, %v3361
      %v3457 = vadd.f32 %v2656, %v3363
      %v3458 = vadd.f32 %v2657, %v3365
      %v3459 = vadd.f32 %v2658, %v3367
      %v3460 = vadd.f32 %v2659, %v3369
      %v3461 = vadd.f32 %v2660, %v3371
      %v3462 = vadd.f32 %v2661, %v3373
      %v3463 = vadd.f32 %v2662, %v3375
      %v3464 = vadd.f32 %v2663, %v3377
      %v3465 = vadd.f32 %v2664, %v3379
      %v3466 = vadd.f32 %v2665, %v3381
      %v3467 = vadd.f32 %v2666, %v3383
      %v3468 = vadd.f32 %v2667, %v3385
      %v3469 = vadd.f32 %v2668, %v3387
      %v3470 = vadd.f32 %v2669, %v3389
      %v3471 = vadd.f32 %v2670, %v3391
      %v3472 = vadd.f32 %v2671, %v3393
      %v3473 = vadd.f32 %v2672, %v3395
      %v3474 = vadd.f32 %v2673, %v3397
      %v3475 = vadd.f32 %v2674, %v3399
      %v3476 = vadd.f32 %v2675, %v3401
      %v3477 = vadd.f32 %v2676, %v3403
      %v3478 = vadd.f32 %v2677, %v3405
      %v3479 = vadd.f32 %v2678, %v3407
      %v3480 = vadd.f32 %v2679, %v3409
      %v3481 = vadd.f32 %v2680, %v3411
      %v3482 = vadd.f32 %v2681, %v3413
      %v3483 = vadd.f32 %v2682, %v3415
      %v3484 = vadd.f32 %v2683, %v3417
      %v3485 = vadd.f32 %v2684, %v3419
      %v3486 = vadd.f32 %v2685, %v3421
      %v3487 = vadd.f32 %v2686, %v3423
      %vm3488 = vcmask 523648
      %v3489 = vsel %vm3488, %v1230, -inf
      %3490 = vmax.xlane.f32.xlu0 %v3489
      %v3491 = vpop.xlane.xlu0 %3490
      %v3492 = vsel %vm3488, %v1232, -inf
      %3493 = vmax.xlane.f32.xlu0 %v3492
      %v3494 = vpop.xlane.xlu0 %3493
      %v3495 = vsel %vm3488, %v1235, -inf
      %3496 = vmax.xlane.f32.xlu0 %v3495
      %v3497 = vpop.xlane.xlu0 %3496
      %v3498 = vsel %vm3488, %v1237, -inf
      %3499 = vmax.xlane.f32.xlu0 %v3498
      %v3500 = vpop.xlane.xlu0 %3499
      %v3501 = vsel %vm3488, %v1240, -inf
      %3502 = vmax.xlane.f32.xlu0 %v3501
      %v3503 = vpop.xlane.xlu0 %3502
      %v3504 = vsel %vm3488, %v1242, -inf
      %3505 = vmax.xlane.f32.xlu0 %v3504
      %v3506 = vpop.xlane.xlu0 %3505
      %v3507 = vsel %vm3488, %v1245, -inf
      %3508 = vmax.xlane.f32.xlu0 %v3507
      %v3509 = vpop.xlane.xlu0 %3508
      %v3510 = vsel %vm3488, %v1247, -inf
      %3511 = vmax.xlane.f32.xlu0 %v3510
      %v3512 = vpop.xlane.xlu0 %3511
      %v3513 = vsel %vm3488, %v1250, -inf
      %3514 = vmax.xlane.f32.xlu0 %v3513
      %v3515 = vpop.xlane.xlu0 %3514
      %v3516 = vsel %vm3488, %v1252, -inf
      %3517 = vmax.xlane.f32.xlu0 %v3516
      %v3518 = vpop.xlane.xlu0 %3517
      %v3519 = vsel %vm3488, %v1255, -inf
      %3520 = vmax.xlane.f32.xlu0 %v3519
      %v3521 = vpop.xlane.xlu0 %3520
      %v3522 = vsel %vm3488, %v1257, -inf
      %3523 = vmax.xlane.f32.xlu0 %v3522
      %v3524 = vpop.xlane.xlu0 %3523
      %v3525 = vsel %vm3488, %v1260, -inf
      %3526 = vmax.xlane.f32.xlu0 %v3525
      %v3527 = vpop.xlane.xlu0 %3526
      %v3528 = vsel %vm3488, %v1262, -inf
      %3529 = vmax.xlane.f32.xlu0 %v3528
      %v3530 = vpop.xlane.xlu0 %3529
      %v3531 = vsel %vm3488, %v1265, -inf
      %3532 = vmax.xlane.f32.xlu0 %v3531
      %v3533 = vpop.xlane.xlu0 %3532
      %v3534 = vsel %vm3488, %v1267, -inf
      %3535 = vmax.xlane.f32.xlu0 %v3534
      %v3536 = vpop.xlane.xlu0 %3535
      %v3537 = vsel %vm3488, %v1270, -inf
      %3538 = vmax.xlane.f32.xlu0 %v3537
      %v3539 = vpop.xlane.xlu0 %3538
      %v3540 = vsel %vm3488, %v1272, -inf
      %3541 = vmax.xlane.f32.xlu0 %v3540
      %v3542 = vpop.xlane.xlu0 %3541
      %v3543 = vsel %vm3488, %v1275, -inf
      %3544 = vmax.xlane.f32.xlu0 %v3543
      %v3545 = vpop.xlane.xlu0 %3544
      %v3546 = vsel %vm3488, %v1277, -inf
      %3547 = vmax.xlane.f32.xlu0 %v3546
      %v3548 = vpop.xlane.xlu0 %3547
      %v3549 = vsel %vm3488, %v1280, -inf
      %3550 = vmax.xlane.f32.xlu0 %v3549
      %v3551 = vpop.xlane.xlu0 %3550
      %v3552 = vsel %vm3488, %v1282, -inf
      %3553 = vmax.xlane.f32.xlu0 %v3552
      %v3554 = vpop.xlane.xlu0 %3553
      %v3555 = vsel %vm3488, %v1285, -inf
      %3556 = vmax.xlane.f32.xlu0 %v3555
      %v3557 = vpop.xlane.xlu0 %3556
      %v3558 = vsel %vm3488, %v1287, -inf
      %3559 = vmax.xlane.f32.xlu0 %v3558
      %v3560 = vpop.xlane.xlu0 %3559
      %v3561 = vsel %vm3488, %v1290, -inf
      %3562 = vmax.xlane.f32.xlu0 %v3561
      %v3563 = vpop.xlane.xlu0 %3562
      %v3564 = vsel %vm3488, %v1292, -inf
      %3565 = vmax.xlane.f32.xlu0 %v3564
      %v3566 = vpop.xlane.xlu0 %3565
      %v3567 = vsel %vm3488, %v1295, -inf
      %3568 = vmax.xlane.f32.xlu0 %v3567
      %v3569 = vpop.xlane.xlu0 %3568
      %v3570 = vsel %vm3488, %v1297, -inf
      %3571 = vmax.xlane.f32.xlu0 %v3570
      %v3572 = vpop.xlane.xlu0 %3571
      %v3573 = vsel %vm3488, %v1300, -inf
      %3574 = vmax.xlane.f32.xlu0 %v3573
      %v3575 = vpop.xlane.xlu0 %3574
      %v3576 = vsel %vm3488, %v1302, -inf
      %3577 = vmax.xlane.f32.xlu0 %v3576
      %v3578 = vpop.xlane.xlu0 %3577
      %v3579 = vsel %vm3488, %v1305, -inf
      %3580 = vmax.xlane.f32.xlu0 %v3579
      %v3581 = vpop.xlane.xlu0 %3580
      %v3582 = vsel %vm3488, %v1307, -inf
      %3583 = vmax.xlane.f32.xlu0 %v3582
      %v3584 = vpop.xlane.xlu0 %3583
      %v3585 = vsub.f32 %v1230, %v3491
      %v3586 = vsub.f32 %v1232, %v3494
      %v3587 = vsub.f32 %v1235, %v3497
      %v3588 = vsub.f32 %v1237, %v3500
      %v3589 = vsub.f32 %v1240, %v3503
      %v3590 = vsub.f32 %v1242, %v3506
      %v3591 = vsub.f32 %v1245, %v3509
      %v3592 = vsub.f32 %v1247, %v3512
      %v3593 = vsub.f32 %v1250, %v3515
      %v3594 = vsub.f32 %v1252, %v3518
      %v3595 = vsub.f32 %v1255, %v3521
      %v3596 = vsub.f32 %v1257, %v3524
      %v3597 = vsub.f32 %v1260, %v3527
      %v3598 = vsub.f32 %v1262, %v3530
      %v3599 = vsub.f32 %v1265, %v3533
      %v3600 = vsub.f32 %v1267, %v3536
      %v3601 = vsub.f32 %v1270, %v3539
      %v3602 = vsub.f32 %v1272, %v3542
      %v3603 = vsub.f32 %v1275, %v3545
      %v3604 = vsub.f32 %v1277, %v3548
      %v3605 = vsub.f32 %v1280, %v3551
      %v3606 = vsub.f32 %v1282, %v3554
      %v3607 = vsub.f32 %v1285, %v3557
      %v3608 = vsub.f32 %v1287, %v3560
      %v3609 = vsub.f32 %v1290, %v3563
      %v3610 = vsub.f32 %v1292, %v3566
      %v3611 = vsub.f32 %v1295, %v3569
      %v3612 = vsub.f32 %v1297, %v3572
      %v3613 = vsub.f32 %v1300, %v3575
      %v3614 = vsub.f32 %v1302, %v3578
      %v3615 = vsub.f32 %v1305, %v3581
      %v3616 = vsub.f32 %v1307, %v3584
      %v3617 = vmul.f32 %v3585, 1.442695
      %v3618 = vpow.pop %v3617
      %v3619 = vmul.f32 %v3586, 1.442695
      %v3620 = vpow.pop %v3619
      %v3621 = vmul.f32 %v3587, 1.442695
      %v3622 = vpow.pop %v3621
      %v3623 = vmul.f32 %v3588, 1.442695
      %v3624 = vpow.pop %v3623
      %v3625 = vmul.f32 %v3589, 1.442695
      %v3626 = vpow.pop %v3625
      %v3627 = vmul.f32 %v3590, 1.442695
      %v3628 = vpow.pop %v3627
      %v3629 = vmul.f32 %v3591, 1.442695
      %v3630 = vpow.pop %v3629
      %v3631 = vmul.f32 %v3592, 1.442695
      %v3632 = vpow.pop %v3631
      %v3633 = vmul.f32 %v3593, 1.442695
      %v3634 = vpow.pop %v3633
      %v3635 = vmul.f32 %v3594, 1.442695
      %v3636 = vpow.pop %v3635
      %v3637 = vmul.f32 %v3595, 1.442695
      %v3638 = vpow.pop %v3637
      %v3639 = vmul.f32 %v3596, 1.442695
      %v3640 = vpow.pop %v3639
      %v3641 = vmul.f32 %v3597, 1.442695
      %v3642 = vpow.pop %v3641
      %v3643 = vmul.f32 %v3598, 1.442695
      %v3644 = vpow.pop %v3643
      %v3645 = vmul.f32 %v3599, 1.442695
      %v3646 = vpow.pop %v3645
      %v3647 = vmul.f32 %v3600, 1.442695
      %v3648 = vpow.pop %v3647
      %v3649 = vmul.f32 %v3601, 1.442695
      %v3650 = vpow.pop %v3649
      %v3651 = vmul.f32 %v3602, 1.442695
      %v3652 = vpow.pop %v3651
      %v3653 = vmul.f32 %v3603, 1.442695
      %v3654 = vpow.pop %v3653
      %v3655 = vmul.f32 %v3604, 1.442695
      %v3656 = vpow.pop %v3655
      %v3657 = vmul.f32 %v3605, 1.442695
      %v3658 = vpow.pop %v3657
      %v3659 = vmul.f32 %v3606, 1.442695
      %v3660 = vpow.pop %v3659
      %v3661 = vmul.f32 %v3607, 1.442695
      %v3662 = vpow.pop %v3661
      %v3663 = vmul.f32 %v3608, 1.442695
      %v3664 = vpow.pop %v3663
      %v3665 = vmul.f32 %v3609, 1.442695
      %v3666 = vpow.pop %v3665
      %v3667 = vmul.f32 %v3610, 1.442695
      %v3668 = vpow.pop %v3667
      %v3669 = vmul.f32 %v3611, 1.442695
      %v3670 = vpow.pop %v3669
      %v3671 = vmul.f32 %v3612, 1.442695
      %v3672 = vpow.pop %v3671
      %v3673 = vmul.f32 %v3613, 1.442695
      %v3674 = vpow.pop %v3673
      %v3675 = vmul.f32 %v3614, 1.442695
      %v3676 = vpow.pop %v3675
      %v3677 = vmul.f32 %v3615, 1.442695
      %v3678 = vpow.pop %v3677
      %v3679 = vmul.f32 %v3616, 1.442695
      %v3680 = vpow.pop %v3679
      %3713 = vrot.lane.b32.xlu0 %v3618, 80
      %v3714 = vpop.permute.xlu0 %3713
      %3715 = vrot.lane.b32.xlu0 %v3620, 80
      %v3716 = vpop.permute.xlu0 %3715
      %3717 = vrot.lane.b32.xlu0 %v3622, 80
      %v3718 = vpop.permute.xlu0 %3717
      %3719 = vrot.lane.b32.xlu0 %v3624, 80
      %v3720 = vpop.permute.xlu0 %3719
      %3721 = vrot.lane.b32.xlu0 %v3626, 80
      %v3722 = vpop.permute.xlu0 %3721
      %3723 = vrot.lane.b32.xlu0 %v3628, 80
      %v3724 = vpop.permute.xlu0 %3723
      %3725 = vrot.lane.b32.xlu0 %v3630, 80
      %v3726 = vpop.permute.xlu0 %3725
      %3727 = vrot.lane.b32.xlu0 %v3632, 80
      %v3728 = vpop.permute.xlu0 %3727
      %3729 = vrot.lane.b32.xlu0 %v3634, 80
      %v3730 = vpop.permute.xlu0 %3729
      %3731 = vrot.lane.b32.xlu0 %v3636, 80
      %v3732 = vpop.permute.xlu0 %3731
      %3733 = vrot.lane.b32.xlu0 %v3638, 80
      %v3734 = vpop.permute.xlu0 %3733
      %3735 = vrot.lane.b32.xlu0 %v3640, 80
      %v3736 = vpop.permute.xlu0 %3735
      %3737 = vrot.lane.b32.xlu0 %v3642, 80
      %v3738 = vpop.permute.xlu0 %3737
      %3739 = vrot.lane.b32.xlu0 %v3644, 80
      %v3740 = vpop.permute.xlu0 %3739
      %3741 = vrot.lane.b32.xlu0 %v3646, 80
      %v3742 = vpop.permute.xlu0 %3741
      %3743 = vrot.lane.b32.xlu0 %v3648, 80
      %v3744 = vpop.permute.xlu0 %3743
      %3745 = vrot.lane.b32.xlu0 %v3650, 80
      %v3746 = vpop.permute.xlu0 %3745
      %3747 = vrot.lane.b32.xlu0 %v3652, 80
      %v3748 = vpop.permute.xlu0 %3747
      %3749 = vrot.lane.b32.xlu0 %v3654, 80
      %v3750 = vpop.permute.xlu0 %3749
      %3751 = vrot.lane.b32.xlu0 %v3656, 80
      %v3752 = vpop.permute.xlu0 %3751
      %3753 = vrot.lane.b32.xlu0 %v3658, 80
      %v3754 = vpop.permute.xlu0 %3753
      %3755 = vrot.lane.b32.xlu0 %v3660, 80
      %v3756 = vpop.permute.xlu0 %3755
      %3757 = vrot.lane.b32.xlu0 %v3662, 80
      %v3758 = vpop.permute.xlu0 %3757
      %3759 = vrot.lane.b32.xlu0 %v3664, 80
      %v3760 = vpop.permute.xlu0 %3759
      %3761 = vrot.lane.b32.xlu0 %v3666, 80
      %v3762 = vpop.permute.xlu0 %3761
      %3763 = vrot.lane.b32.xlu0 %v3668, 80
      %v3764 = vpop.permute.xlu0 %3763
      %3765 = vrot.lane.b32.xlu0 %v3670, 80
      %v3766 = vpop.permute.xlu0 %3765
      %3767 = vrot.lane.b32.xlu0 %v3672, 80
      %v3768 = vpop.permute.xlu0 %3767
      %3769 = vrot.lane.b32.xlu0 %v3674, 80
      %v3770 = vpop.permute.xlu0 %3769
      %3771 = vrot.lane.b32.xlu0 %v3676, 80
      %v3772 = vpop.permute.xlu0 %3771
      %3773 = vrot.lane.b32.xlu0 %v3678, 80
      %v3774 = vpop.permute.xlu0 %3773
      %3775 = vrot.lane.b32.xlu0 %v3680, 80
      %v3776 = vpop.permute.xlu0 %3775
      %v3809 = vsel %vm1309, %v3714, 0.0
      %3810 = vadd.xlane.f32.xlu0 %v3809
      %v3811 = vpop.xlane.xlu0 %3810
      %v3812 = vsel %vm1309, %v3716, 0.0
      %3813 = vadd.xlane.f32.xlu0 %v3812
      %v3814 = vpop.xlane.xlu0 %3813
      %v3815 = vsel %vm1309, %v3718, 0.0
      %3816 = vadd.xlane.f32.xlu0 %v3815
      %v3817 = vpop.xlane.xlu0 %3816
      %v3818 = vsel %vm1309, %v3720, 0.0
      %3819 = vadd.xlane.f32.xlu0 %v3818
      %v3820 = vpop.xlane.xlu0 %3819
      %v3821 = vsel %vm1309, %v3722, 0.0
      %3822 = vadd.xlane.f32.xlu0 %v3821
      %v3823 = vpop.xlane.xlu0 %3822
      %v3824 = vsel %vm1309, %v3724, 0.0
      %3825 = vadd.xlane.f32.xlu0 %v3824
      %v3826 = vpop.xlane.xlu0 %3825
      %v3827 = vsel %vm1309, %v3726, 0.0
      %3828 = vadd.xlane.f32.xlu0 %v3827
      %v3829 = vpop.xlane.xlu0 %3828
      %v3830 = vsel %vm1309, %v3728, 0.0
      %3831 = vadd.xlane.f32.xlu0 %v3830
      %v3832 = vpop.xlane.xlu0 %3831
      %v3833 = vsel %vm1309, %v3730, 0.0
      %3834 = vadd.xlane.f32.xlu0 %v3833
      %v3835 = vpop.xlane.xlu0 %3834
      %v3836 = vsel %vm1309, %v3732, 0.0
      %3837 = vadd.xlane.f32.xlu0 %v3836
      %v3838 = vpop.xlane.xlu0 %3837
      %v3839 = vsel %vm1309, %v3734, 0.0
      %3840 = vadd.xlane.f32.xlu0 %v3839
      %v3841 = vpop.xlane.xlu0 %3840
      %v3842 = vsel %vm1309, %v3736, 0.0
      %3843 = vadd.xlane.f32.xlu0 %v3842
      %v3844 = vpop.xlane.xlu0 %3843
      %v3845 = vsel %vm1309, %v3738, 0.0
      %3846 = vadd.xlane.f32.xlu0 %v3845
      %v3847 = vpop.xlane.xlu0 %3846
      %v3848 = vsel %vm1309, %v3740, 0.0
      %3849 = vadd.xlane.f32.xlu0 %v3848
      %v3850 = vpop.xlane.xlu0 %3849
      %v3851 = vsel %vm1309, %v3742, 0.0
      %3852 = vadd.xlane.f32.xlu0 %v3851
      %v3853 = vpop.xlane.xlu0 %3852
      %v3854 = vsel %vm1309, %v3744, 0.0
      %3855 = vadd.xlane.f32.xlu0 %v3854
      %v3856 = vpop.xlane.xlu0 %3855
      %v3857 = vsel %vm1309, %v3746, 0.0
      %3858 = vadd.xlane.f32.xlu0 %v3857
      %v3859 = vpop.xlane.xlu0 %3858
      %v3860 = vsel %vm1309, %v3748, 0.0
      %3861 = vadd.xlane.f32.xlu0 %v3860
      %v3862 = vpop.xlane.xlu0 %3861
      %v3863 = vsel %vm1309, %v3750, 0.0
      %3864 = vadd.xlane.f32.xlu0 %v3863
      %v3865 = vpop.xlane.xlu0 %3864
      %v3866 = vsel %vm1309, %v3752, 0.0
      %3867 = vadd.xlane.f32.xlu0 %v3866
      %v3868 = vpop.xlane.xlu0 %3867
      %v3869 = vsel %vm1309, %v3754, 0.0
      %3870 = vadd.xlane.f32.xlu0 %v3869
      %v3871 = vpop.xlane.xlu0 %3870
      %v3872 = vsel %vm1309, %v3756, 0.0
      %3873 = vadd.xlane.f32.xlu0 %v3872
      %v3874 = vpop.xlane.xlu0 %3873
      %v3875 = vsel %vm1309, %v3758, 0.0
      %3876 = vadd.xlane.f32.xlu0 %v3875
      %v3877 = vpop.xlane.xlu0 %3876
      %v3878 = vsel %vm1309, %v3760, 0.0
      %3879 = vadd.xlane.f32.xlu0 %v3878
      %v3880 = vpop.xlane.xlu0 %3879
      %v3881 = vsel %vm1309, %v3762, 0.0
      %3882 = vadd.xlane.f32.xlu0 %v3881
      %v3883 = vpop.xlane.xlu0 %3882
      %v3884 = vsel %vm1309, %v3764, 0.0
      %3885 = vadd.xlane.f32.xlu0 %v3884
      %v3886 = vpop.xlane.xlu0 %3885
      %v3887 = vsel %vm1309, %v3766, 0.0
      %3888 = vadd.xlane.f32.xlu0 %v3887
      %v3889 = vpop.xlane.xlu0 %3888
      %v3890 = vsel %vm1309, %v3768, 0.0
      %3891 = vadd.xlane.f32.xlu0 %v3890
      %v3892 = vpop.xlane.xlu0 %3891
      %v3893 = vsel %vm1309, %v3770, 0.0
      %3894 = vadd.xlane.f32.xlu0 %v3893
      %v3895 = vpop.xlane.xlu0 %3894
      %v3896 = vsel %vm1309, %v3772, 0.0
      %3897 = vadd.xlane.f32.xlu0 %v3896
      %v3898 = vpop.xlane.xlu0 %3897
      %v3899 = vsel %vm1309, %v3774, 0.0
      %3900 = vadd.xlane.f32.xlu0 %v3899
      %v3901 = vpop.xlane.xlu0 %3900
      %v3902 = vsel %vm1309, %v3776, 0.0
      %3903 = vadd.xlane.f32.xlu0 %v3902
      %v3904 = vpop.xlane.xlu0 %3903
      %v3905 = vrcp.pop %v3811
      %v3906 = vrcp.pop %v3814
      %v3907 = vrcp.pop %v3817
      %v3908 = vrcp.pop %v3820
      %v3909 = vrcp.pop %v3823
      %v3910 = vrcp.pop %v3826
      %v3911 = vrcp.pop %v3829
      %v3912 = vrcp.pop %v3832
      %v3913 = vrcp.pop %v3835
      %v3914 = vrcp.pop %v3838
      %v3915 = vrcp.pop %v3841
      %v3916 = vrcp.pop %v3844
      %v3917 = vrcp.pop %v3847
      %v3918 = vrcp.pop %v3850
      %v3919 = vrcp.pop %v3853
      %v3920 = vrcp.pop %v3856
      %v3921 = vrcp.pop %v3859
      %v3922 = vrcp.pop %v3862
      %v3923 = vrcp.pop %v3865
      %v3924 = vrcp.pop %v3868
      %v3925 = vrcp.pop %v3871
      %v3926 = vrcp.pop %v3874
      %v3927 = vrcp.pop %v3877
      %v3928 = vrcp.pop %v3880
      %v3929 = vrcp.pop %v3883
      %v3930 = vrcp.pop %v3886
      %v3931 = vrcp.pop %v3889
      %v3932 = vrcp.pop %v3892
      %v3933 = vrcp.pop %v3895
      %v3934 = vrcp.pop %v3898
      %v3935 = vrcp.pop %v3901
      %v3936 = vrcp.pop %v3904
      %v3937 = vmul.f32 %v3618, %v3905
      %v3938 = vmul.f32 %v3620, %v3906
      %v3939 = vmul.f32 %v3622, %v3907
      %v3940 = vmul.f32 %v3624, %v3908
      %v3941 = vmul.f32 %v3626, %v3909
      %v3942 = vmul.f32 %v3628, %v3910
      %v3943 = vmul.f32 %v3630, %v3911
      %v3944 = vmul.f32 %v3632, %v3912
      %v3945 = vmul.f32 %v3634, %v3913
      %v3946 = vmul.f32 %v3636, %v3914
      %v3947 = vmul.f32 %v3638, %v3915
      %v3948 = vmul.f32 %v3640, %v3916
      %v3949 = vmul.f32 %v3642, %v3917
      %v3950 = vmul.f32 %v3644, %v3918
      %v3951 = vmul.f32 %v3646, %v3919
      %v3952 = vmul.f32 %v3648, %v3920
      %v3953 = vmul.f32 %v3650, %v3921
      %v3954 = vmul.f32 %v3652, %v3922
      %v3955 = vmul.f32 %v3654, %v3923
      %v3956 = vmul.f32 %v3656, %v3924
      %v3957 = vmul.f32 %v3658, %v3925
      %v3958 = vmul.f32 %v3660, %v3926
      %v3959 = vmul.f32 %v3662, %v3927
      %v3960 = vmul.f32 %v3664, %v3928
      %v3961 = vmul.f32 %v3666, %v3929
      %v3962 = vmul.f32 %v3668, %v3930
      %v3963 = vmul.f32 %v3670, %v3931
      %v3964 = vmul.f32 %v3672, %v3932
      %v3965 = vmul.f32 %v3674, %v3933
      %v3966 = vmul.f32 %v3676, %v3934
      %v3967 = vmul.f32 %v3678, %v3935
      %v3968 = vmul.f32 %v3680, %v3936
      %3969 = vset.pattern.permute.xlu0 3
      %3970 = vperm.xlu0 %3969, %v1104
      %v3971 = vpop.permute.xlu0 %3970
      %3973 = vset.pattern.permute.xlu0 3
      %3974 = vperm.xlu0 %3973, %v1105
      %v3975 = vpop.permute.xlu0 %3974
      %3977 = vset.pattern.permute.xlu0 3
      %3978 = vperm.xlu0 %3977, %v1106
      %v3979 = vpop.permute.xlu0 %3978
      %3981 = vset.pattern.permute.xlu0 3
      %3982 = vperm.xlu0 %3981, %v1107
      %v3983 = vpop.permute.xlu0 %3982
      %3985 = vset.pattern.permute.xlu0 3
      %3986 = vperm.xlu0 %3985, %v1108
      %v3987 = vpop.permute.xlu0 %3986
      %3989 = vset.pattern.permute.xlu0 3
      %3990 = vperm.xlu0 %3989, %v1109
      %v3991 = vpop.permute.xlu0 %3990
      %3993 = vset.pattern.permute.xlu0 3
      %3994 = vperm.xlu0 %3993, %v1110
      %v3995 = vpop.permute.xlu0 %3994
      %3997 = vset.pattern.permute.xlu0 3
      %3998 = vperm.xlu0 %3997, %v1111
      %v3999 = vpop.permute.xlu0 %3998
      %4001 = vset.pattern.permute.xlu0 3
      %4002 = vperm.xlu0 %4001, %v1112
      %v4003 = vpop.permute.xlu0 %4002
      %4005 = vset.pattern.permute.xlu0 3
      %4006 = vperm.xlu0 %4005, %v1113
      %v4007 = vpop.permute.xlu0 %4006
      %4009 = vset.pattern.permute.xlu0 3
      %4010 = vperm.xlu0 %4009, %v1114
      %v4011 = vpop.permute.xlu0 %4010
      %4013 = vset.pattern.permute.xlu0 3
      %4014 = vperm.xlu0 %4013, %v1115
      %v4015 = vpop.permute.xlu0 %4014
      %4017 = vset.pattern.permute.xlu0 3
      %4018 = vperm.xlu0 %4017, %v1116
      %v4019 = vpop.permute.xlu0 %4018
      %4021 = vset.pattern.permute.xlu0 3
      %4022 = vperm.xlu0 %4021, %v1117
      %v4023 = vpop.permute.xlu0 %4022
      %4025 = vset.pattern.permute.xlu0 3
      %4026 = vperm.xlu0 %4025, %v1118
      %v4027 = vpop.permute.xlu0 %4026
      %4029 = vset.pattern.permute.xlu0 3
      %4030 = vperm.xlu0 %4029, %v1119
      %v4031 = vpop.permute.xlu0 %4030
      %4033 = vset.pattern.permute.xlu0 3
      %4034 = vperm.xlu0 %4033, %v1120
      %v4035 = vpop.permute.xlu0 %4034
      %4037 = vset.pattern.permute.xlu0 3
      %4038 = vperm.xlu0 %4037, %v1121
      %v4039 = vpop.permute.xlu0 %4038
      %4041 = vset.pattern.permute.xlu0 3
      %4042 = vperm.xlu0 %4041, %v1122
      %v4043 = vpop.permute.xlu0 %4042
      %4045 = vset.pattern.permute.xlu0 3
      %4046 = vperm.xlu0 %4045, %v1123
      %v4047 = vpop.permute.xlu0 %4046
      %4049 = vset.pattern.permute.xlu0 3
      %4050 = vperm.xlu0 %4049, %v1124
      %v4051 = vpop.permute.xlu0 %4050
      %4053 = vset.pattern.permute.xlu0 3
      %4054 = vperm.xlu0 %4053, %v1125
      %v4055 = vpop.permute.xlu0 %4054
      %4057 = vset.pattern.permute.xlu0 3
      %4058 = vperm.xlu0 %4057, %v1126
      %v4059 = vpop.permute.xlu0 %4058
      %4061 = vset.pattern.permute.xlu0 3
      %4062 = vperm.xlu0 %4061, %v1127
      %v4063 = vpop.permute.xlu0 %4062
      %4065 = vset.pattern.permute.xlu0 3
      %4066 = vperm.xlu0 %4065, %v1128
      %v4067 = vpop.permute.xlu0 %4066
      %4069 = vset.pattern.permute.xlu0 3
      %4070 = vperm.xlu0 %4069, %v1129
      %v4071 = vpop.permute.xlu0 %4070
      %4073 = vset.pattern.permute.xlu0 3
      %4074 = vperm.xlu0 %4073, %v1130
      %v4075 = vpop.permute.xlu0 %4074
      %4077 = vset.pattern.permute.xlu0 3
      %4078 = vperm.xlu0 %4077, %v1131
      %v4079 = vpop.permute.xlu0 %4078
      %4081 = vset.pattern.permute.xlu0 3
      %4082 = vperm.xlu0 %4081, %v1132
      %v4083 = vpop.permute.xlu0 %4082
      %4085 = vset.pattern.permute.xlu0 3
      %4086 = vperm.xlu0 %4085, %v1133
      %v4087 = vpop.permute.xlu0 %4086
      %4089 = vset.pattern.permute.xlu0 3
      %4090 = vperm.xlu0 %4089, %v1134
      %v4091 = vpop.permute.xlu0 %4090
      %4093 = vset.pattern.permute.xlu0 3
      %4094 = vperm.xlu0 %4093, %v1135
      %v4095 = vpop.permute.xlu0 %4094
      %v4097 = vmul.f32 %v3937, %v3971
      %v4098 = vmul.f32 %v3938, %v3975
      %v4099 = vmul.f32 %v3939, %v3979
      %v4100 = vmul.f32 %v3940, %v3983
      %v4101 = vmul.f32 %v3941, %v3987
      %v4102 = vmul.f32 %v3942, %v3991
      %v4103 = vmul.f32 %v3943, %v3995
      %v4104 = vmul.f32 %v3944, %v3999
      %v4105 = vmul.f32 %v3945, %v4003
      %v4106 = vmul.f32 %v3946, %v4007
      %v4107 = vmul.f32 %v3947, %v4011
      %v4108 = vmul.f32 %v3948, %v4015
      %v4109 = vmul.f32 %v3949, %v4019
      %v4110 = vmul.f32 %v3950, %v4023
      %v4111 = vmul.f32 %v3951, %v4027
      %v4112 = vmul.f32 %v3952, %v4031
      %v4113 = vmul.f32 %v3953, %v4035
      %v4114 = vmul.f32 %v3954, %v4039
      %v4115 = vmul.f32 %v3955, %v4043
      %v4116 = vmul.f32 %v3956, %v4047
      %v4117 = vmul.f32 %v3957, %v4051
      %v4118 = vmul.f32 %v3958, %v4055
      %v4119 = vmul.f32 %v3959, %v4059
      %v4120 = vmul.f32 %v3960, %v4063
      %v4121 = vmul.f32 %v3961, %v4067
      %v4122 = vmul.f32 %v3962, %v4071
      %v4123 = vmul.f32 %v3963, %v4075
      %v4124 = vmul.f32 %v3964, %v4079
      %v4125 = vmul.f32 %v3965, %v4083
      %v4126 = vmul.f32 %v3966, %v4087
      %v4127 = vmul.f32 %v3967, %v4091
      %v4128 = vmul.f32 %v3968, %v4095
      %4161 = vrot.lane.b32.xlu0 %v4097, 80
      %v4162 = vpop.permute.xlu0 %4161
      %4163 = vrot.lane.b32.xlu0 %v4098, 80
      %v4164 = vpop.permute.xlu0 %4163
      %4165 = vrot.lane.b32.xlu0 %v4099, 80
      %v4166 = vpop.permute.xlu0 %4165
      %4167 = vrot.lane.b32.xlu0 %v4100, 80
      %v4168 = vpop.permute.xlu0 %4167
      %4169 = vrot.lane.b32.xlu0 %v4101, 80
      %v4170 = vpop.permute.xlu0 %4169
      %4171 = vrot.lane.b32.xlu0 %v4102, 80
      %v4172 = vpop.permute.xlu0 %4171
      %4173 = vrot.lane.b32.xlu0 %v4103, 80
      %v4174 = vpop.permute.xlu0 %4173
      %4175 = vrot.lane.b32.xlu0 %v4104, 80
      %v4176 = vpop.permute.xlu0 %4175
      %4177 = vrot.lane.b32.xlu0 %v4105, 80
      %v4178 = vpop.permute.xlu0 %4177
      %4179 = vrot.lane.b32.xlu0 %v4106, 80
      %v4180 = vpop.permute.xlu0 %4179
      %4181 = vrot.lane.b32.xlu0 %v4107, 80
      %v4182 = vpop.permute.xlu0 %4181
      %4183 = vrot.lane.b32.xlu0 %v4108, 80
      %v4184 = vpop.permute.xlu0 %4183
      %4185 = vrot.lane.b32.xlu0 %v4109, 80
      %v4186 = vpop.permute.xlu0 %4185
      %4187 = vrot.lane.b32.xlu0 %v4110, 80
      %v4188 = vpop.permute.xlu0 %4187
      %4189 = vrot.lane.b32.xlu0 %v4111, 80
      %v4190 = vpop.permute.xlu0 %4189
      %4191 = vrot.lane.b32.xlu0 %v4112, 80
      %v4192 = vpop.permute.xlu0 %4191
      %4193 = vrot.lane.b32.xlu0 %v4113, 80
      %v4194 = vpop.permute.xlu0 %4193
      %4195 = vrot.lane.b32.xlu0 %v4114, 80
      %v4196 = vpop.permute.xlu0 %4195
      %4197 = vrot.lane.b32.xlu0 %v4115, 80
      %v4198 = vpop.permute.xlu0 %4197
      %4199 = vrot.lane.b32.xlu0 %v4116, 80
      %v4200 = vpop.permute.xlu0 %4199
      %4201 = vrot.lane.b32.xlu0 %v4117, 80
      %v4202 = vpop.permute.xlu0 %4201
      %4203 = vrot.lane.b32.xlu0 %v4118, 80
      %v4204 = vpop.permute.xlu0 %4203
      %4205 = vrot.lane.b32.xlu0 %v4119, 80
      %v4206 = vpop.permute.xlu0 %4205
      %4207 = vrot.lane.b32.xlu0 %v4120, 80
      %v4208 = vpop.permute.xlu0 %4207
      %4209 = vrot.lane.b32.xlu0 %v4121, 80
      %v4210 = vpop.permute.xlu0 %4209
      %4211 = vrot.lane.b32.xlu0 %v4122, 80
      %v4212 = vpop.permute.xlu0 %4211
      %4213 = vrot.lane.b32.xlu0 %v4123, 80
      %v4214 = vpop.permute.xlu0 %4213
      %4215 = vrot.lane.b32.xlu0 %v4124, 80
      %v4216 = vpop.permute.xlu0 %4215
      %4217 = vrot.lane.b32.xlu0 %v4125, 80
      %v4218 = vpop.permute.xlu0 %4217
      %4219 = vrot.lane.b32.xlu0 %v4126, 80
      %v4220 = vpop.permute.xlu0 %4219
      %4221 = vrot.lane.b32.xlu0 %v4127, 80
      %v4222 = vpop.permute.xlu0 %4221
      %4223 = vrot.lane.b32.xlu0 %v4128, 80
      %v4224 = vpop.permute.xlu0 %4223
      %v4257 = vadd.f32 %v3456, %v4162
      %v4258 = vadd.f32 %v3457, %v4164
      %v4259 = vadd.f32 %v3458, %v4166
      %v4260 = vadd.f32 %v3459, %v4168
      %v4261 = vadd.f32 %v3460, %v4170
      %v4262 = vadd.f32 %v3461, %v4172
      %v4263 = vadd.f32 %v3462, %v4174
      %v4264 = vadd.f32 %v3463, %v4176
      %v4265 = vadd.f32 %v3464, %v4178
      %v4266 = vadd.f32 %v3465, %v4180
      %v4267 = vadd.f32 %v3466, %v4182
      %v4268 = vadd.f32 %v3467, %v4184
      %v4269 = vadd.f32 %v3468, %v4186
      %v4270 = vadd.f32 %v3469, %v4188
      %v4271 = vadd.f32 %v3470, %v4190
      %v4272 = vadd.f32 %v3471, %v4192
      %v4273 = vadd.f32 %v3472, %v4194
      %v4274 = vadd.f32 %v3473, %v4196
      %v4275 = vadd.f32 %v3474, %v4198
      %v4276 = vadd.f32 %v3475, %v4200
      %v4277 = vadd.f32 %v3476, %v4202
      %v4278 = vadd.f32 %v3477, %v4204
      %v4279 = vadd.f32 %v3478, %v4206
      %v4280 = vadd.f32 %v3479, %v4208
      %v4281 = vadd.f32 %v3480, %v4210
      %v4282 = vadd.f32 %v3481, %v4212
      %v4283 = vadd.f32 %v3482, %v4214
      %v4284 = vadd.f32 %v3483, %v4216
      %v4285 = vadd.f32 %v3484, %v4218
      %v4286 = vadd.f32 %v3485, %v4220
      %v4287 = vadd.f32 %v3486, %v4222
      %v4288 = vadd.f32 %v3487, %v4224
      %4289 = vst.msk [vmem:[%s253] sm:$0xff] %vm1309, %v4257
      %4290 = vst.msk [vmem:[%s253 + $0x8] sm:$0xff] %vm1309, %v4258
      %4291 = vst.msk [vmem:[%s253 + $0x10] sm:$0xff] %vm1309, %v4259
      %4292 = vst.msk [vmem:[%s253 + $0x18] sm:$0xff] %vm1309, %v4260
      %4293 = vst.msk [vmem:[%s253 + $0x20] sm:$0xff] %vm1309, %v4261
      %4294 = vst.msk [vmem:[%s253 + $0x28] sm:$0xff] %vm1309, %v4262
      %4295 = vst.msk [vmem:[%s253 + $0x30] sm:$0xff] %vm1309, %v4263
      %4296 = vst.msk [vmem:[%s253 + $0x38] sm:$0xff] %vm1309, %v4264
      %4297 = vst.msk [vmem:[%s253 + $0x40] sm:$0xff] %vm1309, %v4265
      %4298 = vst.msk [vmem:[%s253 + $0x48] sm:$0xff] %vm1309, %v4266
      %4299 = vst.msk [vmem:[%s253 + $0x50] sm:$0xff] %vm1309, %v4267
      %4300 = vst.msk [vmem:[%s253 + $0x58] sm:$0xff] %vm1309, %v4268
      %4301 = vst.msk [vmem:[%s253 + $0x60] sm:$0xff] %vm1309, %v4269
      %4302 = vst.msk [vmem:[%s253 + $0x68] sm:$0xff] %vm1309, %v4270
      %4303 = vst.msk [vmem:[%s253 + $0x70] sm:$0xff] %vm1309, %v4271
      %4304 = vst.msk [vmem:[%s253 + $0x78] sm:$0xff] %vm1309, %v4272
      %4305 = vst.msk [vmem:[%s253 + $0x80] sm:$0xff] %vm1309, %v4273
      %4306 = vst.msk [vmem:[%s253 + $0x88] sm:$0xff] %vm1309, %v4274
      %4307 = vst.msk [vmem:[%s253 + $0x90] sm:$0xff] %vm1309, %v4275
      %4308 = vst.msk [vmem:[%s253 + $0x98] sm:$0xff] %vm1309, %v4276
      %4309 = vst.msk [vmem:[%s253 + $0xa0] sm:$0xff] %vm1309, %v4277
      %4310 = vst.msk [vmem:[%s253 + $0xa8] sm:$0xff] %vm1309, %v4278
      %4311 = vst.msk [vmem:[%s253 + $0xb0] sm:$0xff] %vm1309, %v4279
      %4312 = vst.msk [vmem:[%s253 + $0xb8] sm:$0xff] %vm1309, %v4280
      %4313 = vst.msk [vmem:[%s253 + $0xc0] sm:$0xff] %vm1309, %v4281
      %4314 = vst.msk [vmem:[%s253 + $0xc8] sm:$0xff] %vm1309, %v4282
      %4315 = vst.msk [vmem:[%s253 + $0xd0] sm:$0xff] %vm1309, %v4283
      %4316 = vst.msk [vmem:[%s253 + $0xd8] sm:$0xff] %vm1309, %v4284
      %4317 = vst.msk [vmem:[%s253 + $0xe0] sm:$0xff] %vm1309, %v4285
      %4318 = vst.msk [vmem:[%s253 + $0xe8] sm:$0xff] %vm1309, %v4286
      %4319 = vst.msk [vmem:[%s253 + $0xf0] sm:$0xff] %vm1309, %v4287
      %4320 = vst.msk [vmem:[%s253 + $0xf8] sm:$0xff] %vm1309, %v4288
      %s4321 = smul.u32 32, %s17
      %p4322 = scmp.lt.s32.totalorder %s4321, 127
      %s4323 = scalar_select %p4322, %s4321, 127
      %s4324 = smul.addr %s4323, 8
      %s4325 = scalar_lea.vmem %s6, %s4324
      // Predicated region
      $region45: #{tpu_custom_call.1} parent=43 // pred_check
        %p4326 = pneg %p166
      $region46: #{tpu_custom_call.1} parent=43 // pred_check_branch
        %4328 = sbr.rel (%p4326) target = $region48
      $region47: #{tpu_custom_call.1} parent=43 // pred_region
        %s4329 = smul.u32 32, %s17
      $region48: #{tpu_custom_call.1} parent=43 // pred_fallthru
        _
    $region44: #{tpu_custom_call.1} parent=5 // pred_fallthru
      _
    %p4330 = scmp.le.s32.totalorder 2, %s12
    // Predicated region
    $region49: #{tpu_custom_call.1} parent=5 // pred_check
      %p4331 = pneg %p4330
    $region50: #{tpu_custom_call.1} parent=5 // pred_check_branch
      %4333 = sbr.rel (%p4331) target = $region52
    $region51: #{tpu_custom_call.1} parent=5 // pred_region
      %s4334 = ssub.s32 %s12, 2
      // Predicated region
      $region53: #{tpu_custom_call.1} parent=51 // pred_check
        %p4335 = pneg %p172
      $region54: #{tpu_custom_call.1} parent=51 // pred_check_branch
        %4337 = sbr.rel (%p4335) target = $region56
      $region55: #{tpu_custom_call.1} parent=51 // pred_region
        %s4338 = smul.u32 32, %s18
        %p4339 = scmp.lt.s32.totalorder %s4338, 127
        %s4340 = scalar_select %p4339, %s4338, 127
        %s4341 = smul.addr %s4340, 8
        %s4342 = scalar_lea.vmem %s6, %s4341
      $region56: #{tpu_custom_call.1} parent=51 // pred_fallthru
        _
    $region52: #{tpu_custom_call.1} parent=5 // pred_fallthru
      _
  $region6: #{tpu_custom_call.1} parent=0 // loop_footer
    %s16 = sadd.s32 1, %s12
  $region7: #{tpu_custom_call.1} parent=0 // loop_footer_branch
    %11 = sbr.rel target = $region3
  $region8: #{tpu_custom_call.1} parent=0 // loop_exit
    _

</llo_original>
